<compile_context>
chip_gen: v6e
topology: v6e:2x2x1
jax: 0.10.0
libtpu: 0.0.40
codegen_flags: <defaults>
</compile_context>

<pallas_src>
import numpy as np
import jax
import jax.numpy as jnp
from jax.experimental import pallas as pl
from jax.experimental.pallas import tpu as pltpu

_VMEM = pl.BlockSpec(memory_space=pltpu.MemorySpace.VMEM)
# bf16 operands / f32 accumulation for conv2's big MXU matmul (v6e/v7x native
# rate).  Flip to jnp.float32 if bit-exact f32 behaviour is required.
_CONV2_MXU_DTYPE = jnp.bfloat16


# ---------------------------------------------------------------------------
# Fused Pallas kernel: ConvBlock x2 + masked average pooling + MLP head
# ---------------------------------------------------------------------------

def _make_basenet_kernel(D, H, W, n_ch):
    DHW = D * H * W

    def kernel(x_ref, m_ref, tapm_ref,
               w1_ref, g1_ref, be1_ref,
               w2_ref, g2_ref, be2_ref,
               fc1w_ref, fc1b_ref, fc2wt_ref, fc2b_ref, fc3w_ref, fc3b_ref,
               o_ref, stk1_ref, stk2_ref):

        def stack_taps(fin, cin, stk_ref, dst_dtype):
            """Write the 27 rolled + boundary-masked copies of fin (cin, DHW)
            into stk_ref rows [t*cin, (t+1)*cin), tap-major (kd, kh, kw)."""
            t = 0
            for kd in range(3):
                for kh in range(3):
                    for kw in range(3):
                        dd, dh, dw = kd - 1, kh - 1, kw - 1
                        delta = (dd * H + dh) * W + dw        # flat-index shift
                        if delta == 0:
                            shifted = fin                     # centre tap: mask == 1
                        else:
                            shifted = pltpu.roll(fin, shift=(-delta) % DHW, axis=1)
                            shifted = shifted * tapm_ref[pl.ds(t, 1), :]
                        stk_ref[pl.ds(t * cin, cin), :] = shifted.astype(dst_dtype)
                        t += 1

        def inorm_lrelu(y, g_ref, b_ref):
            # InstanceNorm3d (N=1, affine, eps=1e-5), one-pass stats, LeakyReLU(0.01).
            inv_n = 1.0 / DHW
            mean = jnp.sum(y, axis=1, keepdims=True) * inv_n
            var = jnp.sum(y * y, axis=1, keepdims=True) * inv_n - mean * mean
            z = (y - mean) * jax.lax.rsqrt(var + 1e-5) * g_ref[...] + b_ref[...]
            return jnp.maximum(z, 0.01 * z)

        # --- ConvBlock 1: Conv3d(1, nCh) as one (nCh,27) x (27,DHW) MXU matmul.
        # Conv bias omitted: InstanceNorm's mean subtraction cancels it exactly.
        stack_taps(x_ref[...], 1, stk1_ref, jnp.float32)
        f1 = inorm_lrelu(
            jnp.dot(w1_ref[...], stk1_ref[...], preferred_element_type=jnp.float32),
            g1_ref, be1_ref)

        # --- ConvBlock 2: Conv3d(nCh, nCh) as one (nCh, 27*nCh) x (27*nCh, DHW)
        # bf16 MXU matmul with f32 accumulation.
        stack_taps(f1, n_ch, stk2_ref, _CONV2_MXU_DTYPE)
        f2 = inorm_lrelu(
            jnp.dot(w2_ref[...], stk2_ref[...], preferred_element_type=jnp.float32),
            g2_ref, be2_ref)

        # --- Masked average pooling (mask matches the feature spatial size).
        msk = m_ref[...]                                           # (1, DHW)
        area = jnp.sum(msk, axis=1, keepdims=True) + 1e-12         # (1, 1)
        pooled = jnp.sum(f2 * msk, axis=1, keepdims=True) / area   # (nCh, 1)

        # --- MLP head, entirely on the VPU/XLU (no M=1 MXU matmuls, no transposes):
        # column -> sublane reduce -> row -> lane reduce -> column -> sublane reduce.
        h1 = jnp.sum(pooled * fc1w_ref[...], axis=0, keepdims=True) + fc1b_ref[...]   # (1, nFC)
        h1 = jnp.maximum(h1, 0.0)
        h2 = jnp.sum(h1 * fc2wt_ref[...], axis=1, keepdims=True) + fc2b_ref[...]      # (nFC, 1)
        h2 = jnp.maximum(h2, 0.0)
        o_ref[...] = jnp.sum(h2 * fc3w_ref[...], axis=0, keepdims=True) + fc3b_ref[...]

    return kernel


# ---------------------------------------------------------------------------
# One-time parameter relayout + boundary tap masks (hoisted out of the wrapper)
# ---------------------------------------------------------------------------

def _tap_masks(D, H, W):
    """(27, DHW) float32 validity masks, tap-major (kd, kh, kw) order."""
    d = np.arange(D)[:, None, None]
    h = np.arange(H)[None, :, None]
    w = np.arange(W)[None, None, :]
    masks = []
    for kd in range(3):
        for kh in range(3):
            for kw in range(3):
                dd, dh, dw = kd - 1, kh - 1, kw - 1
                ok = ((d + dd >= 0) & (d + dd < D) &
                      (h + dh >= 0) & (h + dh < H) &
                      (w + dw >= 0) & (w + dw < W))
                masks.append(ok.reshape(-1).astype(np.float32))
    return jnp.asarray(np.stack(masks, axis=0))


def prepare_params(params, D, H, W):
    """Done ONCE at init: conv-weight relayout to the stacked-K (tap-major)
    layout, MLP weight orientation, InstanceNorm/bias reshapes, tap masks."""
    n_ch = params["in1_g"].shape[0]
    return {
        # torch Conv3d (Cout,Cin,3,3,3) -> stacked-K layouts.
        "w1": params["conv1_w"].reshape(n_ch, 27).astype(jnp.float32),          # (nCh, 27)
        "w2": jnp.transpose(params["conv2_w"], (0, 2, 3, 4, 1))
                 .reshape(n_ch, 27 * n_ch).astype(_CONV2_MXU_DTYPE),            # (nCh, 27*nCh)
        "tapm": _tap_masks(D, H, W),                                            # (27, DHW)
        "g1": params["in1_g"].reshape(n_ch, 1), "b1": params["in1_b"].reshape(n_ch, 1),
        "g2": params["in2_g"].reshape(n_ch, 1), "b2": params["in2_b"].reshape(n_ch, 1),
        "fc1_w": params["fc1_w"],                 "fc1_b": params["fc1_b"].reshape(1, -1),
        "fc2_wT": params["fc2_w"].T,              "fc2_b": params["fc2_b"].reshape(-1, 1),
        "fc3_w": params["fc3_w"],                 "fc3_b": params["fc3_b"].reshape(1, -1),
    }


# ---------------------------------------------------------------------------
# Wrapper: single fused pallas_call
# ---------------------------------------------------------------------------

def basenet_forward(x, y, prep):
    """x, y: (1, 1, D, H, W) float32 (NCDHW, N must be 1).  Returns (1, nOut)."""
    n_ch = prep["g1"].shape[0]
    n_out = prep["fc3_b"].shape[1]
    D, H, W = x.shape[2], x.shape[3], x.shape[4]
    DHW = D * H * W

    x_flat = x.reshape(1, DHW).astype(jnp.float32)   # (Cin=1, DHW)
    m_flat = y.reshape(1, DHW).astype(jnp.float32)   # (1, DHW)

    kernel = _make_basenet_kernel(D, H, W, n_ch)
    return pl.pallas_call(
        kernel,
        out_shape=jax.ShapeDtypeStruct((1, n_out), jnp.float32),
        in_specs=[_VMEM] * 15,
        out_specs=_VMEM,
        scratch_shapes=[pltpu.VMEM((27, DHW), jnp.float32),            # conv1 stacked-K
                        pltpu.VMEM((27 * n_ch, DHW), _CONV2_MXU_DTYPE)],  # conv2 stacked-K
    )(x_flat, m_flat, prep["tapm"],
      prep["w1"], prep["g1"], prep["b1"],
      prep["w2"], prep["g2"], prep["b2"],
      prep["fc1_w"], prep["fc1_b"], prep["fc2_wT"], prep["fc2_b"],
      prep["fc3_w"], prep["fc3_b"])


# ---------------------------------------------------------------------------
# Parameter init (deterministic, synthetic)
# ---------------------------------------------------------------------------

def init_params(key, n_ch=8, n_out=5):
    n_fc = n_ch * 4
    ks = jax.random.split(key, 14)
    p = {}
    # ConvBlock 1: Conv3d(1, nCh) + InstanceNorm3d(nCh, affine=True)
    p["conv1_w"] = 0.2 * jax.random.normal(ks[0], (n_ch, 1, 3, 3, 3), jnp.float32)
    p["conv1_b"] = 0.1 * jax.random.normal(ks[1], (n_ch,), jnp.float32)  # cancelled by IN
    p["in1_g"] = 1.0 + 0.1 * jax.random.normal(ks[2], (n_ch,), jnp.float32)
    p["in1_b"] = 0.1 * jax.random.normal(ks[3], (n_ch,), jnp.float32)
    # ConvBlock 2: Conv3d(nCh, nCh) + InstanceNorm3d(nCh, affine=True)
    p["conv2_w"] = 0.1 * jax.random.normal(ks[4], (n_ch, n_ch, 3, 3, 3), jnp.float32)
    p["conv2_b"] = 0.1 * jax.random.normal(ks[5], (n_ch,), jnp.float32)  # cancelled by IN
    p["in2_g"] = 1.0 + 0.1 * jax.random.normal(ks[6], (n_ch,), jnp.float32)
    p["in2_b"] = 0.1 * jax.random.normal(ks[7], (n_ch,), jnp.float32)
    # fc1/fc2/fc3 stored as (in, out)
    p["fc1_w"] = 0.2 * jax.random.normal(ks[8], (n_ch, n_fc), jnp.float32)
    p["fc1_b"] = 0.1 * jax.random.normal(ks[9], (n_fc,), jnp.float32)
    p["fc2_w"] = 0.2 * jax.random.normal(ks[10], (n_fc, n_fc), jnp.float32)
    p["fc2_b"] = 0.1 * jax.random.normal(ks[11], (n_fc,), jnp.float32)
    p["fc3_w"] = 0.2 * jax.random.normal(ks[12], (n_fc, n_out), jnp.float32)
    p["fc3_b"] = 0.1 * jax.random.normal(ks[13], (n_out,), jnp.float32)
    return p


# ---------------------------------------------------------------------------
# Pure-JAX reference (matches the PyTorch BaseNet.forward semantics)
# ---------------------------------------------------------------------------

def ref_forward(x, y, params):
    hp = jax.lax.Precision.HIGHEST

    def conv_block(inp, w, b, g, beta):
        z = jax.lax.conv_general_dilated(
            inp, w, window_strides=(1, 1, 1),
            padding=((1, 1), (1, 1), (1, 1)),
            dimension_numbers=("NCDHW", "OIDHW", "NCDHW"),
            precision=hp) + b.reshape(1, -1, 1, 1, 1)
        mean = jnp.mean(z, axis=(2, 3, 4), keepdims=True)
        var = jnp.mean((z - mean) ** 2, axis=(2, 3, 4), keepdims=True)
        zn = (z - mean) * jax.lax.rsqrt(var + 1e-5)
        zn = zn * g.reshape(1, -1, 1, 1, 1) + beta.reshape(1, -1, 1, 1, 1)
        return jnp.where(zn >= 0.0, zn, 0.01 * zn)

    f = conv_block(x, params["conv1_w"], params["conv1_b"], params["in1_g"], params["in1_b"])
    f = conv_block(f, params["conv2_w"], params["conv2_b"], params["in2_g"], params["in2_b"])

    area = jnp.sum(y.reshape(1, -1), axis=1, keepdims=True) + 1e-12
    pooled = jnp.sum((f * y).reshape(1, f.shape[1], -1), axis=2) / area   # (1, nCh)
    h = jax.nn.relu(jnp.dot(pooled, params["fc1_w"], precision=hp) + params["fc1_b"])
    h = jax.nn.relu(jnp.dot(h, params["fc2_w"], precision=hp) + params["fc2_b"])
    return jnp.dot(h, params["fc3_w"], precision=hp) + params["fc3_b"]


# ---------------------------------------------------------------------------
# Main
# ---------------------------------------------------------------------------

if __name__ == "__main__":
    key = jax.random.PRNGKey(0)
    k_par, k_x, k_y = jax.random.split(key, 3)

    D = H = W = 8
    params = init_params(k_par, n_ch=8, n_out=5)
    prep = prepare_params(params, D, H, W)   # one-time relayout + tap masks

    x = jax.random.normal(k_x, (1, 1, D, H, W), jnp.float32)
    y = (jax.random.uniform(k_y, (1, 1, D, H, W)) > 0.4).astype(jnp.float32)  # mask

    fwd = jax.jit(basenet_forward)
    out = jax.block_until_ready(fwd(x, y, prep))

    assert out.shape == (1, 5), out.shape
    assert bool(jnp.all(jnp.isfinite(out)))

    ref = ref_forward(x, y, params)
    # conv2 runs on the MXU in bf16 (f32 accumulation) -> slightly looser
    # tolerance than a pure-f32 comparison.
    assert jnp.allclose(out, ref, rtol=5e-3, atol=5e-3), (out, ref)

    print("KERNEL_OK")
</pallas_src>

<mosaic_0001>
module attributes {stable_mosaic.version = 11 : i64} {
  func.func @kernel(%arg0: memref<1x512xf32, #tpu.memory_space<vmem>>, %arg1: memref<1x512xf32, #tpu.memory_space<vmem>>, %arg2: memref<27x512xf32, #tpu.memory_space<vmem>>, %arg3: memref<8x27xf32, #tpu.memory_space<vmem>>, %arg4: memref<8x1xf32, #tpu.memory_space<vmem>>, %arg5: memref<8x1xf32, #tpu.memory_space<vmem>>, %arg6: memref<8x216xbf16, #tpu.memory_space<vmem>>, %arg7: memref<8x1xf32, #tpu.memory_space<vmem>>, %arg8: memref<8x1xf32, #tpu.memory_space<vmem>>, %arg9: memref<8x32xf32, #tpu.memory_space<vmem>>, %arg10: memref<1x32xf32, #tpu.memory_space<vmem>>, %arg11: memref<32x32xf32, #tpu.memory_space<vmem>>, %arg12: memref<32x1xf32, #tpu.memory_space<vmem>>, %arg13: memref<32x5xf32, #tpu.memory_space<vmem>>, %arg14: memref<1x5xf32, #tpu.memory_space<vmem>>, %arg15: memref<1x5xf32, #tpu.memory_space<vmem>>, %arg16: memref<27x512xf32, #tpu.memory_space<vmem>>, %arg17: memref<216x512xbf16, #tpu.memory_space<vmem>>) attributes {dimension_semantics = [], scalar_prefetch = 0 : i64, scratch_operands = 2 : i64, tpu.core_type = #tpu.core_type<tc>} {
    %c0 = arith.constant 0 : index
    %c0_0 = arith.constant 0 : index
    %0 = vector.load %arg0[%c0, %c0_0] : memref<1x512xf32, #tpu.memory_space<vmem>>, vector<1x512xf32>
    %c73_i32 = arith.constant 73 : i32
    %1 = tpu.dynamic_rotate %0 by %c73_i32 dim 1 : vector<1x512xf32>, i32 -> vector<1x512xf32>
    %c0_1 = arith.constant 0 : index
    %c0_2 = arith.constant 0 : index
    %2 = vector.load %arg2[%c0_1, %c0_2] : memref<27x512xf32, #tpu.memory_space<vmem>>, vector<1x512xf32>
    %3 = arith.mulf %1, %2 : vector<1x512xf32>
    %c0_3 = arith.constant 0 : index
    %c0_4 = arith.constant 0 : index
    %4 = vector.load %arg16[%c0_3, %c0_4] : memref<27x512xf32, #tpu.memory_space<vmem>>, vector<1x512xf32>
    tpu.vector_store %arg16[%c0_3, %c0_4], %3 {strides = array<i32>} : memref<27x512xf32, #tpu.memory_space<vmem>>, vector<1x512xf32>,
    %c72_i32 = arith.constant 72 : i32
    %5 = tpu.dynamic_rotate %0 by %c72_i32 dim 1 : vector<1x512xf32>, i32 -> vector<1x512xf32>
    %c1 = arith.constant 1 : index
    %c0_5 = arith.constant 0 : index
    %6 = vector.load %arg2[%c1, %c0_5] : memref<27x512xf32, #tpu.memory_space<vmem>>, vector<1x512xf32>
    %7 = arith.mulf %5, %6 : vector<1x512xf32>
    %c1_6 = arith.constant 1 : index
    %c0_7 = arith.constant 0 : index
    %8 = vector.load %arg16[%c1_6, %c0_7] : memref<27x512xf32, #tpu.memory_space<vmem>>, vector<1x512xf32>
    tpu.vector_store %arg16[%c1_6, %c0_7], %7 {strides = array<i32>} : memref<27x512xf32, #tpu.memory_space<vmem>>, vector<1x512xf32>,
    %c71_i32 = arith.constant 71 : i32
    %9 = tpu.dynamic_rotate %0 by %c71_i32 dim 1 : vector<1x512xf32>, i32 -> vector<1x512xf32>
    %c2 = arith.constant 2 : index
    %c0_8 = arith.constant 0 : index
    %10 = vector.load %arg2[%c2, %c0_8] : memref<27x512xf32, #tpu.memory_space<vmem>>, vector<1x512xf32>
    %11 = arith.mulf %9, %10 : vector<1x512xf32>
    %c2_9 = arith.constant 2 : index
    %c0_10 = arith.constant 0 : index
    %12 = vector.load %arg16[%c2_9, %c0_10] : memref<27x512xf32, #tpu.memory_space<vmem>>, vector<1x512xf32>
    tpu.vector_store %arg16[%c2_9, %c0_10], %11 {strides = array<i32>} : memref<27x512xf32, #tpu.memory_space<vmem>>, vector<1x512xf32>,
    %c65_i32 = arith.constant 65 : i32
    %13 = tpu.dynamic_rotate %0 by %c65_i32 dim 1 : vector<1x512xf32>, i32 -> vector<1x512xf32>
    %c3 = arith.constant 3 : index
    %c0_11 = arith.constant 0 : index
    %14 = vector.load %arg2[%c3, %c0_11] : memref<27x512xf32, #tpu.memory_space<vmem>>, vector<1x512xf32>
    %15 = arith.mulf %13, %14 : vector<1x512xf32>
    %c3_12 = arith.constant 3 : index
    %c0_13 = arith.constant 0 : index
    %16 = vector.load %arg16[%c3_12, %c0_13] : memref<27x512xf32, #tpu.memory_space<vmem>>, vector<1x512xf32>
    tpu.vector_store %arg16[%c3_12, %c0_13], %15 {strides = array<i32>} : memref<27x512xf32, #tpu.memory_space<vmem>>, vector<1x512xf32>,
    %c64_i32 = arith.constant 64 : i32
    %17 = tpu.dynamic_rotate %0 by %c64_i32 dim 1 : vector<1x512xf32>, i32 -> vector<1x512xf32>
    %c4 = arith.constant 4 : index
    %c0_14 = arith.constant 0 : index
    %18 = vector.load %arg2[%c4, %c0_14] : memref<27x512xf32, #tpu.memory_space<vmem>>, vector<1x512xf32>
    %19 = arith.mulf %17, %18 : vector<1x512xf32>
    %c4_15 = arith.constant 4 : index
    %c0_16 = arith.constant 0 : index
    %20 = vector.load %arg16[%c4_15, %c0_16] : memref<27x512xf32, #tpu.memory_space<vmem>>, vector<1x512xf32>
    tpu.vector_store %arg16[%c4_15, %c0_16], %19 {strides = array<i32>} : memref<27x512xf32, #tpu.memory_space<vmem>>, vector<1x512xf32>,
    %c63_i32 = arith.constant 63 : i32
    %21 = tpu.dynamic_rotate %0 by %c63_i32 dim 1 : vector<1x512xf32>, i32 -> vector<1x512xf32>
    %c5 = arith.constant 5 : index
    %c0_17 = arith.constant 0 : index
    %22 = vector.load %arg2[%c5, %c0_17] : memref<27x512xf32, #tpu.memory_space<vmem>>, vector<1x512xf32>
    %23 = arith.mulf %21, %22 : vector<1x512xf32>
    %c5_18 = arith.constant 5 : index
    %c0_19 = arith.constant 0 : index
    %24 = vector.load %arg16[%c5_18, %c0_19] : memref<27x512xf32, #tpu.memory_space<vmem>>, vector<1x512xf32>
    tpu.vector_store %arg16[%c5_18, %c0_19], %23 {strides = array<i32>} : memref<27x512xf32, #tpu.memory_space<vmem>>, vector<1x512xf32>,
    %c57_i32 = arith.constant 57 : i32
    %25 = tpu.dynamic_rotate %0 by %c57_i32 dim 1 : vector<1x512xf32>, i32 -> vector<1x512xf32>
    %c6 = arith.constant 6 : index
    %c0_20 = arith.constant 0 : index
    %26 = vector.load %arg2[%c6, %c0_20] : memref<27x512xf32, #tpu.memory_space<vmem>>, vector<1x512xf32>
    %27 = arith.mulf %25, %26 : vector<1x512xf32>
    %c6_21 = arith.constant 6 : index
    %c0_22 = arith.constant 0 : index
    %28 = vector.load %arg16[%c6_21, %c0_22] : memref<27x512xf32, #tpu.memory_space<vmem>>, vector<1x512xf32>
    tpu.vector_store %arg16[%c6_21, %c0_22], %27 {strides = array<i32>} : memref<27x512xf32, #tpu.memory_space<vmem>>, vector<1x512xf32>,
    %c56_i32 = arith.constant 56 : i32
    %29 = tpu.dynamic_rotate %0 by %c56_i32 dim 1 : vector<1x512xf32>, i32 -> vector<1x512xf32>
    %c7 = arith.constant 7 : index
    %c0_23 = arith.constant 0 : index
    %30 = vector.load %arg2[%c7, %c0_23] : memref<27x512xf32, #tpu.memory_space<vmem>>, vector<1x512xf32>
    %31 = arith.mulf %29, %30 : vector<1x512xf32>
    %c7_24 = arith.constant 7 : index
    %c0_25 = arith.constant 0 : index
    %32 = vector.load %arg16[%c7_24, %c0_25] : memref<27x512xf32, #tpu.memory_space<vmem>>, vector<1x512xf32>
    tpu.vector_store %arg16[%c7_24, %c0_25], %31 {strides = array<i32>} : memref<27x512xf32, #tpu.memory_space<vmem>>, vector<1x512xf32>,
    %c55_i32 = arith.constant 55 : i32
    %33 = tpu.dynamic_rotate %0 by %c55_i32 dim 1 : vector<1x512xf32>, i32 -> vector<1x512xf32>
    %c8 = arith.constant 8 : index
    %c0_26 = arith.constant 0 : index
    %34 = vector.load %arg2[%c8, %c0_26] : memref<27x512xf32, #tpu.memory_space<vmem>>, vector<1x512xf32>
    %35 = arith.mulf %33, %34 : vector<1x512xf32>
    %c8_27 = arith.constant 8 : index
    %c0_28 = arith.constant 0 : index
    %36 = vector.load %arg16[%c8_27, %c0_28] : memref<27x512xf32, #tpu.memory_space<vmem>>, vector<1x512xf32>
    tpu.vector_store %arg16[%c8_27, %c0_28], %35 {strides = array<i32>} : memref<27x512xf32, #tpu.memory_space<vmem>>, vector<1x512xf32>,
    %c9_i32 = arith.constant 9 : i32
    %37 = tpu.dynamic_rotate %0 by %c9_i32 dim 1 : vector<1x512xf32>, i32 -> vector<1x512xf32>
    %c9 = arith.constant 9 : index
    %c0_29 = arith.constant 0 : index
    %38 = vector.load %arg2[%c9, %c0_29] : memref<27x512xf32, #tpu.memory_space<vmem>>, vector<1x512xf32>
    %39 = arith.mulf %37, %38 : vector<1x512xf32>
    %c9_30 = arith.constant 9 : index
    %c0_31 = arith.constant 0 : index
    %40 = vector.load %arg16[%c9_30, %c0_31] : memref<27x512xf32, #tpu.memory_space<vmem>>, vector<1x512xf32>
    tpu.vector_store %arg16[%c9_30, %c0_31], %39 {strides = array<i32>} : memref<27x512xf32, #tpu.memory_space<vmem>>, vector<1x512xf32>,
    %c8_i32 = arith.constant 8 : i32
    %41 = tpu.dynamic_rotate %0 by %c8_i32 dim 1 : vector<1x512xf32>, i32 -> vector<1x512xf32>
    %c10 = arith.constant 10 : index
    %c0_32 = arith.constant 0 : index
    %42 = vector.load %arg2[%c10, %c0_32] : memref<27x512xf32, #tpu.memory_space<vmem>>, vector<1x512xf32>
    %43 = arith.mulf %41, %42 : vector<1x512xf32>
    %c10_33 = arith.constant 10 : index
    %c0_34 = arith.constant 0 : index
    %44 = vector.load %arg16[%c10_33, %c0_34] : memref<27x512xf32, #tpu.memory_space<vmem>>, vector<1x512xf32>
    tpu.vector_store %arg16[%c10_33, %c0_34], %43 {strides = array<i32>} : memref<27x512xf32, #tpu.memory_space<vmem>>, vector<1x512xf32>,
    %c7_i32 = arith.constant 7 : i32
    %45 = tpu.dynamic_rotate %0 by %c7_i32 dim 1 : vector<1x512xf32>, i32 -> vector<1x512xf32>
    %c11 = arith.constant 11 : index
    %c0_35 = arith.constant 0 : index
    %46 = vector.load %arg2[%c11, %c0_35] : memref<27x512xf32, #tpu.memory_space<vmem>>, vector<1x512xf32>
    %47 = arith.mulf %45, %46 : vector<1x512xf32>
    %c11_36 = arith.constant 11 : index
    %c0_37 = arith.constant 0 : index
    %48 = vector.load %arg16[%c11_36, %c0_37] : memref<27x512xf32, #tpu.memory_space<vmem>>, vector<1x512xf32>
    tpu.vector_store %arg16[%c11_36, %c0_37], %47 {strides = array<i32>} : memref<27x512xf32, #tpu.memory_space<vmem>>, vector<1x512xf32>,
    %c1_i32 = arith.constant 1 : i32
    %49 = tpu.dynamic_rotate %0 by %c1_i32 dim 1 : vector<1x512xf32>, i32 -> vector<1x512xf32>
    %c12 = arith.constant 12 : index
    %c0_38 = arith.constant 0 : index
    %50 = vector.load %arg2[%c12, %c0_38] : memref<27x512xf32, #tpu.memory_space<vmem>>, vector<1x512xf32>
    %51 = arith.mulf %49, %50 : vector<1x512xf32>
    %c12_39 = arith.constant 12 : index
    %c0_40 = arith.constant 0 : index
    %52 = vector.load %arg16[%c12_39, %c0_40] : memref<27x512xf32, #tpu.memory_space<vmem>>, vector<1x512xf32>
    tpu.vector_store %arg16[%c12_39, %c0_40], %51 {strides = array<i32>} : memref<27x512xf32, #tpu.memory_space<vmem>>, vector<1x512xf32>,
    %c13 = arith.constant 13 : index
    %c0_41 = arith.constant 0 : index
    %53 = vector.load %arg16[%c13, %c0_41] : memref<27x512xf32, #tpu.memory_space<vmem>>, vector<1x512xf32>
    tpu.vector_store %arg16[%c13, %c0_41], %0 {strides = array<i32>} : memref<27x512xf32, #tpu.memory_space<vmem>>, vector<1x512xf32>,
    %c511_i32 = arith.constant 511 : i32
    %54 = tpu.dynamic_rotate %0 by %c511_i32 dim 1 : vector<1x512xf32>, i32 -> vector<1x512xf32>
    %c14 = arith.constant 14 : index
    %c0_42 = arith.constant 0 : index
    %55 = vector.load %arg2[%c14, %c0_42] : memref<27x512xf32, #tpu.memory_space<vmem>>, vector<1x512xf32>
    %56 = arith.mulf %54, %55 : vector<1x512xf32>
    %c14_43 = arith.constant 14 : index
    %c0_44 = arith.constant 0 : index
    %57 = vector.load %arg16[%c14_43, %c0_44] : memref<27x512xf32, #tpu.memory_space<vmem>>, vector<1x512xf32>
    tpu.vector_store %arg16[%c14_43, %c0_44], %56 {strides = array<i32>} : memref<27x512xf32, #tpu.memory_space<vmem>>, vector<1x512xf32>,
    %c505_i32 = arith.constant 505 : i32
    %58 = tpu.dynamic_rotate %0 by %c505_i32 dim 1 : vector<1x512xf32>, i32 -> vector<1x512xf32>
    %c15 = arith.constant 15 : index
    %c0_45 = arith.constant 0 : index
    %59 = vector.load %arg2[%c15, %c0_45] : memref<27x512xf32, #tpu.memory_space<vmem>>, vector<1x512xf32>
    %60 = arith.mulf %58, %59 : vector<1x512xf32>
    %c15_46 = arith.constant 15 : index
    %c0_47 = arith.constant 0 : index
    %61 = vector.load %arg16[%c15_46, %c0_47] : memref<27x512xf32, #tpu.memory_space<vmem>>, vector<1x512xf32>
    tpu.vector_store %arg16[%c15_46, %c0_47], %60 {strides = array<i32>} : memref<27x512xf32, #tpu.memory_space<vmem>>, vector<1x512xf32>,
    %c504_i32 = arith.constant 504 : i32
    %62 = tpu.dynamic_rotate %0 by %c504_i32 dim 1 : vector<1x512xf32>, i32 -> vector<1x512xf32>
    %c16 = arith.constant 16 : index
    %c0_48 = arith.constant 0 : index
    %63 = vector.load %arg2[%c16, %c0_48] : memref<27x512xf32, #tpu.memory_space<vmem>>, vector<1x512xf32>
    %64 = arith.mulf %62, %63 : vector<1x512xf32>
    %c16_49 = arith.constant 16 : index
    %c0_50 = arith.constant 0 : index
    %65 = vector.load %arg16[%c16_49, %c0_50] : memref<27x512xf32, #tpu.memory_space<vmem>>, vector<1x512xf32>
    tpu.vector_store %arg16[%c16_49, %c0_50], %64 {strides = array<i32>} : memref<27x512xf32, #tpu.memory_space<vmem>>, vector<1x512xf32>,
    %c503_i32 = arith.constant 503 : i32
    %66 = tpu.dynamic_rotate %0 by %c503_i32 dim 1 : vector<1x512xf32>, i32 -> vector<1x512xf32>
    %c17 = arith.constant 17 : index
    %c0_51 = arith.constant 0 : index
    %67 = vector.load %arg2[%c17, %c0_51] : memref<27x512xf32, #tpu.memory_space<vmem>>, vector<1x512xf32>
    %68 = arith.mulf %66, %67 : vector<1x512xf32>
    %c17_52 = arith.constant 17 : index
    %c0_53 = arith.constant 0 : index
    %69 = vector.load %arg16[%c17_52, %c0_53] : memref<27x512xf32, #tpu.memory_space<vmem>>, vector<1x512xf32>
    tpu.vector_store %arg16[%c17_52, %c0_53], %68 {strides = array<i32>} : memref<27x512xf32, #tpu.memory_space<vmem>>, vector<1x512xf32>,
    %c457_i32 = arith.constant 457 : i32
    %70 = tpu.dynamic_rotate %0 by %c457_i32 dim 1 : vector<1x512xf32>, i32 -> vector<1x512xf32>
    %c18 = arith.constant 18 : index
    %c0_54 = arith.constant 0 : index
    %71 = vector.load %arg2[%c18, %c0_54] : memref<27x512xf32, #tpu.memory_space<vmem>>, vector<1x512xf32>
    %72 = arith.mulf %70, %71 : vector<1x512xf32>
    %c18_55 = arith.constant 18 : index
    %c0_56 = arith.constant 0 : index
    %73 = vector.load %arg16[%c18_55, %c0_56] : memref<27x512xf32, #tpu.memory_space<vmem>>, vector<1x512xf32>
    tpu.vector_store %arg16[%c18_55, %c0_56], %72 {strides = array<i32>} : memref<27x512xf32, #tpu.memory_space<vmem>>, vector<1x512xf32>,
    %c456_i32 = arith.constant 456 : i32
    %74 = tpu.dynamic_rotate %0 by %c456_i32 dim 1 : vector<1x512xf32>, i32 -> vector<1x512xf32>
    %c19 = arith.constant 19 : index
    %c0_57 = arith.constant 0 : index
    %75 = vector.load %arg2[%c19, %c0_57] : memref<27x512xf32, #tpu.memory_space<vmem>>, vector<1x512xf32>
    %76 = arith.mulf %74, %75 : vector<1x512xf32>
    %c19_58 = arith.constant 19 : index
    %c0_59 = arith.constant 0 : index
    %77 = vector.load %arg16[%c19_58, %c0_59] : memref<27x512xf32, #tpu.memory_space<vmem>>, vector<1x512xf32>
    tpu.vector_store %arg16[%c19_58, %c0_59], %76 {strides = array<i32>} : memref<27x512xf32, #tpu.memory_space<vmem>>, vector<1x512xf32>,
    %c455_i32 = arith.constant 455 : i32
    %78 = tpu.dynamic_rotate %0 by %c455_i32 dim 1 : vector<1x512xf32>, i32 -> vector<1x512xf32>
    %c20 = arith.constant 20 : index
    %c0_60 = arith.constant 0 : index
    %79 = vector.load %arg2[%c20, %c0_60] : memref<27x512xf32, #tpu.memory_space<vmem>>, vector<1x512xf32>
    %80 = arith.mulf %78, %79 : vector<1x512xf32>
    %c20_61 = arith.constant 20 : index
    %c0_62 = arith.constant 0 : index
    %81 = vector.load %arg16[%c20_61, %c0_62] : memref<27x512xf32, #tpu.memory_space<vmem>>, vector<1x512xf32>
    tpu.vector_store %arg16[%c20_61, %c0_62], %80 {strides = array<i32>} : memref<27x512xf32, #tpu.memory_space<vmem>>, vector<1x512xf32>,
    %c449_i32 = arith.constant 449 : i32
    %82 = tpu.dynamic_rotate %0 by %c449_i32 dim 1 : vector<1x512xf32>, i32 -> vector<1x512xf32>
    %c21 = arith.constant 21 : index
    %c0_63 = arith.constant 0 : index
    %83 = vector.load %arg2[%c21, %c0_63] : memref<27x512xf32, #tpu.memory_space<vmem>>, vector<1x512xf32>
    %84 = arith.mulf %82, %83 : vector<1x512xf32>
    %c21_64 = arith.constant 21 : index
    %c0_65 = arith.constant 0 : index
    %85 = vector.load %arg16[%c21_64, %c0_65] : memref<27x512xf32, #tpu.memory_space<vmem>>, vector<1x512xf32>
    tpu.vector_store %arg16[%c21_64, %c0_65], %84 {strides = array<i32>} : memref<27x512xf32, #tpu.memory_space<vmem>>, vector<1x512xf32>,
    %c448_i32 = arith.constant 448 : i32
    %86 = tpu.dynamic_rotate %0 by %c448_i32 dim 1 : vector<1x512xf32>, i32 -> vector<1x512xf32>
    %c22 = arith.constant 22 : index
    %c0_66 = arith.constant 0 : index
    %87 = vector.load %arg2[%c22, %c0_66] : memref<27x512xf32, #tpu.memory_space<vmem>>, vector<1x512xf32>
    %88 = arith.mulf %86, %87 : vector<1x512xf32>
    %c22_67 = arith.constant 22 : index
    %c0_68 = arith.constant 0 : index
    %89 = vector.load %arg16[%c22_67, %c0_68] : memref<27x512xf32, #tpu.memory_space<vmem>>, vector<1x512xf32>
    tpu.vector_store %arg16[%c22_67, %c0_68], %88 {strides = array<i32>} : memref<27x512xf32, #tpu.memory_space<vmem>>, vector<1x512xf32>,
    %c447_i32 = arith.constant 447 : i32
    %90 = tpu.dynamic_rotate %0 by %c447_i32 dim 1 : vector<1x512xf32>, i32 -> vector<1x512xf32>
    %c23 = arith.constant 23 : index
    %c0_69 = arith.constant 0 : index
    %91 = vector.load %arg2[%c23, %c0_69] : memref<27x512xf32, #tpu.memory_space<vmem>>, vector<1x512xf32>
    %92 = arith.mulf %90, %91 : vector<1x512xf32>
    %c23_70 = arith.constant 23 : index
    %c0_71 = arith.constant 0 : index
    %93 = vector.load %arg16[%c23_70, %c0_71] : memref<27x512xf32, #tpu.memory_space<vmem>>, vector<1x512xf32>
    tpu.vector_store %arg16[%c23_70, %c0_71], %92 {strides = array<i32>} : memref<27x512xf32, #tpu.memory_space<vmem>>, vector<1x512xf32>,
    %c441_i32 = arith.constant 441 : i32
    %94 = tpu.dynamic_rotate %0 by %c441_i32 dim 1 : vector<1x512xf32>, i32 -> vector<1x512xf32>
    %c24 = arith.constant 24 : index
    %c0_72 = arith.constant 0 : index
    %95 = vector.load %arg2[%c24, %c0_72] : memref<27x512xf32, #tpu.memory_space<vmem>>, vector<1x512xf32>
    %96 = arith.mulf %94, %95 : vector<1x512xf32>
    %c24_73 = arith.constant 24 : index
    %c0_74 = arith.constant 0 : index
    %97 = vector.load %arg16[%c24_73, %c0_74] : memref<27x512xf32, #tpu.memory_space<vmem>>, vector<1x512xf32>
    tpu.vector_store %arg16[%c24_73, %c0_74], %96 {strides = array<i32>} : memref<27x512xf32, #tpu.memory_space<vmem>>, vector<1x512xf32>,
    %c440_i32 = arith.constant 440 : i32
    %98 = tpu.dynamic_rotate %0 by %c440_i32 dim 1 : vector<1x512xf32>, i32 -> vector<1x512xf32>
    %c25 = arith.constant 25 : index
    %c0_75 = arith.constant 0 : index
    %99 = vector.load %arg2[%c25, %c0_75] : memref<27x512xf32, #tpu.memory_space<vmem>>, vector<1x512xf32>
    %100 = arith.mulf %98, %99 : vector<1x512xf32>
    %c25_76 = arith.constant 25 : index
    %c0_77 = arith.constant 0 : index
    %101 = vector.load %arg16[%c25_76, %c0_77] : memref<27x512xf32, #tpu.memory_space<vmem>>, vector<1x512xf32>
    tpu.vector_store %arg16[%c25_76, %c0_77], %100 {strides = array<i32>} : memref<27x512xf32, #tpu.memory_space<vmem>>, vector<1x512xf32>,
    %c439_i32 = arith.constant 439 : i32
    %102 = tpu.dynamic_rotate %0 by %c439_i32 dim 1 : vector<1x512xf32>, i32 -> vector<1x512xf32>
    %c26 = arith.constant 26 : index
    %c0_78 = arith.constant 0 : index
    %103 = vector.load %arg2[%c26, %c0_78] : memref<27x512xf32, #tpu.memory_space<vmem>>, vector<1x512xf32>
    %104 = arith.mulf %102, %103 : vector<1x512xf32>
    %c26_79 = arith.constant 26 : index
    %c0_80 = arith.constant 0 : index
    %105 = vector.load %arg16[%c26_79, %c0_80] : memref<27x512xf32, #tpu.memory_space<vmem>>, vector<1x512xf32>
    tpu.vector_store %arg16[%c26_79, %c0_80], %104 {strides = array<i32>} : memref<27x512xf32, #tpu.memory_space<vmem>>, vector<1x512xf32>,
    %c0_81 = arith.constant 0 : index
    %c0_82 = arith.constant 0 : index
    %106 = vector.load %arg3[%c0_81, %c0_82] : memref<8x27xf32, #tpu.memory_space<vmem>>, vector<8x27xf32>
    %c0_83 = arith.constant 0 : index
    %c0_84 = arith.constant 0 : index
    %107 = vector.load %arg16[%c0_83, %c0_84] : memref<27x512xf32, #tpu.memory_space<vmem>>, vector<27x512xf32>
    %cst = arith.constant dense<0.000000e+00> : vector<8x512xf32>
    %108 = tpu.matmul %106, %107, %cst {dimension_numbers = #tpu.dot_dimension_numbers<[1], [0], [0], [1], [0, 0, 1, 1], [], []>} : vector<8x27xf32>, vector<27x512xf32>, vector<8x512xf32> -> vector<8x512xf32>
    %cst_85 = arith.constant dense<0.000000e+00> : vector<8xf32>
    %109 = vector.multi_reduction <add>, %108, %cst_85 [1] : vector<8x512xf32> to vector<8xf32>
    %110 = vector.shape_cast %109 : vector<8xf32> to vector<8x1xf32>
    %cst_86 = arith.constant 0.001953125 : f32
    %111 = vector.broadcast %cst_86 : f32 to vector<8x1xf32>
    %112 = arith.mulf %110, %111 : vector<8x1xf32>
    %113 = arith.mulf %108, %108 : vector<8x512xf32>
    %cst_87 = arith.constant dense<0.000000e+00> : vector<8xf32>
    %114 = vector.multi_reduction <add>, %113, %cst_87 [1] : vector<8x512xf32> to vector<8xf32>
    %115 = vector.shape_cast %114 : vector<8xf32> to vector<8x1xf32>
    %cst_88 = arith.constant 0.001953125 : f32
    %116 = vector.broadcast %cst_88 : f32 to vector<8x1xf32>
    %117 = arith.mulf %115, %116 : vector<8x1xf32>
    %118 = arith.mulf %112, %112 : vector<8x1xf32>
    %119 = arith.subf %117, %118 : vector<8x1xf32>
    %120 = vector.broadcast %112 : vector<8x1xf32> to vector<8x512xf32>
    %121 = arith.subf %108, %120 : vector<8x512xf32>
    %cst_89 = arith.constant 9.99999974E-6 : f32
    %122 = vector.broadcast %cst_89 : f32 to vector<8x1xf32>
    %123 = arith.addf %119, %122 : vector<8x1xf32>
    %124 = math.rsqrt %123 : vector<8x1xf32>
    %125 = vector.broadcast %124 : vector<8x1xf32> to vector<8x512xf32>
    %126 = arith.mulf %121, %125 : vector<8x512xf32>
    %c0_90 = arith.constant 0 : index
    %c0_91 = arith.constant 0 : index
    %127 = vector.load %arg4[%c0_90, %c0_91] : memref<8x1xf32, #tpu.memory_space<vmem>>, vector<8x1xf32>
    %128 = vector.broadcast %127 : vector<8x1xf32> to vector<8x512xf32>
    %129 = arith.mulf %126, %128 : vector<8x512xf32>
    %c0_92 = arith.constant 0 : index
    %c0_93 = arith.constant 0 : index
    %130 = vector.load %arg5[%c0_92, %c0_93] : memref<8x1xf32, #tpu.memory_space<vmem>>, vector<8x1xf32>
    %131 = vector.broadcast %130 : vector<8x1xf32> to vector<8x512xf32>
    %132 = arith.addf %129, %131 : vector<8x512xf32>
    %cst_94 = arith.constant 0.00999999977 : f32
    %133 = vector.broadcast %cst_94 : f32 to vector<8x512xf32>
    %134 = arith.mulf %133, %132 : vector<8x512xf32>
    %135 = arith.maximumf %132, %134 : vector<8x512xf32>
    %c73_i32_95 = arith.constant 73 : i32
    %136 = tpu.dynamic_rotate %135 by %c73_i32_95 dim 1 : vector<8x512xf32>, i32 -> vector<8x512xf32>
    %c0_96 = arith.constant 0 : index
    %c0_97 = arith.constant 0 : index
    %137 = vector.load %arg2[%c0_96, %c0_97] : memref<27x512xf32, #tpu.memory_space<vmem>>, vector<1x512xf32>
    %138 = vector.broadcast %137 : vector<1x512xf32> to vector<8x512xf32>
    %139 = arith.mulf %136, %138 : vector<8x512xf32>
    %140 = arith.truncf %139 : vector<8x512xf32> to vector<8x512xbf16>
    %c0_98 = arith.constant 0 : index
    %c0_99 = arith.constant 0 : index
    %141 = vector.load %arg17[%c0_98, %c0_99] : memref<216x512xbf16, #tpu.memory_space<vmem>>, vector<8x512xbf16>
    tpu.vector_store %arg17[%c0_98, %c0_99], %140 {strides = array<i32>} : memref<216x512xbf16, #tpu.memory_space<vmem>>, vector<8x512xbf16>,
    %c72_i32_100 = arith.constant 72 : i32
    %142 = tpu.dynamic_rotate %135 by %c72_i32_100 dim 1 : vector<8x512xf32>, i32 -> vector<8x512xf32>
    %c1_101 = arith.constant 1 : index
    %c0_102 = arith.constant 0 : index
    %143 = vector.load %arg2[%c1_101, %c0_102] : memref<27x512xf32, #tpu.memory_space<vmem>>, vector<1x512xf32>
    %144 = vector.broadcast %143 : vector<1x512xf32> to vector<8x512xf32>
    %145 = arith.mulf %142, %144 : vector<8x512xf32>
    %146 = arith.truncf %145 : vector<8x512xf32> to vector<8x512xbf16>
    %c8_103 = arith.constant 8 : index
    %c0_104 = arith.constant 0 : index
    %147 = vector.load %arg17[%c8_103, %c0_104] : memref<216x512xbf16, #tpu.memory_space<vmem>>, vector<8x512xbf16>
    tpu.vector_store %arg17[%c8_103, %c0_104], %146 {strides = array<i32>} : memref<216x512xbf16, #tpu.memory_space<vmem>>, vector<8x512xbf16>,
    %c71_i32_105 = arith.constant 71 : i32
    %148 = tpu.dynamic_rotate %135 by %c71_i32_105 dim 1 : vector<8x512xf32>, i32 -> vector<8x512xf32>
    %c2_106 = arith.constant 2 : index
    %c0_107 = arith.constant 0 : index
    %149 = vector.load %arg2[%c2_106, %c0_107] : memref<27x512xf32, #tpu.memory_space<vmem>>, vector<1x512xf32>
    %150 = vector.broadcast %149 : vector<1x512xf32> to vector<8x512xf32>
    %151 = arith.mulf %148, %150 : vector<8x512xf32>
    %152 = arith.truncf %151 : vector<8x512xf32> to vector<8x512xbf16>
    %c16_108 = arith.constant 16 : index
    %c0_109 = arith.constant 0 : index
    %153 = vector.load %arg17[%c16_108, %c0_109] : memref<216x512xbf16, #tpu.memory_space<vmem>>, vector<8x512xbf16>
    tpu.vector_store %arg17[%c16_108, %c0_109], %152 {strides = array<i32>} : memref<216x512xbf16, #tpu.memory_space<vmem>>, vector<8x512xbf16>,
    %c65_i32_110 = arith.constant 65 : i32
    %154 = tpu.dynamic_rotate %135 by %c65_i32_110 dim 1 : vector<8x512xf32>, i32 -> vector<8x512xf32>
    %c3_111 = arith.constant 3 : index
    %c0_112 = arith.constant 0 : index
    %155 = vector.load %arg2[%c3_111, %c0_112] : memref<27x512xf32, #tpu.memory_space<vmem>>, vector<1x512xf32>
    %156 = vector.broadcast %155 : vector<1x512xf32> to vector<8x512xf32>
    %157 = arith.mulf %154, %156 : vector<8x512xf32>
    %158 = arith.truncf %157 : vector<8x512xf32> to vector<8x512xbf16>
    %c24_113 = arith.constant 24 : index
    %c0_114 = arith.constant 0 : index
    %159 = vector.load %arg17[%c24_113, %c0_114] : memref<216x512xbf16, #tpu.memory_space<vmem>>, vector<8x512xbf16>
    tpu.vector_store %arg17[%c24_113, %c0_114], %158 {strides = array<i32>} : memref<216x512xbf16, #tpu.memory_space<vmem>>, vector<8x512xbf16>,
    %c64_i32_115 = arith.constant 64 : i32
    %160 = tpu.dynamic_rotate %135 by %c64_i32_115 dim 1 : vector<8x512xf32>, i32 -> vector<8x512xf32>
    %c4_116 = arith.constant 4 : index
    %c0_117 = arith.constant 0 : index
    %161 = vector.load %arg2[%c4_116, %c0_117] : memref<27x512xf32, #tpu.memory_space<vmem>>, vector<1x512xf32>
    %162 = vector.broadcast %161 : vector<1x512xf32> to vector<8x512xf32>
    %163 = arith.mulf %160, %162 : vector<8x512xf32>
    %164 = arith.truncf %163 : vector<8x512xf32> to vector<8x512xbf16>
    %c32 = arith.constant 32 : index
    %c0_118 = arith.constant 0 : index
    %165 = vector.load %arg17[%c32, %c0_118] : memref<216x512xbf16, #tpu.memory_space<vmem>>, vector<8x512xbf16>
    tpu.vector_store %arg17[%c32, %c0_118], %164 {strides = array<i32>} : memref<216x512xbf16, #tpu.memory_space<vmem>>, vector<8x512xbf16>,
    %c63_i32_119 = arith.constant 63 : i32
    %166 = tpu.dynamic_rotate %135 by %c63_i32_119 dim 1 : vector<8x512xf32>, i32 -> vector<8x512xf32>
    %c5_120 = arith.constant 5 : index
    %c0_121 = arith.constant 0 : index
    %167 = vector.load %arg2[%c5_120, %c0_121] : memref<27x512xf32, #tpu.memory_space<vmem>>, vector<1x512xf32>
    %168 = vector.broadcast %167 : vector<1x512xf32> to vector<8x512xf32>
    %169 = arith.mulf %166, %168 : vector<8x512xf32>
    %170 = arith.truncf %169 : vector<8x512xf32> to vector<8x512xbf16>
    %c40 = arith.constant 40 : index
    %c0_122 = arith.constant 0 : index
    %171 = vector.load %arg17[%c40, %c0_122] : memref<216x512xbf16, #tpu.memory_space<vmem>>, vector<8x512xbf16>
    tpu.vector_store %arg17[%c40, %c0_122], %170 {strides = array<i32>} : memref<216x512xbf16, #tpu.memory_space<vmem>>, vector<8x512xbf16>,
    %c57_i32_123 = arith.constant 57 : i32
    %172 = tpu.dynamic_rotate %135 by %c57_i32_123 dim 1 : vector<8x512xf32>, i32 -> vector<8x512xf32>
    %c6_124 = arith.constant 6 : index
    %c0_125 = arith.constant 0 : index
    %173 = vector.load %arg2[%c6_124, %c0_125] : memref<27x512xf32, #tpu.memory_space<vmem>>, vector<1x512xf32>
    %174 = vector.broadcast %173 : vector<1x512xf32> to vector<8x512xf32>
    %175 = arith.mulf %172, %174 : vector<8x512xf32>
    %176 = arith.truncf %175 : vector<8x512xf32> to vector<8x512xbf16>
    %c48 = arith.constant 48 : index
    %c0_126 = arith.constant 0 : index
    %177 = vector.load %arg17[%c48, %c0_126] : memref<216x512xbf16, #tpu.memory_space<vmem>>, vector<8x512xbf16>
    tpu.vector_store %arg17[%c48, %c0_126], %176 {strides = array<i32>} : memref<216x512xbf16, #tpu.memory_space<vmem>>, vector<8x512xbf16>,
    %c56_i32_127 = arith.constant 56 : i32
    %178 = tpu.dynamic_rotate %135 by %c56_i32_127 dim 1 : vector<8x512xf32>, i32 -> vector<8x512xf32>
    %c7_128 = arith.constant 7 : index
    %c0_129 = arith.constant 0 : index
    %179 = vector.load %arg2[%c7_128, %c0_129] : memref<27x512xf32, #tpu.memory_space<vmem>>, vector<1x512xf32>
    %180 = vector.broadcast %179 : vector<1x512xf32> to vector<8x512xf32>
    %181 = arith.mulf %178, %180 : vector<8x512xf32>
    %182 = arith.truncf %181 : vector<8x512xf32> to vector<8x512xbf16>
    %c56 = arith.constant 56 : index
    %c0_130 = arith.constant 0 : index
    %183 = vector.load %arg17[%c56, %c0_130] : memref<216x512xbf16, #tpu.memory_space<vmem>>, vector<8x512xbf16>
    tpu.vector_store %arg17[%c56, %c0_130], %182 {strides = array<i32>} : memref<216x512xbf16, #tpu.memory_space<vmem>>, vector<8x512xbf16>,
    %c55_i32_131 = arith.constant 55 : i32
    %184 = tpu.dynamic_rotate %135 by %c55_i32_131 dim 1 : vector<8x512xf32>, i32 -> vector<8x512xf32>
    %c8_132 = arith.constant 8 : index
    %c0_133 = arith.constant 0 : index
    %185 = vector.load %arg2[%c8_132, %c0_133] : memref<27x512xf32, #tpu.memory_space<vmem>>, vector<1x512xf32>
    %186 = vector.broadcast %185 : vector<1x512xf32> to vector<8x512xf32>
    %187 = arith.mulf %184, %186 : vector<8x512xf32>
    %188 = arith.truncf %187 : vector<8x512xf32> to vector<8x512xbf16>
    %c64 = arith.constant 64 : index
    %c0_134 = arith.constant 0 : index
    %189 = vector.load %arg17[%c64, %c0_134] : memref<216x512xbf16, #tpu.memory_space<vmem>>, vector<8x512xbf16>
    tpu.vector_store %arg17[%c64, %c0_134], %188 {strides = array<i32>} : memref<216x512xbf16, #tpu.memory_space<vmem>>, vector<8x512xbf16>,
    %c9_i32_135 = arith.constant 9 : i32
    %190 = tpu.dynamic_rotate %135 by %c9_i32_135 dim 1 : vector<8x512xf32>, i32 -> vector<8x512xf32>
    %c9_136 = arith.constant 9 : index
    %c0_137 = arith.constant 0 : index
    %191 = vector.load %arg2[%c9_136, %c0_137] : memref<27x512xf32, #tpu.memory_space<vmem>>, vector<1x512xf32>
    %192 = vector.broadcast %191 : vector<1x512xf32> to vector<8x512xf32>
    %193 = arith.mulf %190, %192 : vector<8x512xf32>
    %194 = arith.truncf %193 : vector<8x512xf32> to vector<8x512xbf16>
    %c72 = arith.constant 72 : index
    %c0_138 = arith.constant 0 : index
    %195 = vector.load %arg17[%c72, %c0_138] : memref<216x512xbf16, #tpu.memory_space<vmem>>, vector<8x512xbf16>
    tpu.vector_store %arg17[%c72, %c0_138], %194 {strides = array<i32>} : memref<216x512xbf16, #tpu.memory_space<vmem>>, vector<8x512xbf16>,
    %c8_i32_139 = arith.constant 8 : i32
    %196 = tpu.dynamic_rotate %135 by %c8_i32_139 dim 1 : vector<8x512xf32>, i32 -> vector<8x512xf32>
    %c10_140 = arith.constant 10 : index
    %c0_141 = arith.constant 0 : index
    %197 = vector.load %arg2[%c10_140, %c0_141] : memref<27x512xf32, #tpu.memory_space<vmem>>, vector<1x512xf32>
    %198 = vector.broadcast %197 : vector<1x512xf32> to vector<8x512xf32>
    %199 = arith.mulf %196, %198 : vector<8x512xf32>
    %200 = arith.truncf %199 : vector<8x512xf32> to vector<8x512xbf16>
    %c80 = arith.constant 80 : index
    %c0_142 = arith.constant 0 : index
    %201 = vector.load %arg17[%c80, %c0_142] : memref<216x512xbf16, #tpu.memory_space<vmem>>, vector<8x512xbf16>
    tpu.vector_store %arg17[%c80, %c0_142], %200 {strides = array<i32>} : memref<216x512xbf16, #tpu.memory_space<vmem>>, vector<8x512xbf16>,
    %c7_i32_143 = arith.constant 7 : i32
    %202 = tpu.dynamic_rotate %135 by %c7_i32_143 dim 1 : vector<8x512xf32>, i32 -> vector<8x512xf32>
    %c11_144 = arith.constant 11 : index
    %c0_145 = arith.constant 0 : index
    %203 = vector.load %arg2[%c11_144, %c0_145] : memref<27x512xf32, #tpu.memory_space<vmem>>, vector<1x512xf32>
    %204 = vector.broadcast %203 : vector<1x512xf32> to vector<8x512xf32>
    %205 = arith.mulf %202, %204 : vector<8x512xf32>
    %206 = arith.truncf %205 : vector<8x512xf32> to vector<8x512xbf16>
    %c88 = arith.constant 88 : index
    %c0_146 = arith.constant 0 : index
    %207 = vector.load %arg17[%c88, %c0_146] : memref<216x512xbf16, #tpu.memory_space<vmem>>, vector<8x512xbf16>
    tpu.vector_store %arg17[%c88, %c0_146], %206 {strides = array<i32>} : memref<216x512xbf16, #tpu.memory_space<vmem>>, vector<8x512xbf16>,
    %c1_i32_147 = arith.constant 1 : i32
    %208 = tpu.dynamic_rotate %135 by %c1_i32_147 dim 1 : vector<8x512xf32>, i32 -> vector<8x512xf32>
    %c12_148 = arith.constant 12 : index
    %c0_149 = arith.constant 0 : index
    %209 = vector.load %arg2[%c12_148, %c0_149] : memref<27x512xf32, #tpu.memory_space<vmem>>, vector<1x512xf32>
    %210 = vector.broadcast %209 : vector<1x512xf32> to vector<8x512xf32>
    %211 = arith.mulf %208, %210 : vector<8x512xf32>
    %212 = arith.truncf %211 : vector<8x512xf32> to vector<8x512xbf16>
    %c96 = arith.constant 96 : index
    %c0_150 = arith.constant 0 : index
    %213 = vector.load %arg17[%c96, %c0_150] : memref<216x512xbf16, #tpu.memory_space<vmem>>, vector<8x512xbf16>
    tpu.vector_store %arg17[%c96, %c0_150], %212 {strides = array<i32>} : memref<216x512xbf16, #tpu.memory_space<vmem>>, vector<8x512xbf16>,
    %214 = arith.truncf %135 : vector<8x512xf32> to vector<8x512xbf16>
    %c104 = arith.constant 104 : index
    %c0_151 = arith.constant 0 : index
    %215 = vector.load %arg17[%c104, %c0_151] : memref<216x512xbf16, #tpu.memory_space<vmem>>, vector<8x512xbf16>
    tpu.vector_store %arg17[%c104, %c0_151], %214 {strides = array<i32>} : memref<216x512xbf16, #tpu.memory_space<vmem>>, vector<8x512xbf16>,
    %c511_i32_152 = arith.constant 511 : i32
    %216 = tpu.dynamic_rotate %135 by %c511_i32_152 dim 1 : vector<8x512xf32>, i32 -> vector<8x512xf32>
    %c14_153 = arith.constant 14 : index
    %c0_154 = arith.constant 0 : index
    %217 = vector.load %arg2[%c14_153, %c0_154] : memref<27x512xf32, #tpu.memory_space<vmem>>, vector<1x512xf32>
    %218 = vector.broadcast %217 : vector<1x512xf32> to vector<8x512xf32>
    %219 = arith.mulf %216, %218 : vector<8x512xf32>
    %220 = arith.truncf %219 : vector<8x512xf32> to vector<8x512xbf16>
    %c112 = arith.constant 112 : index
    %c0_155 = arith.constant 0 : index
    %221 = vector.load %arg17[%c112, %c0_155] : memref<216x512xbf16, #tpu.memory_space<vmem>>, vector<8x512xbf16>
    tpu.vector_store %arg17[%c112, %c0_155], %220 {strides = array<i32>} : memref<216x512xbf16, #tpu.memory_space<vmem>>, vector<8x512xbf16>,
    %c505_i32_156 = arith.constant 505 : i32
    %222 = tpu.dynamic_rotate %135 by %c505_i32_156 dim 1 : vector<8x512xf32>, i32 -> vector<8x512xf32>
    %c15_157 = arith.constant 15 : index
    %c0_158 = arith.constant 0 : index
    %223 = vector.load %arg2[%c15_157, %c0_158] : memref<27x512xf32, #tpu.memory_space<vmem>>, vector<1x512xf32>
    %224 = vector.broadcast %223 : vector<1x512xf32> to vector<8x512xf32>
    %225 = arith.mulf %222, %224 : vector<8x512xf32>
    %226 = arith.truncf %225 : vector<8x512xf32> to vector<8x512xbf16>
    %c120 = arith.constant 120 : index
    %c0_159 = arith.constant 0 : index
    %227 = vector.load %arg17[%c120, %c0_159] : memref<216x512xbf16, #tpu.memory_space<vmem>>, vector<8x512xbf16>
    tpu.vector_store %arg17[%c120, %c0_159], %226 {strides = array<i32>} : memref<216x512xbf16, #tpu.memory_space<vmem>>, vector<8x512xbf16>,
    %c504_i32_160 = arith.constant 504 : i32
    %228 = tpu.dynamic_rotate %135 by %c504_i32_160 dim 1 : vector<8x512xf32>, i32 -> vector<8x512xf32>
    %c16_161 = arith.constant 16 : index
    %c0_162 = arith.constant 0 : index
    %229 = vector.load %arg2[%c16_161, %c0_162] : memref<27x512xf32, #tpu.memory_space<vmem>>, vector<1x512xf32>
    %230 = vector.broadcast %229 : vector<1x512xf32> to vector<8x512xf32>
    %231 = arith.mulf %228, %230 : vector<8x512xf32>
    %232 = arith.truncf %231 : vector<8x512xf32> to vector<8x512xbf16>
    %c128 = arith.constant 128 : index
    %c0_163 = arith.constant 0 : index
    %233 = vector.load %arg17[%c128, %c0_163] : memref<216x512xbf16, #tpu.memory_space<vmem>>, vector<8x512xbf16>
    tpu.vector_store %arg17[%c128, %c0_163], %232 {strides = array<i32>} : memref<216x512xbf16, #tpu.memory_space<vmem>>, vector<8x512xbf16>,
    %c503_i32_164 = arith.constant 503 : i32
    %234 = tpu.dynamic_rotate %135 by %c503_i32_164 dim 1 : vector<8x512xf32>, i32 -> vector<8x512xf32>
    %c17_165 = arith.constant 17 : index
    %c0_166 = arith.constant 0 : index
    %235 = vector.load %arg2[%c17_165, %c0_166] : memref<27x512xf32, #tpu.memory_space<vmem>>, vector<1x512xf32>
    %236 = vector.broadcast %235 : vector<1x512xf32> to vector<8x512xf32>
    %237 = arith.mulf %234, %236 : vector<8x512xf32>
    %238 = arith.truncf %237 : vector<8x512xf32> to vector<8x512xbf16>
    %c136 = arith.constant 136 : index
    %c0_167 = arith.constant 0 : index
    %239 = vector.load %arg17[%c136, %c0_167] : memref<216x512xbf16, #tpu.memory_space<vmem>>, vector<8x512xbf16>
    tpu.vector_store %arg17[%c136, %c0_167], %238 {strides = array<i32>} : memref<216x512xbf16, #tpu.memory_space<vmem>>, vector<8x512xbf16>,
    %c457_i32_168 = arith.constant 457 : i32
    %240 = tpu.dynamic_rotate %135 by %c457_i32_168 dim 1 : vector<8x512xf32>, i32 -> vector<8x512xf32>
    %c18_169 = arith.constant 18 : index
    %c0_170 = arith.constant 0 : index
    %241 = vector.load %arg2[%c18_169, %c0_170] : memref<27x512xf32, #tpu.memory_space<vmem>>, vector<1x512xf32>
    %242 = vector.broadcast %241 : vector<1x512xf32> to vector<8x512xf32>
    %243 = arith.mulf %240, %242 : vector<8x512xf32>
    %244 = arith.truncf %243 : vector<8x512xf32> to vector<8x512xbf16>
    %c144 = arith.constant 144 : index
    %c0_171 = arith.constant 0 : index
    %245 = vector.load %arg17[%c144, %c0_171] : memref<216x512xbf16, #tpu.memory_space<vmem>>, vector<8x512xbf16>
    tpu.vector_store %arg17[%c144, %c0_171], %244 {strides = array<i32>} : memref<216x512xbf16, #tpu.memory_space<vmem>>, vector<8x512xbf16>,
    %c456_i32_172 = arith.constant 456 : i32
    %246 = tpu.dynamic_rotate %135 by %c456_i32_172 dim 1 : vector<8x512xf32>, i32 -> vector<8x512xf32>
    %c19_173 = arith.constant 19 : index
    %c0_174 = arith.constant 0 : index
    %247 = vector.load %arg2[%c19_173, %c0_174] : memref<27x512xf32, #tpu.memory_space<vmem>>, vector<1x512xf32>
    %248 = vector.broadcast %247 : vector<1x512xf32> to vector<8x512xf32>
    %249 = arith.mulf %246, %248 : vector<8x512xf32>
    %250 = arith.truncf %249 : vector<8x512xf32> to vector<8x512xbf16>
    %c152 = arith.constant 152 : index
    %c0_175 = arith.constant 0 : index
    %251 = vector.load %arg17[%c152, %c0_175] : memref<216x512xbf16, #tpu.memory_space<vmem>>, vector<8x512xbf16>
    tpu.vector_store %arg17[%c152, %c0_175], %250 {strides = array<i32>} : memref<216x512xbf16, #tpu.memory_space<vmem>>, vector<8x512xbf16>,
    %c455_i32_176 = arith.constant 455 : i32
    %252 = tpu.dynamic_rotate %135 by %c455_i32_176 dim 1 : vector<8x512xf32>, i32 -> vector<8x512xf32>
    %c20_177 = arith.constant 20 : index
    %c0_178 = arith.constant 0 : index
    %253 = vector.load %arg2[%c20_177, %c0_178] : memref<27x512xf32, #tpu.memory_space<vmem>>, vector<1x512xf32>
    %254 = vector.broadcast %253 : vector<1x512xf32> to vector<8x512xf32>
    %255 = arith.mulf %252, %254 : vector<8x512xf32>
    %256 = arith.truncf %255 : vector<8x512xf32> to vector<8x512xbf16>
    %c160 = arith.constant 160 : index
    %c0_179 = arith.constant 0 : index
    %257 = vector.load %arg17[%c160, %c0_179] : memref<216x512xbf16, #tpu.memory_space<vmem>>, vector<8x512xbf16>
    tpu.vector_store %arg17[%c160, %c0_179], %256 {strides = array<i32>} : memref<216x512xbf16, #tpu.memory_space<vmem>>, vector<8x512xbf16>,
    %c449_i32_180 = arith.constant 449 : i32
    %258 = tpu.dynamic_rotate %135 by %c449_i32_180 dim 1 : vector<8x512xf32>, i32 -> vector<8x512xf32>
    %c21_181 = arith.constant 21 : index
    %c0_182 = arith.constant 0 : index
    %259 = vector.load %arg2[%c21_181, %c0_182] : memref<27x512xf32, #tpu.memory_space<vmem>>, vector<1x512xf32>
    %260 = vector.broadcast %259 : vector<1x512xf32> to vector<8x512xf32>
    %261 = arith.mulf %258, %260 : vector<8x512xf32>
    %262 = arith.truncf %261 : vector<8x512xf32> to vector<8x512xbf16>
    %c168 = arith.constant 168 : index
    %c0_183 = arith.constant 0 : index
    %263 = vector.load %arg17[%c168, %c0_183] : memref<216x512xbf16, #tpu.memory_space<vmem>>, vector<8x512xbf16>
    tpu.vector_store %arg17[%c168, %c0_183], %262 {strides = array<i32>} : memref<216x512xbf16, #tpu.memory_space<vmem>>, vector<8x512xbf16>,
    %c448_i32_184 = arith.constant 448 : i32
    %264 = tpu.dynamic_rotate %135 by %c448_i32_184 dim 1 : vector<8x512xf32>, i32 -> vector<8x512xf32>
    %c22_185 = arith.constant 22 : index
    %c0_186 = arith.constant 0 : index
    %265 = vector.load %arg2[%c22_185, %c0_186] : memref<27x512xf32, #tpu.memory_space<vmem>>, vector<1x512xf32>
    %266 = vector.broadcast %265 : vector<1x512xf32> to vector<8x512xf32>
    %267 = arith.mulf %264, %266 : vector<8x512xf32>
    %268 = arith.truncf %267 : vector<8x512xf32> to vector<8x512xbf16>
    %c176 = arith.constant 176 : index
    %c0_187 = arith.constant 0 : index
    %269 = vector.load %arg17[%c176, %c0_187] : memref<216x512xbf16, #tpu.memory_space<vmem>>, vector<8x512xbf16>
    tpu.vector_store %arg17[%c176, %c0_187], %268 {strides = array<i32>} : memref<216x512xbf16, #tpu.memory_space<vmem>>, vector<8x512xbf16>,
    %c447_i32_188 = arith.constant 447 : i32
    %270 = tpu.dynamic_rotate %135 by %c447_i32_188 dim 1 : vector<8x512xf32>, i32 -> vector<8x512xf32>
    %c23_189 = arith.constant 23 : index
    %c0_190 = arith.constant 0 : index
    %271 = vector.load %arg2[%c23_189, %c0_190] : memref<27x512xf32, #tpu.memory_space<vmem>>, vector<1x512xf32>
    %272 = vector.broadcast %271 : vector<1x512xf32> to vector<8x512xf32>
    %273 = arith.mulf %270, %272 : vector<8x512xf32>
    %274 = arith.truncf %273 : vector<8x512xf32> to vector<8x512xbf16>
    %c184 = arith.constant 184 : index
    %c0_191 = arith.constant 0 : index
    %275 = vector.load %arg17[%c184, %c0_191] : memref<216x512xbf16, #tpu.memory_space<vmem>>, vector<8x512xbf16>
    tpu.vector_store %arg17[%c184, %c0_191], %274 {strides = array<i32>} : memref<216x512xbf16, #tpu.memory_space<vmem>>, vector<8x512xbf16>,
    %c441_i32_192 = arith.constant 441 : i32
    %276 = tpu.dynamic_rotate %135 by %c441_i32_192 dim 1 : vector<8x512xf32>, i32 -> vector<8x512xf32>
    %c24_193 = arith.constant 24 : index
    %c0_194 = arith.constant 0 : index
    %277 = vector.load %arg2[%c24_193, %c0_194] : memref<27x512xf32, #tpu.memory_space<vmem>>, vector<1x512xf32>
    %278 = vector.broadcast %277 : vector<1x512xf32> to vector<8x512xf32>
    %279 = arith.mulf %276, %278 : vector<8x512xf32>
    %280 = arith.truncf %279 : vector<8x512xf32> to vector<8x512xbf16>
    %c192 = arith.constant 192 : index
    %c0_195 = arith.constant 0 : index
    %281 = vector.load %arg17[%c192, %c0_195] : memref<216x512xbf16, #tpu.memory_space<vmem>>, vector<8x512xbf16>
    tpu.vector_store %arg17[%c192, %c0_195], %280 {strides = array<i32>} : memref<216x512xbf16, #tpu.memory_space<vmem>>, vector<8x512xbf16>,
    %c440_i32_196 = arith.constant 440 : i32
    %282 = tpu.dynamic_rotate %135 by %c440_i32_196 dim 1 : vector<8x512xf32>, i32 -> vector<8x512xf32>
    %c25_197 = arith.constant 25 : index
    %c0_198 = arith.constant 0 : index
    %283 = vector.load %arg2[%c25_197, %c0_198] : memref<27x512xf32, #tpu.memory_space<vmem>>, vector<1x512xf32>
    %284 = vector.broadcast %283 : vector<1x512xf32> to vector<8x512xf32>
    %285 = arith.mulf %282, %284 : vector<8x512xf32>
    %286 = arith.truncf %285 : vector<8x512xf32> to vector<8x512xbf16>
    %c200 = arith.constant 200 : index
    %c0_199 = arith.constant 0 : index
    %287 = vector.load %arg17[%c200, %c0_199] : memref<216x512xbf16, #tpu.memory_space<vmem>>, vector<8x512xbf16>
    tpu.vector_store %arg17[%c200, %c0_199], %286 {strides = array<i32>} : memref<216x512xbf16, #tpu.memory_space<vmem>>, vector<8x512xbf16>,
    %c439_i32_200 = arith.constant 439 : i32
    %288 = tpu.dynamic_rotate %135 by %c439_i32_200 dim 1 : vector<8x512xf32>, i32 -> vector<8x512xf32>
    %c26_201 = arith.constant 26 : index
    %c0_202 = arith.constant 0 : index
    %289 = vector.load %arg2[%c26_201, %c0_202] : memref<27x512xf32, #tpu.memory_space<vmem>>, vector<1x512xf32>
    %290 = vector.broadcast %289 : vector<1x512xf32> to vector<8x512xf32>
    %291 = arith.mulf %288, %290 : vector<8x512xf32>
    %292 = arith.truncf %291 : vector<8x512xf32> to vector<8x512xbf16>
    %c208 = arith.constant 208 : index
    %c0_203 = arith.constant 0 : index
    %293 = vector.load %arg17[%c208, %c0_203] : memref<216x512xbf16, #tpu.memory_space<vmem>>, vector<8x512xbf16>
    tpu.vector_store %arg17[%c208, %c0_203], %292 {strides = array<i32>} : memref<216x512xbf16, #tpu.memory_space<vmem>>, vector<8x512xbf16>,
    %c0_204 = arith.constant 0 : index
    %c0_205 = arith.constant 0 : index
    %294 = vector.load %arg6[%c0_204, %c0_205] : memref<8x216xbf16, #tpu.memory_space<vmem>>, vector<8x216xbf16>
    %c0_206 = arith.constant 0 : index
    %c0_207 = arith.constant 0 : index
    %295 = vector.load %arg17[%c0_206, %c0_207] : memref<216x512xbf16, #tpu.memory_space<vmem>>, vector<216x512xbf16>
    %cst_208 = arith.constant dense<0.000000e+00> : vector<8x512xf32>
    %296 = tpu.matmul %294, %295, %cst_208 {dimension_numbers = #tpu.dot_dimension_numbers<[1], [0], [0], [1], [0, 0, 1, 1], [], []>} : vector<8x216xbf16>, vector<216x512xbf16>, vector<8x512xf32> -> vector<8x512xf32>
    %cst_209 = arith.constant dense<0.000000e+00> : vector<8xf32>
    %297 = vector.multi_reduction <add>, %296, %cst_209 [1] : vector<8x512xf32> to vector<8xf32>
    %298 = vector.shape_cast %297 : vector<8xf32> to vector<8x1xf32>
    %cst_210 = arith.constant 0.001953125 : f32
    %299 = vector.broadcast %cst_210 : f32 to vector<8x1xf32>
    %300 = arith.mulf %298, %299 : vector<8x1xf32>
    %301 = arith.mulf %296, %296 : vector<8x512xf32>
    %cst_211 = arith.constant dense<0.000000e+00> : vector<8xf32>
    %302 = vector.multi_reduction <add>, %301, %cst_211 [1] : vector<8x512xf32> to vector<8xf32>
    %303 = vector.shape_cast %302 : vector<8xf32> to vector<8x1xf32>
    %cst_212 = arith.constant 0.001953125 : f32
    %304 = vector.broadcast %cst_212 : f32 to vector<8x1xf32>
    %305 = arith.mulf %303, %304 : vector<8x1xf32>
    %306 = arith.mulf %300, %300 : vector<8x1xf32>
    %307 = arith.subf %305, %306 : vector<8x1xf32>
    %308 = vector.broadcast %300 : vector<8x1xf32> to vector<8x512xf32>
    %309 = arith.subf %296, %308 : vector<8x512xf32>
    %cst_213 = arith.constant 9.99999974E-6 : f32
    %310 = vector.broadcast %cst_213 : f32 to vector<8x1xf32>
    %311 = arith.addf %307, %310 : vector<8x1xf32>
    %312 = math.rsqrt %311 : vector<8x1xf32>
    %313 = vector.broadcast %312 : vector<8x1xf32> to vector<8x512xf32>
    %314 = arith.mulf %309, %313 : vector<8x512xf32>
    %c0_214 = arith.constant 0 : index
    %c0_215 = arith.constant 0 : index
    %315 = vector.load %arg7[%c0_214, %c0_215] : memref<8x1xf32, #tpu.memory_space<vmem>>, vector<8x1xf32>
    %316 = vector.broadcast %315 : vector<8x1xf32> to vector<8x512xf32>
    %317 = arith.mulf %314, %316 : vector<8x512xf32>
    %c0_216 = arith.constant 0 : index
    %c0_217 = arith.constant 0 : index
    %318 = vector.load %arg8[%c0_216, %c0_217] : memref<8x1xf32, #tpu.memory_space<vmem>>, vector<8x1xf32>
    %319 = vector.broadcast %318 : vector<8x1xf32> to vector<8x512xf32>
    %320 = arith.addf %317, %319 : vector<8x512xf32>
    %cst_218 = arith.constant 0.00999999977 : f32
    %321 = vector.broadcast %cst_218 : f32 to vector<8x512xf32>
    %322 = arith.mulf %321, %320 : vector<8x512xf32>
    %323 = arith.maximumf %320, %322 : vector<8x512xf32>
    %c0_219 = arith.constant 0 : index
    %c0_220 = arith.constant 0 : index
    %324 = vector.load %arg1[%c0_219, %c0_220] : memref<1x512xf32, #tpu.memory_space<vmem>>, vector<1x512xf32>
    %cst_221 = arith.constant dense<0.000000e+00> : vector<1xf32>
    %325 = vector.multi_reduction <add>, %324, %cst_221 [1] : vector<1x512xf32> to vector<1xf32>
    %326 = vector.shape_cast %325 : vector<1xf32> to vector<1x1xf32>
    %cst_222 = arith.constant 9.99999996E-13 : f32
    %327 = vector.broadcast %cst_222 : f32 to vector<1x1xf32>
    %328 = arith.addf %326, %327 : vector<1x1xf32>
    %329 = vector.broadcast %324 : vector<1x512xf32> to vector<8x512xf32>
    %330 = arith.mulf %323, %329 : vector<8x512xf32>
    %cst_223 = arith.constant dense<0.000000e+00> : vector<8xf32>
    %331 = vector.multi_reduction <add>, %330, %cst_223 [1] : vector<8x512xf32> to vector<8xf32>
    %332 = vector.shape_cast %331 : vector<8xf32> to vector<8x1xf32>
    %333 = vector.broadcast %328 : vector<1x1xf32> to vector<8x1xf32>
    %334 = arith.divf %332, %333 : vector<8x1xf32>
    %c0_224 = arith.constant 0 : index
    %c0_225 = arith.constant 0 : index
    %335 = vector.load %arg9[%c0_224, %c0_225] : memref<8x32xf32, #tpu.memory_space<vmem>>, vector<8x32xf32>
    %336 = vector.broadcast %334 : vector<8x1xf32> to vector<8x32xf32>
    %337 = arith.mulf %336, %335 : vector<8x32xf32>
    %cst_226 = arith.constant dense<0.000000e+00> : vector<32xf32>
    %338 = vector.multi_reduction <add>, %337, %cst_226 [0] : vector<8x32xf32> to vector<32xf32>
    %339 = vector.shape_cast %338 : vector<32xf32> to vector<1x32xf32>
    %c0_227 = arith.constant 0 : index
    %c0_228 = arith.constant 0 : index
    %340 = vector.load %arg10[%c0_227, %c0_228] : memref<1x32xf32, #tpu.memory_space<vmem>>, vector<1x32xf32>
    %341 = arith.addf %339, %340 : vector<1x32xf32>
    %cst_229 = arith.constant 0.000000e+00 : f32
    %342 = vector.broadcast %cst_229 : f32 to vector<1x32xf32>
    %343 = arith.maximumf %341, %342 : vector<1x32xf32>
    %c0_230 = arith.constant 0 : index
    %c0_231 = arith.constant 0 : index
    %344 = vector.load %arg11[%c0_230, %c0_231] : memref<32x32xf32, #tpu.memory_space<vmem>>, vector<32x32xf32>
    %345 = vector.broadcast %343 : vector<1x32xf32> to vector<32x32xf32>
    %346 = arith.mulf %345, %344 : vector<32x32xf32>
    %cst_232 = arith.constant dense<0.000000e+00> : vector<32xf32>
    %347 = vector.multi_reduction <add>, %346, %cst_232 [1] : vector<32x32xf32> to vector<32xf32>
    %348 = vector.shape_cast %347 : vector<32xf32> to vector<32x1xf32>
    %c0_233 = arith.constant 0 : index
    %c0_234 = arith.constant 0 : index
    %349 = vector.load %arg12[%c0_233, %c0_234] : memref<32x1xf32, #tpu.memory_space<vmem>>, vector<32x1xf32>
    %350 = arith.addf %348, %349 : vector<32x1xf32>
    %cst_235 = arith.constant 0.000000e+00 : f32
    %351 = vector.broadcast %cst_235 : f32 to vector<32x1xf32>
    %352 = arith.maximumf %350, %351 : vector<32x1xf32>
    %c0_236 = arith.constant 0 : index
    %c0_237 = arith.constant 0 : index
    %353 = vector.load %arg13[%c0_236, %c0_237] : memref<32x5xf32, #tpu.memory_space<vmem>>, vector<32x5xf32>
    %354 = vector.broadcast %352 : vector<32x1xf32> to vector<32x5xf32>
    %355 = arith.mulf %354, %353 : vector<32x5xf32>
    %cst_238 = arith.constant dense<0.000000e+00> : vector<5xf32>
    %356 = vector.multi_reduction <add>, %355, %cst_238 [0] : vector<32x5xf32> to vector<5xf32>
    %357 = vector.shape_cast %356 : vector<5xf32> to vector<1x5xf32>
    %c0_239 = arith.constant 0 : index
    %c0_240 = arith.constant 0 : index
    %358 = vector.load %arg14[%c0_239, %c0_240] : memref<1x5xf32, #tpu.memory_space<vmem>>, vector<1x5xf32>
    %359 = arith.addf %357, %358 : vector<1x5xf32>
    %c0_241 = arith.constant 0 : index
    %c0_242 = arith.constant 0 : index
    %360 = vector.load %arg15[%c0_241, %c0_242] : memref<1x5xf32, #tpu.memory_space<vmem>>, vector<1x5xf32>
    tpu.vector_store %arg15[%c0_241, %c0_242], %359 {strides = array<i32>} : memref<1x5xf32, #tpu.memory_space<vmem>>, vector<1x5xf32>,
    return
  }
}

</mosaic_0001>

<llo_original>
// kernel: basenet_forward.1
$region0: #{basenet_forward.1}
  #allocation0 [shape = 'u32[]', space=smem, size = 0x4, offset = 0x4, fixed_abs, tag = 'smem constant byte address 0x4 - core index']
  #allocation1 [shape = 'u32[144,128]{1,0:T(1,128)}', space=vmem, size = 0x12000, scoped, tag = 'internal scratch']
  #allocation2 [shape = 'f32[27,512]{1,0:T(8,128)}', space=vmem, size = 0x10000, scoped, tag = 'scratch operand']
  #allocation3 [shape = 'bf16[216,512]{1,0:T(8,128)(2,1)}', space=vmem, size = 0x36000, scoped, tag = 'scratch operand']
  %s0 = inlined_call_operand.vmem [shape: f32[1,512], index: 0, kind: input, shape index: {}]
  %s1 = inlined_call_operand.vmem [shape: f32[1,512], index: 1, kind: input, shape index: {}]
  %s2 = inlined_call_operand.vmem [shape: f32[27,512], index: 2, kind: input, shape index: {}]
  %s3 = inlined_call_operand.vmem [shape: f32[8,27], index: 3, kind: input, shape index: {}]
  %s4 = inlined_call_operand.vmem [shape: f32[8,1], index: 4, kind: input, shape index: {}]
  %s5 = inlined_call_operand.vmem [shape: f32[8,1], index: 5, kind: input, shape index: {}]
  %s6 = inlined_call_operand.vmem [shape: bf16[8,216], index: 6, kind: input, shape index: {}]
  %s7 = inlined_call_operand.vmem [shape: f32[8,1], index: 7, kind: input, shape index: {}]
  %s8 = inlined_call_operand.vmem [shape: f32[8,1], index: 8, kind: input, shape index: {}]
  %s9 = inlined_call_operand.vmem [shape: f32[8,32], index: 9, kind: input, shape index: {}]
  %s10 = inlined_call_operand.vmem [shape: f32[1,32], index: 10, kind: input, shape index: {}]
  %s11 = inlined_call_operand.vmem [shape: f32[32,32], index: 11, kind: input, shape index: {}]
  %s12 = inlined_call_operand.vmem [shape: f32[32,1], index: 12, kind: input, shape index: {}]
  %s13 = inlined_call_operand.vmem [shape: f32[32,5], index: 13, kind: input, shape index: {}]
  %s14 = inlined_call_operand.vmem [shape: f32[1,5], index: 14, kind: input, shape index: {}]
  %s15 = inlined_call_operand.hbm [shape: f32[1,5], index: 15, kind: output, shape index: {}]
  %s16 = sld [smem:[#allocation0]]
  $region70: #{basenet_forward.1} parent=0
    _
  %s18 = ssub.s32 1, %s16
  %s19 = scalar_select 0, %s18, %s16
  $region1: #{basenet_forward.1} parent=0
    #allocation4 [shape = 'u8[512]{0}', space=vmem, size = 0x400, scoped, tag = 'output window, operand 0, single buffered']
    #allocation5 [shape = 's32[1]{0}', space=sflag, size = 0x4, scoped, tag = 'scoped memory for basenet_forward.1']
    %20 = vsyncpa [#allocation5], 0
    // Predicated region
    $region2: #{basenet_forward.1} parent=1 // pred_check
      _
    $region3: #{basenet_forward.1} parent=1 // pred_check_branch
      %22 = sbr.rel (0) target = $region5
    $region4: #{basenet_forward.1} parent=1 // pred_region
      _
    $region5: #{basenet_forward.1} parent=1 // pred_fallthru
      _
    // Predicated region
    $region6: #{basenet_forward.1} parent=1 // pred_check
      _
    $region7: #{basenet_forward.1} parent=1 // pred_check_branch
      %24 = sbr.rel (0) target = $region9
    $region8: #{basenet_forward.1} parent=1 // pred_region
      _
    $region9: #{basenet_forward.1} parent=1 // pred_fallthru
      _
    // Predicated region
    $region10: #{basenet_forward.1} parent=1 // pred_check
      _
    $region11: #{basenet_forward.1} parent=1 // pred_check_branch
      %26 = sbr.rel (0) target = $region13
    $region12: #{basenet_forward.1} parent=1 // pred_region
      _
    $region13: #{basenet_forward.1} parent=1 // pred_fallthru
      _
    // Predicated region
    $region14: #{basenet_forward.1} parent=1 // pred_check
      _
    $region15: #{basenet_forward.1} parent=1 // pred_check_branch
      %28 = sbr.rel (0) target = $region17
    $region16: #{basenet_forward.1} parent=1 // pred_region
      _
    $region17: #{basenet_forward.1} parent=1 // pred_fallthru
      _
    // Predicated region
    $region18: #{basenet_forward.1} parent=1 // pred_check
      _
    $region19: #{basenet_forward.1} parent=1 // pred_check_branch
      %30 = sbr.rel (0) target = $region21
    $region20: #{basenet_forward.1} parent=1 // pred_region
      _
    $region21: #{basenet_forward.1} parent=1 // pred_fallthru
      _
    // Predicated region
    $region22: #{basenet_forward.1} parent=1 // pred_check
      _
    $region23: #{basenet_forward.1} parent=1 // pred_check_branch
      %32 = sbr.rel (0) target = $region25
    $region24: #{basenet_forward.1} parent=1 // pred_region
      _
    $region25: #{basenet_forward.1} parent=1 // pred_fallthru
      _
    // Predicated region
    $region26: #{basenet_forward.1} parent=1 // pred_check
      _
    $region27: #{basenet_forward.1} parent=1 // pred_check_branch
      %34 = sbr.rel (0) target = $region29
    $region28: #{basenet_forward.1} parent=1 // pred_region
      _
    $region29: #{basenet_forward.1} parent=1 // pred_fallthru
      _
    // Predicated region
    $region30: #{basenet_forward.1} parent=1 // pred_check
      _
    $region31: #{basenet_forward.1} parent=1 // pred_check_branch
      %36 = sbr.rel (0) target = $region33
    $region32: #{basenet_forward.1} parent=1 // pred_region
      _
    $region33: #{basenet_forward.1} parent=1 // pred_fallthru
      _
    // Predicated region
    $region34: #{basenet_forward.1} parent=1 // pred_check
      _
    $region35: #{basenet_forward.1} parent=1 // pred_check_branch
      %38 = sbr.rel (0) target = $region37
    $region36: #{basenet_forward.1} parent=1 // pred_region
      _
    $region37: #{basenet_forward.1} parent=1 // pred_fallthru
      _
    // Predicated region
    $region38: #{basenet_forward.1} parent=1 // pred_check
      _
    $region39: #{basenet_forward.1} parent=1 // pred_check_branch
      %40 = sbr.rel (0) target = $region41
    $region40: #{basenet_forward.1} parent=1 // pred_region
      _
    $region41: #{basenet_forward.1} parent=1 // pred_fallthru
      _
    // Predicated region
    $region42: #{basenet_forward.1} parent=1 // pred_check
      _
    $region43: #{basenet_forward.1} parent=1 // pred_check_branch
      %42 = sbr.rel (0) target = $region45
    $region44: #{basenet_forward.1} parent=1 // pred_region
      _
    $region45: #{basenet_forward.1} parent=1 // pred_fallthru
      _
    // Predicated region
    $region46: #{basenet_forward.1} parent=1 // pred_check
      _
    $region47: #{basenet_forward.1} parent=1 // pred_check_branch
      %44 = sbr.rel (0) target = $region49
    $region48: #{basenet_forward.1} parent=1 // pred_region
      _
    $region49: #{basenet_forward.1} parent=1 // pred_fallthru
      _
    // Predicated region
    $region50: #{basenet_forward.1} parent=1 // pred_check
      _
    $region51: #{basenet_forward.1} parent=1 // pred_check_branch
      %46 = sbr.rel (0) target = $region53
    $region52: #{basenet_forward.1} parent=1 // pred_region
      _
    $region53: #{basenet_forward.1} parent=1 // pred_fallthru
      _
    // Predicated region
    $region54: #{basenet_forward.1} parent=1 // pred_check
      _
    $region55: #{basenet_forward.1} parent=1 // pred_check_branch
      %48 = sbr.rel (0) target = $region57
    $region56: #{basenet_forward.1} parent=1 // pred_region
      _
    $region57: #{basenet_forward.1} parent=1 // pred_fallthru
      _
    // Predicated region
    $region58: #{basenet_forward.1} parent=1 // pred_check
      _
    $region59: #{basenet_forward.1} parent=1 // pred_check_branch
      %50 = sbr.rel (0) target = $region61
    $region60: #{basenet_forward.1} parent=1 // pred_region
      _
    $region61: #{basenet_forward.1} parent=1 // pred_fallthru
      _
    %v52 = vld [vmem:[%s0] sm:$0xf]
    %v54 = vlaneseq
    %v55 = vshrl.u32 %v54, 7
    %v56 = vsub.s32 0, %v55
    %v57 = vrot.slane %v52, %v56
    %v58 = vlaneseq
    %v59 = vshrl.u32 %v58, 7
    %v60 = vsub.s32 1, %v59
    %v61 = vrot.slane %v52, %v60
    %v62 = vlaneseq
    %v63 = vshrl.u32 %v62, 7
    %v64 = vsub.s32 2, %v63
    %v65 = vrot.slane %v52, %v64
    %v66 = vlaneseq
    %v67 = vshrl.u32 %v66, 7
    %v68 = vsub.s32 3, %v67
    %v69 = vrot.slane %v52, %v68
    %74 = vrot.lane.b32.xlu0 %v57, 73
    %v75 = vpop.permute.xlu0 %74
    %76 = vrot.lane.b32.xlu0 %v61, 73
    %v77 = vpop.permute.xlu0 %76
    %78 = vrot.lane.b32.xlu0 %v65, 73
    %v79 = vpop.permute.xlu0 %78
    %80 = vrot.lane.b32.xlu0 %v69, 73
    %v81 = vpop.permute.xlu0 %80
    %v82 = vlaneseq
    %v83 = vand.u32 %v82, 127
    %vm84 = vcmp.lt.s32.totalorder %v83, 73
    %v85 = vsel %vm84, %v79, %v81
    %v86 = vsel %vm84, %v77, %v79
    %v87 = vsel %vm84, %v75, %v77
    %v88 = vsel %vm84, %v81, %v75
    %v89 = vld [vmem:[%s2] ss:$8 sm:$0xf]
    %v91 = vlaneseq
    %v92 = vshrl.u32 %v91, 7
    %v93 = vsub.s32 0, %v92
    %v94 = vrot.slane %v89, %v93
    %v95 = vlaneseq
    %v96 = vshrl.u32 %v95, 7
    %v97 = vsub.s32 1, %v96
    %v98 = vrot.slane %v89, %v97
    %v99 = vlaneseq
    %v100 = vshrl.u32 %v99, 7
    %v101 = vsub.s32 2, %v100
    %v102 = vrot.slane %v89, %v101
    %v103 = vlaneseq
    %v104 = vshrl.u32 %v103, 7
    %v105 = vsub.s32 3, %v104
    %v106 = vrot.slane %v89, %v105
    %v111 = vmul.f32 %v88, %v94
    %v112 = vmul.f32 %v87, %v98
    %v113 = vmul.f32 %v86, %v102
    %v114 = vmul.f32 %v85, %v106
    %v119 = vcombine.low %v111, %v112
    %v120 = vcombine.low %v113, %v114
    %v122 = vunpack.c.l.s4 1966171168
    %v123 = vunpack.c.0.s8 %v122
    %v124 = vlaneseq
    %v125 = vshrl.u32 %v124, 7
    %v126 = vsub.s32 %v123, %v125
    %v127 = vrot.slane %v119, %v126
    %v129 = vunpack.c.l.s4 1966171168
    %v130 = vunpack.c.0.s8 %v129
    %v131 = vlaneseq
    %v132 = vshrl.u32 %v131, 7
    %v133 = vsub.s32 %v130, %v132
    %v134 = vrot.slane %v120, %v133
    %v135 = vcombine.low %v127, %v134
    %v137 = vunpack.c.l.s4 1966171168
    %v138 = vunpack.c.0.s8 %v137
    %v139 = vlaneseq
    %v140 = vshrl.u32 %v139, 7
    %v141 = vsub.s32 %v138, %v140
    %v142 = vrot.slane %v135, %v141
    %v144 = vlaneseq
    %vm145 = vcmp.ge.s32.totalorder %v144, 0
    %vm146 = vcmp.lt.s32.totalorder %v144, 512
    %vm147 = vmand %vm145, %vm146
    %148 = vst.msk [vmem:[#allocation2] ss:$8 sm:$0xf] %vm147, %v142
    %149 = vst.msk [vmem:[#allocation2] ss:$8 sm:$0x0] %vm147, %v142
    %150 = vrot.lane.b32.xlu0 %v57, 72
    %v151 = vpop.permute.xlu0 %150
    %152 = vrot.lane.b32.xlu0 %v61, 72
    %v153 = vpop.permute.xlu0 %152
    %154 = vrot.lane.b32.xlu0 %v65, 72
    %v155 = vpop.permute.xlu0 %154
    %156 = vrot.lane.b32.xlu0 %v69, 72
    %v157 = vpop.permute.xlu0 %156
    %vm158 = vcmp.lt.s32.totalorder %v83, 72
    %v159 = vsel %vm158, %v155, %v157
    %v160 = vsel %vm158, %v153, %v155
    %v161 = vsel %vm158, %v151, %v153
    %v162 = vsel %vm158, %v157, %v151
    %s163 = scalar_lea.vmem %s2, 1
    %v164 = vld [vmem:[%s163] ss:$8 sm:$0xf]
    %v166 = vlaneseq
    %v167 = vshrl.u32 %v166, 7
    %v168 = vsub.s32 0, %v167
    %v169 = vrot.slane %v164, %v168
    %v170 = vlaneseq
    %v171 = vshrl.u32 %v170, 7
    %v172 = vsub.s32 1, %v171
    %v173 = vrot.slane %v164, %v172
    %v174 = vlaneseq
    %v175 = vshrl.u32 %v174, 7
    %v176 = vsub.s32 2, %v175
    %v177 = vrot.slane %v164, %v176
    %v178 = vlaneseq
    %v179 = vshrl.u32 %v178, 7
    %v180 = vsub.s32 3, %v179
    %v181 = vrot.slane %v164, %v180
    %v186 = vmul.f32 %v162, %v169
    %v187 = vmul.f32 %v161, %v173
    %v188 = vmul.f32 %v160, %v177
    %v189 = vmul.f32 %v159, %v181
    %v194 = vcombine.low %v186, %v187
    %v195 = vcombine.low %v188, %v189
    %v197 = vunpack.c.l.s4 1966171168
    %v198 = vunpack.c.0.s8 %v197
    %v199 = vlaneseq
    %v200 = vshrl.u32 %v199, 7
    %v201 = vsub.s32 %v198, %v200
    %v202 = vrot.slane %v194, %v201
    %v204 = vunpack.c.l.s4 1966171168
    %v205 = vunpack.c.0.s8 %v204
    %v206 = vlaneseq
    %v207 = vshrl.u32 %v206, 7
    %v208 = vsub.s32 %v205, %v207
    %v209 = vrot.slane %v195, %v208
    %v210 = vcombine.low %v202, %v209
    %v212 = vunpack.c.l.s4 1966171168
    %v213 = vunpack.c.0.s8 %v212
    %v214 = vlaneseq
    %v215 = vshrl.u32 %v214, 7
    %v216 = vsub.s32 %v213, %v215
    %v217 = vrot.slane %v210, %v216
    %s219 = scalar_lea.vmem [#allocation2], 1
    %220 = vst.msk [vmem:[%s219] ss:$8 sm:$0xf] %vm147, %v217
    %221 = vst.msk [vmem:[%s219] ss:$8 sm:$0x0] %vm147, %v217
    %222 = vrot.lane.b32.xlu0 %v57, 71
    %v223 = vpop.permute.xlu0 %222
    %224 = vrot.lane.b32.xlu0 %v61, 71
    %v225 = vpop.permute.xlu0 %224
    %226 = vrot.lane.b32.xlu0 %v65, 71
    %v227 = vpop.permute.xlu0 %226
    %228 = vrot.lane.b32.xlu0 %v69, 71
    %v229 = vpop.permute.xlu0 %228
    %vm230 = vcmp.lt.s32.totalorder %v83, 71
    %v231 = vsel %vm230, %v227, %v229
    %v232 = vsel %vm230, %v225, %v227
    %v233 = vsel %vm230, %v223, %v225
    %v234 = vsel %vm230, %v229, %v223
    %s235 = scalar_lea.vmem %s2, 2
    %v236 = vld [vmem:[%s235] ss:$8 sm:$0xf]
    %v238 = vlaneseq
    %v239 = vshrl.u32 %v238, 7
    %v240 = vsub.s32 0, %v239
    %v241 = vrot.slane %v236, %v240
    %v242 = vlaneseq
    %v243 = vshrl.u32 %v242, 7
    %v244 = vsub.s32 1, %v243
    %v245 = vrot.slane %v236, %v244
    %v246 = vlaneseq
    %v247 = vshrl.u32 %v246, 7
    %v248 = vsub.s32 2, %v247
    %v249 = vrot.slane %v236, %v248
    %v250 = vlaneseq
    %v251 = vshrl.u32 %v250, 7
    %v252 = vsub.s32 3, %v251
    %v253 = vrot.slane %v236, %v252
    %v258 = vmul.f32 %v234, %v241
    %v259 = vmul.f32 %v233, %v245
    %v260 = vmul.f32 %v232, %v249
    %v261 = vmul.f32 %v231, %v253
    %v266 = vcombine.low %v258, %v259
    %v267 = vcombine.low %v260, %v261
    %v269 = vunpack.c.l.s4 1966171168
    %v270 = vunpack.c.0.s8 %v269
    %v271 = vlaneseq
    %v272 = vshrl.u32 %v271, 7
    %v273 = vsub.s32 %v270, %v272
    %v274 = vrot.slane %v266, %v273
    %v276 = vunpack.c.l.s4 1966171168
    %v277 = vunpack.c.0.s8 %v276
    %v278 = vlaneseq
    %v279 = vshrl.u32 %v278, 7
    %v280 = vsub.s32 %v277, %v279
    %v281 = vrot.slane %v267, %v280
    %v282 = vcombine.low %v274, %v281
    %v284 = vunpack.c.l.s4 1966171168
    %v285 = vunpack.c.0.s8 %v284
    %v286 = vlaneseq
    %v287 = vshrl.u32 %v286, 7
    %v288 = vsub.s32 %v285, %v287
    %v289 = vrot.slane %v282, %v288
    %s291 = scalar_lea.vmem [#allocation2], 2
    %292 = vst.msk [vmem:[%s291] ss:$8 sm:$0xf] %vm147, %v289
    %293 = vst.msk [vmem:[%s291] ss:$8 sm:$0x0] %vm147, %v289
    %294 = vrot.lane.b32.xlu0 %v57, 65
    %v295 = vpop.permute.xlu0 %294
    %296 = vrot.lane.b32.xlu0 %v61, 65
    %v297 = vpop.permute.xlu0 %296
    %298 = vrot.lane.b32.xlu0 %v65, 65
    %v299 = vpop.permute.xlu0 %298
    %300 = vrot.lane.b32.xlu0 %v69, 65
    %v301 = vpop.permute.xlu0 %300
    %vm302 = vcmp.lt.s32.totalorder %v83, 65
    %v303 = vsel %vm302, %v299, %v301
    %v304 = vsel %vm302, %v297, %v299
    %v305 = vsel %vm302, %v295, %v297
    %v306 = vsel %vm302, %v301, %v295
    %s307 = scalar_lea.vmem %s2, 3
    %v308 = vld [vmem:[%s307] ss:$8 sm:$0xf]
    %v310 = vlaneseq
    %v311 = vshrl.u32 %v310, 7
    %v312 = vsub.s32 0, %v311
    %v313 = vrot.slane %v308, %v312
    %v314 = vlaneseq
    %v315 = vshrl.u32 %v314, 7
    %v316 = vsub.s32 1, %v315
    %v317 = vrot.slane %v308, %v316
    %v318 = vlaneseq
    %v319 = vshrl.u32 %v318, 7
    %v320 = vsub.s32 2, %v319
    %v321 = vrot.slane %v308, %v320
    %v322 = vlaneseq
    %v323 = vshrl.u32 %v322, 7
    %v324 = vsub.s32 3, %v323
    %v325 = vrot.slane %v308, %v324
    %v330 = vmul.f32 %v306, %v313
    %v331 = vmul.f32 %v305, %v317
    %v332 = vmul.f32 %v304, %v321
    %v333 = vmul.f32 %v303, %v325
    %v338 = vcombine.low %v330, %v331
    %v339 = vcombine.low %v332, %v333
    %v341 = vunpack.c.l.s4 1966171168
    %v342 = vunpack.c.0.s8 %v341
    %v343 = vlaneseq
    %v344 = vshrl.u32 %v343, 7
    %v345 = vsub.s32 %v342, %v344
    %v346 = vrot.slane %v338, %v345
    %v348 = vunpack.c.l.s4 1966171168
    %v349 = vunpack.c.0.s8 %v348
    %v350 = vlaneseq
    %v351 = vshrl.u32 %v350, 7
    %v352 = vsub.s32 %v349, %v351
    %v353 = vrot.slane %v339, %v352
    %v354 = vcombine.low %v346, %v353
    %v356 = vunpack.c.l.s4 1966171168
    %v357 = vunpack.c.0.s8 %v356
    %v358 = vlaneseq
    %v359 = vshrl.u32 %v358, 7
    %v360 = vsub.s32 %v357, %v359
    %v361 = vrot.slane %v354, %v360
    %s363 = scalar_lea.vmem [#allocation2], 3
    %364 = vst.msk [vmem:[%s363] ss:$8 sm:$0xf] %vm147, %v361
    %365 = vst.msk [vmem:[%s363] ss:$8 sm:$0x0] %vm147, %v361
    %366 = vrot.lane.b32.xlu0 %v57, 64
    %v367 = vpop.permute.xlu0 %366
    %368 = vrot.lane.b32.xlu0 %v61, 64
    %v369 = vpop.permute.xlu0 %368
    %370 = vrot.lane.b32.xlu0 %v65, 64
    %v371 = vpop.permute.xlu0 %370
    %372 = vrot.lane.b32.xlu0 %v69, 64
    %v373 = vpop.permute.xlu0 %372
    %vm374 = vcmp.lt.s32.totalorder %v83, 64
    %v375 = vsel %vm374, %v371, %v373
    %v376 = vsel %vm374, %v369, %v371
    %v377 = vsel %vm374, %v367, %v369
    %v378 = vsel %vm374, %v373, %v367
    %s379 = scalar_lea.vmem %s2, 4
    %v380 = vld [vmem:[%s379] ss:$8 sm:$0xf]
    %v382 = vlaneseq
    %v383 = vshrl.u32 %v382, 7
    %v384 = vsub.s32 0, %v383
    %v385 = vrot.slane %v380, %v384
    %v386 = vlaneseq
    %v387 = vshrl.u32 %v386, 7
    %v388 = vsub.s32 1, %v387
    %v389 = vrot.slane %v380, %v388
    %v390 = vlaneseq
    %v391 = vshrl.u32 %v390, 7
    %v392 = vsub.s32 2, %v391
    %v393 = vrot.slane %v380, %v392
    %v394 = vlaneseq
    %v395 = vshrl.u32 %v394, 7
    %v396 = vsub.s32 3, %v395
    %v397 = vrot.slane %v380, %v396
    %v402 = vmul.f32 %v378, %v385
    %v403 = vmul.f32 %v377, %v389
    %v404 = vmul.f32 %v376, %v393
    %v405 = vmul.f32 %v375, %v397
    %v410 = vcombine.low %v402, %v403
    %v411 = vcombine.low %v404, %v405
    %v413 = vunpack.c.l.s4 1966171168
    %v414 = vunpack.c.0.s8 %v413
    %v415 = vlaneseq
    %v416 = vshrl.u32 %v415, 7
    %v417 = vsub.s32 %v414, %v416
    %v418 = vrot.slane %v410, %v417
    %v420 = vunpack.c.l.s4 1966171168
    %v421 = vunpack.c.0.s8 %v420
    %v422 = vlaneseq
    %v423 = vshrl.u32 %v422, 7
    %v424 = vsub.s32 %v421, %v423
    %v425 = vrot.slane %v411, %v424
    %v426 = vcombine.low %v418, %v425
    %v428 = vunpack.c.l.s4 1966171168
    %v429 = vunpack.c.0.s8 %v428
    %v430 = vlaneseq
    %v431 = vshrl.u32 %v430, 7
    %v432 = vsub.s32 %v429, %v431
    %v433 = vrot.slane %v426, %v432
    %s435 = scalar_lea.vmem [#allocation2], 4
    %436 = vst.msk [vmem:[%s435] ss:$8 sm:$0xf] %vm147, %v433
    %437 = vst.msk [vmem:[%s435] ss:$8 sm:$0x0] %vm147, %v433
    %438 = vrot.lane.b32.xlu0 %v57, 63
    %v439 = vpop.permute.xlu0 %438
    %440 = vrot.lane.b32.xlu0 %v61, 63
    %v441 = vpop.permute.xlu0 %440
    %442 = vrot.lane.b32.xlu0 %v65, 63
    %v443 = vpop.permute.xlu0 %442
    %444 = vrot.lane.b32.xlu0 %v69, 63
    %v445 = vpop.permute.xlu0 %444
    %vm446 = vcmp.lt.s32.totalorder %v83, 63
    %v447 = vsel %vm446, %v443, %v445
    %v448 = vsel %vm446, %v441, %v443
    %v449 = vsel %vm446, %v439, %v441
    %v450 = vsel %vm446, %v445, %v439
    %s451 = scalar_lea.vmem %s2, 5
    %v452 = vld [vmem:[%s451] ss:$8 sm:$0xf]
    %v454 = vlaneseq
    %v455 = vshrl.u32 %v454, 7
    %v456 = vsub.s32 0, %v455
    %v457 = vrot.slane %v452, %v456
    %v458 = vlaneseq
    %v459 = vshrl.u32 %v458, 7
    %v460 = vsub.s32 1, %v459
    %v461 = vrot.slane %v452, %v460
    %v462 = vlaneseq
    %v463 = vshrl.u32 %v462, 7
    %v464 = vsub.s32 2, %v463
    %v465 = vrot.slane %v452, %v464
    %v466 = vlaneseq
    %v467 = vshrl.u32 %v466, 7
    %v468 = vsub.s32 3, %v467
    %v469 = vrot.slane %v452, %v468
    %v474 = vmul.f32 %v450, %v457
    %v475 = vmul.f32 %v449, %v461
    %v476 = vmul.f32 %v448, %v465
    %v477 = vmul.f32 %v447, %v469
    %v482 = vcombine.low %v474, %v475
    %v483 = vcombine.low %v476, %v477
    %v485 = vunpack.c.l.s4 1966171168
    %v486 = vunpack.c.0.s8 %v485
    %v487 = vlaneseq
    %v488 = vshrl.u32 %v487, 7
    %v489 = vsub.s32 %v486, %v488
    %v490 = vrot.slane %v482, %v489
    %v492 = vunpack.c.l.s4 1966171168
    %v493 = vunpack.c.0.s8 %v492
    %v494 = vlaneseq
    %v495 = vshrl.u32 %v494, 7
    %v496 = vsub.s32 %v493, %v495
    %v497 = vrot.slane %v483, %v496
    %v498 = vcombine.low %v490, %v497
    %v500 = vunpack.c.l.s4 1966171168
    %v501 = vunpack.c.0.s8 %v500
    %v502 = vlaneseq
    %v503 = vshrl.u32 %v502, 7
    %v504 = vsub.s32 %v501, %v503
    %v505 = vrot.slane %v498, %v504
    %s507 = scalar_lea.vmem [#allocation2], 5
    %508 = vst.msk [vmem:[%s507] ss:$8 sm:$0xf] %vm147, %v505
    %509 = vst.msk [vmem:[%s507] ss:$8 sm:$0x0] %vm147, %v505
    %510 = vrot.lane.b32.xlu0 %v57, 57
    %v511 = vpop.permute.xlu0 %510
    %512 = vrot.lane.b32.xlu0 %v61, 57
    %v513 = vpop.permute.xlu0 %512
    %514 = vrot.lane.b32.xlu0 %v65, 57
    %v515 = vpop.permute.xlu0 %514
    %516 = vrot.lane.b32.xlu0 %v69, 57
    %v517 = vpop.permute.xlu0 %516
    %vm518 = vcmp.lt.s32.totalorder %v83, 57
    %v519 = vsel %vm518, %v515, %v517
    %v520 = vsel %vm518, %v513, %v515
    %v521 = vsel %vm518, %v511, %v513
    %v522 = vsel %vm518, %v517, %v511
    %s523 = scalar_lea.vmem %s2, 6
    %v524 = vld [vmem:[%s523] ss:$8 sm:$0xf]
    %v526 = vlaneseq
    %v527 = vshrl.u32 %v526, 7
    %v528 = vsub.s32 0, %v527
    %v529 = vrot.slane %v524, %v528
    %v530 = vlaneseq
    %v531 = vshrl.u32 %v530, 7
    %v532 = vsub.s32 1, %v531
    %v533 = vrot.slane %v524, %v532
    %v534 = vlaneseq
    %v535 = vshrl.u32 %v534, 7
    %v536 = vsub.s32 2, %v535
    %v537 = vrot.slane %v524, %v536
    %v538 = vlaneseq
    %v539 = vshrl.u32 %v538, 7
    %v540 = vsub.s32 3, %v539
    %v541 = vrot.slane %v524, %v540
    %v546 = vmul.f32 %v522, %v529
    %v547 = vmul.f32 %v521, %v533
    %v548 = vmul.f32 %v520, %v537
    %v549 = vmul.f32 %v519, %v541
    %v554 = vcombine.low %v546, %v547
    %v555 = vcombine.low %v548, %v549
    %v557 = vunpack.c.l.s4 1966171168
    %v558 = vunpack.c.0.s8 %v557
    %v559 = vlaneseq
    %v560 = vshrl.u32 %v559, 7
    %v561 = vsub.s32 %v558, %v560
    %v562 = vrot.slane %v554, %v561
    %v564 = vunpack.c.l.s4 1966171168
    %v565 = vunpack.c.0.s8 %v564
    %v566 = vlaneseq
    %v567 = vshrl.u32 %v566, 7
    %v568 = vsub.s32 %v565, %v567
    %v569 = vrot.slane %v555, %v568
    %v570 = vcombine.low %v562, %v569
    %v572 = vunpack.c.l.s4 1966171168
    %v573 = vunpack.c.0.s8 %v572
    %v574 = vlaneseq
    %v575 = vshrl.u32 %v574, 7
    %v576 = vsub.s32 %v573, %v575
    %v577 = vrot.slane %v570, %v576
    %s579 = scalar_lea.vmem [#allocation2], 6
    %580 = vst.msk [vmem:[%s579] ss:$8 sm:$0xf] %vm147, %v577
    %581 = vst.msk [vmem:[%s579] ss:$8 sm:$0x0] %vm147, %v577
    %582 = vrot.lane.b32.xlu0 %v57, 56
    %v583 = vpop.permute.xlu0 %582
    %584 = vrot.lane.b32.xlu0 %v61, 56
    %v585 = vpop.permute.xlu0 %584
    %586 = vrot.lane.b32.xlu0 %v65, 56
    %v587 = vpop.permute.xlu0 %586
    %588 = vrot.lane.b32.xlu0 %v69, 56
    %v589 = vpop.permute.xlu0 %588
    %vm590 = vcmp.lt.s32.totalorder %v83, 56
    %v591 = vsel %vm590, %v587, %v589
    %v592 = vsel %vm590, %v585, %v587
    %v593 = vsel %vm590, %v583, %v585
    %v594 = vsel %vm590, %v589, %v583
    %s595 = scalar_lea.vmem %s2, 7
    %v596 = vld [vmem:[%s595] ss:$8 sm:$0xf]
    %v598 = vlaneseq
    %v599 = vshrl.u32 %v598, 7
    %v600 = vsub.s32 0, %v599
    %v601 = vrot.slane %v596, %v600
    %v602 = vlaneseq
    %v603 = vshrl.u32 %v602, 7
    %v604 = vsub.s32 1, %v603
    %v605 = vrot.slane %v596, %v604
    %v606 = vlaneseq
    %v607 = vshrl.u32 %v606, 7
    %v608 = vsub.s32 2, %v607
    %v609 = vrot.slane %v596, %v608
    %v610 = vlaneseq
    %v611 = vshrl.u32 %v610, 7
    %v612 = vsub.s32 3, %v611
    %v613 = vrot.slane %v596, %v612
    %v618 = vmul.f32 %v594, %v601
    %v619 = vmul.f32 %v593, %v605
    %v620 = vmul.f32 %v592, %v609
    %v621 = vmul.f32 %v591, %v613
    %v626 = vcombine.low %v618, %v619
    %v627 = vcombine.low %v620, %v621
    %v629 = vunpack.c.l.s4 1966171168
    %v630 = vunpack.c.0.s8 %v629
    %v631 = vlaneseq
    %v632 = vshrl.u32 %v631, 7
    %v633 = vsub.s32 %v630, %v632
    %v634 = vrot.slane %v626, %v633
    %v636 = vunpack.c.l.s4 1966171168
    %v637 = vunpack.c.0.s8 %v636
    %v638 = vlaneseq
    %v639 = vshrl.u32 %v638, 7
    %v640 = vsub.s32 %v637, %v639
    %v641 = vrot.slane %v627, %v640
    %v642 = vcombine.low %v634, %v641
    %v644 = vunpack.c.l.s4 1966171168
    %v645 = vunpack.c.0.s8 %v644
    %v646 = vlaneseq
    %v647 = vshrl.u32 %v646, 7
    %v648 = vsub.s32 %v645, %v647
    %v649 = vrot.slane %v642, %v648
    %s651 = scalar_lea.vmem [#allocation2], 7
    %652 = vst.msk [vmem:[%s651] ss:$8 sm:$0xf] %vm147, %v649
    %653 = vst.msk [vmem:[%s651] ss:$8 sm:$0x0] %vm147, %v649
    %654 = vrot.lane.b32.xlu0 %v57, 55
    %v655 = vpop.permute.xlu0 %654
    %656 = vrot.lane.b32.xlu0 %v61, 55
    %v657 = vpop.permute.xlu0 %656
    %658 = vrot.lane.b32.xlu0 %v65, 55
    %v659 = vpop.permute.xlu0 %658
    %660 = vrot.lane.b32.xlu0 %v69, 55
    %v661 = vpop.permute.xlu0 %660
    %vm662 = vcmp.lt.s32.totalorder %v83, 55
    %v663 = vsel %vm662, %v659, %v661
    %v664 = vsel %vm662, %v657, %v659
    %v665 = vsel %vm662, %v655, %v657
    %v666 = vsel %vm662, %v661, %v655
    %s667 = scalar_lea.vmem %s2, 32
    %v668 = vld [vmem:[%s667] ss:$8 sm:$0xf]
    %v670 = vlaneseq
    %v671 = vshrl.u32 %v670, 7
    %v672 = vsub.s32 0, %v671
    %v673 = vrot.slane %v668, %v672
    %v674 = vlaneseq
    %v675 = vshrl.u32 %v674, 7
    %v676 = vsub.s32 1, %v675
    %v677 = vrot.slane %v668, %v676
    %v678 = vlaneseq
    %v679 = vshrl.u32 %v678, 7
    %v680 = vsub.s32 2, %v679
    %v681 = vrot.slane %v668, %v680
    %v682 = vlaneseq
    %v683 = vshrl.u32 %v682, 7
    %v684 = vsub.s32 3, %v683
    %v685 = vrot.slane %v668, %v684
    %v690 = vmul.f32 %v666, %v673
    %v691 = vmul.f32 %v665, %v677
    %v692 = vmul.f32 %v664, %v681
    %v693 = vmul.f32 %v663, %v685
    %v698 = vcombine.low %v690, %v691
    %v699 = vcombine.low %v692, %v693
    %v701 = vunpack.c.l.s4 1966171168
    %v702 = vunpack.c.0.s8 %v701
    %v703 = vlaneseq
    %v704 = vshrl.u32 %v703, 7
    %v705 = vsub.s32 %v702, %v704
    %v706 = vrot.slane %v698, %v705
    %v708 = vunpack.c.l.s4 1966171168
    %v709 = vunpack.c.0.s8 %v708
    %v710 = vlaneseq
    %v711 = vshrl.u32 %v710, 7
    %v712 = vsub.s32 %v709, %v711
    %v713 = vrot.slane %v699, %v712
    %v714 = vcombine.low %v706, %v713
    %v716 = vunpack.c.l.s4 1966171168
    %v717 = vunpack.c.0.s8 %v716
    %v718 = vlaneseq
    %v719 = vshrl.u32 %v718, 7
    %v720 = vsub.s32 %v717, %v719
    %v721 = vrot.slane %v714, %v720
    %s723 = scalar_lea.vmem [#allocation2], 32
    %724 = vst.msk [vmem:[%s723] ss:$8 sm:$0xf] %vm147, %v721
    %725 = vst.msk [vmem:[%s723] ss:$8 sm:$0x0] %vm147, %v721
    %726 = vrot.lane.b32.xlu0 %v57, 9
    %v727 = vpop.permute.xlu0 %726
    %728 = vrot.lane.b32.xlu0 %v61, 9
    %v729 = vpop.permute.xlu0 %728
    %730 = vrot.lane.b32.xlu0 %v65, 9
    %v731 = vpop.permute.xlu0 %730
    %732 = vrot.lane.b32.xlu0 %v69, 9
    %v733 = vpop.permute.xlu0 %732
    %vm734 = vcmp.lt.s32.totalorder %v83, 9
    %v735 = vsel %vm734, %v731, %v733
    %v736 = vsel %vm734, %v729, %v731
    %v737 = vsel %vm734, %v727, %v729
    %v738 = vsel %vm734, %v733, %v727
    %s739 = scalar_lea.vmem %s2, 33
    %v740 = vld [vmem:[%s739] ss:$8 sm:$0xf]
    %v742 = vlaneseq
    %v743 = vshrl.u32 %v742, 7
    %v744 = vsub.s32 0, %v743
    %v745 = vrot.slane %v740, %v744
    %v746 = vlaneseq
    %v747 = vshrl.u32 %v746, 7
    %v748 = vsub.s32 1, %v747
    %v749 = vrot.slane %v740, %v748
    %v750 = vlaneseq
    %v751 = vshrl.u32 %v750, 7
    %v752 = vsub.s32 2, %v751
    %v753 = vrot.slane %v740, %v752
    %v754 = vlaneseq
    %v755 = vshrl.u32 %v754, 7
    %v756 = vsub.s32 3, %v755
    %v757 = vrot.slane %v740, %v756
    %v762 = vmul.f32 %v738, %v745
    %v763 = vmul.f32 %v737, %v749
    %v764 = vmul.f32 %v736, %v753
    %v765 = vmul.f32 %v735, %v757
    %v770 = vcombine.low %v762, %v763
    %v771 = vcombine.low %v764, %v765
    %v773 = vunpack.c.l.s4 1966171168
    %v774 = vunpack.c.0.s8 %v773
    %v775 = vlaneseq
    %v776 = vshrl.u32 %v775, 7
    %v777 = vsub.s32 %v774, %v776
    %v778 = vrot.slane %v770, %v777
    %v780 = vunpack.c.l.s4 1966171168
    %v781 = vunpack.c.0.s8 %v780
    %v782 = vlaneseq
    %v783 = vshrl.u32 %v782, 7
    %v784 = vsub.s32 %v781, %v783
    %v785 = vrot.slane %v771, %v784
    %v786 = vcombine.low %v778, %v785
    %v788 = vunpack.c.l.s4 1966171168
    %v789 = vunpack.c.0.s8 %v788
    %v790 = vlaneseq
    %v791 = vshrl.u32 %v790, 7
    %v792 = vsub.s32 %v789, %v791
    %v793 = vrot.slane %v786, %v792
    %s795 = scalar_lea.vmem [#allocation2], 33
    %796 = vst.msk [vmem:[%s795] ss:$8 sm:$0xf] %vm147, %v793
    %797 = vst.msk [vmem:[%s795] ss:$8 sm:$0x0] %vm147, %v793
    %798 = vrot.lane.b32.xlu0 %v57, 8
    %v799 = vpop.permute.xlu0 %798
    %800 = vrot.lane.b32.xlu0 %v61, 8
    %v801 = vpop.permute.xlu0 %800
    %802 = vrot.lane.b32.xlu0 %v65, 8
    %v803 = vpop.permute.xlu0 %802
    %804 = vrot.lane.b32.xlu0 %v69, 8
    %v805 = vpop.permute.xlu0 %804
    %vm806 = vcmp.lt.s32.totalorder %v83, 8
    %v807 = vsel %vm806, %v803, %v805
    %v808 = vsel %vm806, %v801, %v803
    %v809 = vsel %vm806, %v799, %v801
    %v810 = vsel %vm806, %v805, %v799
    %s811 = scalar_lea.vmem %s2, 34
    %v812 = vld [vmem:[%s811] ss:$8 sm:$0xf]
    %v814 = vlaneseq
    %v815 = vshrl.u32 %v814, 7
    %v816 = vsub.s32 0, %v815
    %v817 = vrot.slane %v812, %v816
    %v818 = vlaneseq
    %v819 = vshrl.u32 %v818, 7
    %v820 = vsub.s32 1, %v819
    %v821 = vrot.slane %v812, %v820
    %v822 = vlaneseq
    %v823 = vshrl.u32 %v822, 7
    %v824 = vsub.s32 2, %v823
    %v825 = vrot.slane %v812, %v824
    %v826 = vlaneseq
    %v827 = vshrl.u32 %v826, 7
    %v828 = vsub.s32 3, %v827
    %v829 = vrot.slane %v812, %v828
    %v834 = vmul.f32 %v810, %v817
    %v835 = vmul.f32 %v809, %v821
    %v836 = vmul.f32 %v808, %v825
    %v837 = vmul.f32 %v807, %v829
    %v842 = vcombine.low %v834, %v835
    %v843 = vcombine.low %v836, %v837
    %v845 = vunpack.c.l.s4 1966171168
    %v846 = vunpack.c.0.s8 %v845
    %v847 = vlaneseq
    %v848 = vshrl.u32 %v847, 7
    %v849 = vsub.s32 %v846, %v848
    %v850 = vrot.slane %v842, %v849
    %v852 = vunpack.c.l.s4 1966171168
    %v853 = vunpack.c.0.s8 %v852
    %v854 = vlaneseq
    %v855 = vshrl.u32 %v854, 7
    %v856 = vsub.s32 %v853, %v855
    %v857 = vrot.slane %v843, %v856
    %v858 = vcombine.low %v850, %v857
    %v860 = vunpack.c.l.s4 1966171168
    %v861 = vunpack.c.0.s8 %v860
    %v862 = vlaneseq
    %v863 = vshrl.u32 %v862, 7
    %v864 = vsub.s32 %v861, %v863
    %v865 = vrot.slane %v858, %v864
    %s867 = scalar_lea.vmem [#allocation2], 34
    %868 = vst.msk [vmem:[%s867] ss:$8 sm:$0xf] %vm147, %v865
    %869 = vst.msk [vmem:[%s867] ss:$8 sm:$0x0] %vm147, %v865
    %870 = vrot.lane.b32.xlu0 %v57, 7
    %v871 = vpop.permute.xlu0 %870
    %872 = vrot.lane.b32.xlu0 %v61, 7
    %v873 = vpop.permute.xlu0 %872
    %874 = vrot.lane.b32.xlu0 %v65, 7
    %v875 = vpop.permute.xlu0 %874
    %876 = vrot.lane.b32.xlu0 %v69, 7
    %v877 = vpop.permute.xlu0 %876
    %vm878 = vcmp.lt.s32.totalorder %v83, 7
    %v879 = vsel %vm878, %v875, %v877
    %v880 = vsel %vm878, %v873, %v875
    %v881 = vsel %vm878, %v871, %v873
    %v882 = vsel %vm878, %v877, %v871
    %s883 = scalar_lea.vmem %s2, 35
    %v884 = vld [vmem:[%s883] ss:$8 sm:$0xf]
    %v886 = vlaneseq
    %v887 = vshrl.u32 %v886, 7
    %v888 = vsub.s32 0, %v887
    %v889 = vrot.slane %v884, %v888
    %v890 = vlaneseq
    %v891 = vshrl.u32 %v890, 7
    %v892 = vsub.s32 1, %v891
    %v893 = vrot.slane %v884, %v892
    %v894 = vlaneseq
    %v895 = vshrl.u32 %v894, 7
    %v896 = vsub.s32 2, %v895
    %v897 = vrot.slane %v884, %v896
    %v898 = vlaneseq
    %v899 = vshrl.u32 %v898, 7
    %v900 = vsub.s32 3, %v899
    %v901 = vrot.slane %v884, %v900
    %v906 = vmul.f32 %v882, %v889
    %v907 = vmul.f32 %v881, %v893
    %v908 = vmul.f32 %v880, %v897
    %v909 = vmul.f32 %v879, %v901
    %v914 = vcombine.low %v906, %v907
    %v915 = vcombine.low %v908, %v909
    %v917 = vunpack.c.l.s4 1966171168
    %v918 = vunpack.c.0.s8 %v917
    %v919 = vlaneseq
    %v920 = vshrl.u32 %v919, 7
    %v921 = vsub.s32 %v918, %v920
    %v922 = vrot.slane %v914, %v921
    %v924 = vunpack.c.l.s4 1966171168
    %v925 = vunpack.c.0.s8 %v924
    %v926 = vlaneseq
    %v927 = vshrl.u32 %v926, 7
    %v928 = vsub.s32 %v925, %v927
    %v929 = vrot.slane %v915, %v928
    %v930 = vcombine.low %v922, %v929
    %v932 = vunpack.c.l.s4 1966171168
    %v933 = vunpack.c.0.s8 %v932
    %v934 = vlaneseq
    %v935 = vshrl.u32 %v934, 7
    %v936 = vsub.s32 %v933, %v935
    %v937 = vrot.slane %v930, %v936
    %s939 = scalar_lea.vmem [#allocation2], 35
    %940 = vst.msk [vmem:[%s939] ss:$8 sm:$0xf] %vm147, %v937
    %941 = vst.msk [vmem:[%s939] ss:$8 sm:$0x0] %vm147, %v937
    %942 = vrot.lane.b32.xlu0 %v57, 1
    %v943 = vpop.permute.xlu0 %942
    %944 = vrot.lane.b32.xlu0 %v61, 1
    %v945 = vpop.permute.xlu0 %944
    %946 = vrot.lane.b32.xlu0 %v65, 1
    %v947 = vpop.permute.xlu0 %946
    %948 = vrot.lane.b32.xlu0 %v69, 1
    %v949 = vpop.permute.xlu0 %948
    %vm950 = vcmp.lt.s32.totalorder %v83, 1
    %v951 = vsel %vm950, %v947, %v949
    %v952 = vsel %vm950, %v945, %v947
    %v953 = vsel %vm950, %v943, %v945
    %v954 = vsel %vm950, %v949, %v943
    %s955 = scalar_lea.vmem %s2, 36
    %v956 = vld [vmem:[%s955] ss:$8 sm:$0xf]
    %v958 = vlaneseq
    %v959 = vshrl.u32 %v958, 7
    %v960 = vsub.s32 0, %v959
    %v961 = vrot.slane %v956, %v960
    %v962 = vlaneseq
    %v963 = vshrl.u32 %v962, 7
    %v964 = vsub.s32 1, %v963
    %v965 = vrot.slane %v956, %v964
    %v966 = vlaneseq
    %v967 = vshrl.u32 %v966, 7
    %v968 = vsub.s32 2, %v967
    %v969 = vrot.slane %v956, %v968
    %v970 = vlaneseq
    %v971 = vshrl.u32 %v970, 7
    %v972 = vsub.s32 3, %v971
    %v973 = vrot.slane %v956, %v972
    %v978 = vmul.f32 %v954, %v961
    %v979 = vmul.f32 %v953, %v965
    %v980 = vmul.f32 %v952, %v969
    %v981 = vmul.f32 %v951, %v973
    %v986 = vcombine.low %v978, %v979
    %v987 = vcombine.low %v980, %v981
    %v989 = vunpack.c.l.s4 1966171168
    %v990 = vunpack.c.0.s8 %v989
    %v991 = vlaneseq
    %v992 = vshrl.u32 %v991, 7
    %v993 = vsub.s32 %v990, %v992
    %v994 = vrot.slane %v986, %v993
    %v996 = vunpack.c.l.s4 1966171168
    %v997 = vunpack.c.0.s8 %v996
    %v998 = vlaneseq
    %v999 = vshrl.u32 %v998, 7
    %v1000 = vsub.s32 %v997, %v999
    %v1001 = vrot.slane %v987, %v1000
    %v1002 = vcombine.low %v994, %v1001
    %v1004 = vunpack.c.l.s4 1966171168
    %v1005 = vunpack.c.0.s8 %v1004
    %v1006 = vlaneseq
    %v1007 = vshrl.u32 %v1006, 7
    %v1008 = vsub.s32 %v1005, %v1007
    %v1009 = vrot.slane %v1002, %v1008
    %s1011 = scalar_lea.vmem [#allocation2], 36
    %1012 = vst.msk [vmem:[%s1011] ss:$8 sm:$0xf] %vm147, %v1009
    %1013 = vst.msk [vmem:[%s1011] ss:$8 sm:$0x0] %vm147, %v1009
    %s1014 = scalar_lea.vmem [#allocation2], 37
    %1015 = vst.msk [vmem:[%s1014] ss:$8 sm:$0xf] %vm147, %v52
    %1016 = vst.msk [vmem:[%s1014] ss:$8 sm:$0x0] %vm147, %v52
    %1017 = vrot.lane.b32.xlu0 %v57, 127
    %v1018 = vpop.permute.xlu0 %1017
    %1019 = vrot.lane.b32.xlu0 %v61, 127
    %v1020 = vpop.permute.xlu0 %1019
    %1021 = vrot.lane.b32.xlu0 %v65, 127
    %v1022 = vpop.permute.xlu0 %1021
    %1023 = vrot.lane.b32.xlu0 %v69, 127
    %v1024 = vpop.permute.xlu0 %1023
    %vm1025 = vcmp.lt.s32.totalorder %v83, 127
    %v1026 = vsel %vm1025, %v1022, %v1024
    %v1027 = vsel %vm1025, %v1020, %v1022
    %v1028 = vsel %vm1025, %v1018, %v1020
    %v1029 = vsel %vm1025, %v1024, %v1018
    %s1030 = scalar_lea.vmem %s2, 38
    %v1031 = vld [vmem:[%s1030] ss:$8 sm:$0xf]
    %v1033 = vlaneseq
    %v1034 = vshrl.u32 %v1033, 7
    %v1035 = vsub.s32 0, %v1034
    %v1036 = vrot.slane %v1031, %v1035
    %v1037 = vlaneseq
    %v1038 = vshrl.u32 %v1037, 7
    %v1039 = vsub.s32 1, %v1038
    %v1040 = vrot.slane %v1031, %v1039
    %v1041 = vlaneseq
    %v1042 = vshrl.u32 %v1041, 7
    %v1043 = vsub.s32 2, %v1042
    %v1044 = vrot.slane %v1031, %v1043
    %v1045 = vlaneseq
    %v1046 = vshrl.u32 %v1045, 7
    %v1047 = vsub.s32 3, %v1046
    %v1048 = vrot.slane %v1031, %v1047
    %v1053 = vmul.f32 %v1028, %v1036
    %v1054 = vmul.f32 %v1027, %v1040
    %v1055 = vmul.f32 %v1026, %v1044
    %v1056 = vmul.f32 %v1029, %v1048
    %v1061 = vcombine.low %v1053, %v1054
    %v1062 = vcombine.low %v1055, %v1056
    %v1064 = vunpack.c.l.s4 1966171168
    %v1065 = vunpack.c.0.s8 %v1064
    %v1066 = vlaneseq
    %v1067 = vshrl.u32 %v1066, 7
    %v1068 = vsub.s32 %v1065, %v1067
    %v1069 = vrot.slane %v1061, %v1068
    %v1071 = vunpack.c.l.s4 1966171168
    %v1072 = vunpack.c.0.s8 %v1071
    %v1073 = vlaneseq
    %v1074 = vshrl.u32 %v1073, 7
    %v1075 = vsub.s32 %v1072, %v1074
    %v1076 = vrot.slane %v1062, %v1075
    %v1077 = vcombine.low %v1069, %v1076
    %v1079 = vunpack.c.l.s4 1966171168
    %v1080 = vunpack.c.0.s8 %v1079
    %v1081 = vlaneseq
    %v1082 = vshrl.u32 %v1081, 7
    %v1083 = vsub.s32 %v1080, %v1082
    %v1084 = vrot.slane %v1077, %v1083
    %s1086 = scalar_lea.vmem [#allocation2], 38
    %1087 = vst.msk [vmem:[%s1086] ss:$8 sm:$0xf] %vm147, %v1084
    %1088 = vst.msk [vmem:[%s1086] ss:$8 sm:$0x0] %vm147, %v1084
    %1089 = vrot.lane.b32.xlu0 %v57, 121
    %v1090 = vpop.permute.xlu0 %1089
    %1091 = vrot.lane.b32.xlu0 %v61, 121
    %v1092 = vpop.permute.xlu0 %1091
    %1093 = vrot.lane.b32.xlu0 %v65, 121
    %v1094 = vpop.permute.xlu0 %1093
    %1095 = vrot.lane.b32.xlu0 %v69, 121
    %v1096 = vpop.permute.xlu0 %1095
    %vm1097 = vcmp.lt.s32.totalorder %v83, 121
    %v1098 = vsel %vm1097, %v1094, %v1096
    %v1099 = vsel %vm1097, %v1092, %v1094
    %v1100 = vsel %vm1097, %v1090, %v1092
    %v1101 = vsel %vm1097, %v1096, %v1090
    %s1102 = scalar_lea.vmem %s2, 39
    %v1103 = vld [vmem:[%s1102] ss:$8 sm:$0xf]
    %v1105 = vlaneseq
    %v1106 = vshrl.u32 %v1105, 7
    %v1107 = vsub.s32 0, %v1106
    %v1108 = vrot.slane %v1103, %v1107
    %v1109 = vlaneseq
    %v1110 = vshrl.u32 %v1109, 7
    %v1111 = vsub.s32 1, %v1110
    %v1112 = vrot.slane %v1103, %v1111
    %v1113 = vlaneseq
    %v1114 = vshrl.u32 %v1113, 7
    %v1115 = vsub.s32 2, %v1114
    %v1116 = vrot.slane %v1103, %v1115
    %v1117 = vlaneseq
    %v1118 = vshrl.u32 %v1117, 7
    %v1119 = vsub.s32 3, %v1118
    %v1120 = vrot.slane %v1103, %v1119
    %v1125 = vmul.f32 %v1100, %v1108
    %v1126 = vmul.f32 %v1099, %v1112
    %v1127 = vmul.f32 %v1098, %v1116
    %v1128 = vmul.f32 %v1101, %v1120
    %v1133 = vcombine.low %v1125, %v1126
    %v1134 = vcombine.low %v1127, %v1128
    %v1136 = vunpack.c.l.s4 1966171168
    %v1137 = vunpack.c.0.s8 %v1136
    %v1138 = vlaneseq
    %v1139 = vshrl.u32 %v1138, 7
    %v1140 = vsub.s32 %v1137, %v1139
    %v1141 = vrot.slane %v1133, %v1140
    %v1143 = vunpack.c.l.s4 1966171168
    %v1144 = vunpack.c.0.s8 %v1143
    %v1145 = vlaneseq
    %v1146 = vshrl.u32 %v1145, 7
    %v1147 = vsub.s32 %v1144, %v1146
    %v1148 = vrot.slane %v1134, %v1147
    %v1149 = vcombine.low %v1141, %v1148
    %v1151 = vunpack.c.l.s4 1966171168
    %v1152 = vunpack.c.0.s8 %v1151
    %v1153 = vlaneseq
    %v1154 = vshrl.u32 %v1153, 7
    %v1155 = vsub.s32 %v1152, %v1154
    %v1156 = vrot.slane %v1149, %v1155
    %s1158 = scalar_lea.vmem [#allocation2], 39
    %1159 = vst.msk [vmem:[%s1158] ss:$8 sm:$0xf] %vm147, %v1156
    %1160 = vst.msk [vmem:[%s1158] ss:$8 sm:$0x0] %vm147, %v1156
    %1161 = vrot.lane.b32.xlu0 %v57, 120
    %v1162 = vpop.permute.xlu0 %1161
    %1163 = vrot.lane.b32.xlu0 %v61, 120
    %v1164 = vpop.permute.xlu0 %1163
    %1165 = vrot.lane.b32.xlu0 %v65, 120
    %v1166 = vpop.permute.xlu0 %1165
    %1167 = vrot.lane.b32.xlu0 %v69, 120
    %v1168 = vpop.permute.xlu0 %1167
    %vm1169 = vcmp.lt.s32.totalorder %v83, 120
    %v1170 = vsel %vm1169, %v1166, %v1168
    %v1171 = vsel %vm1169, %v1164, %v1166
    %v1172 = vsel %vm1169, %v1162, %v1164
    %v1173 = vsel %vm1169, %v1168, %v1162
    %s1174 = scalar_lea.vmem %s2, 64
    %v1175 = vld [vmem:[%s1174] ss:$8 sm:$0xf]
    %v1177 = vlaneseq
    %v1178 = vshrl.u32 %v1177, 7
    %v1179 = vsub.s32 0, %v1178
    %v1180 = vrot.slane %v1175, %v1179
    %v1181 = vlaneseq
    %v1182 = vshrl.u32 %v1181, 7
    %v1183 = vsub.s32 1, %v1182
    %v1184 = vrot.slane %v1175, %v1183
    %v1185 = vlaneseq
    %v1186 = vshrl.u32 %v1185, 7
    %v1187 = vsub.s32 2, %v1186
    %v1188 = vrot.slane %v1175, %v1187
    %v1189 = vlaneseq
    %v1190 = vshrl.u32 %v1189, 7
    %v1191 = vsub.s32 3, %v1190
    %v1192 = vrot.slane %v1175, %v1191
    %v1197 = vmul.f32 %v1172, %v1180
    %v1198 = vmul.f32 %v1171, %v1184
    %v1199 = vmul.f32 %v1170, %v1188
    %v1200 = vmul.f32 %v1173, %v1192
    %v1205 = vcombine.low %v1197, %v1198
    %v1206 = vcombine.low %v1199, %v1200
    %v1208 = vunpack.c.l.s4 1966171168
    %v1209 = vunpack.c.0.s8 %v1208
    %v1210 = vlaneseq
    %v1211 = vshrl.u32 %v1210, 7
    %v1212 = vsub.s32 %v1209, %v1211
    %v1213 = vrot.slane %v1205, %v1212
    %v1215 = vunpack.c.l.s4 1966171168
    %v1216 = vunpack.c.0.s8 %v1215
    %v1217 = vlaneseq
    %v1218 = vshrl.u32 %v1217, 7
    %v1219 = vsub.s32 %v1216, %v1218
    %v1220 = vrot.slane %v1206, %v1219
    %v1221 = vcombine.low %v1213, %v1220
    %v1223 = vunpack.c.l.s4 1966171168
    %v1224 = vunpack.c.0.s8 %v1223
    %v1225 = vlaneseq
    %v1226 = vshrl.u32 %v1225, 7
    %v1227 = vsub.s32 %v1224, %v1226
    %v1228 = vrot.slane %v1221, %v1227
    %s1230 = scalar_lea.vmem [#allocation2], 64
    %1231 = vst.msk [vmem:[%s1230] ss:$8 sm:$0xf] %vm147, %v1228
    %1232 = vst.msk [vmem:[%s1230] ss:$8 sm:$0x0] %vm147, %v1228
    %1233 = vrot.lane.b32.xlu0 %v57, 119
    %v1234 = vpop.permute.xlu0 %1233
    %1235 = vrot.lane.b32.xlu0 %v61, 119
    %v1236 = vpop.permute.xlu0 %1235
    %1237 = vrot.lane.b32.xlu0 %v65, 119
    %v1238 = vpop.permute.xlu0 %1237
    %1239 = vrot.lane.b32.xlu0 %v69, 119
    %v1240 = vpop.permute.xlu0 %1239
    %vm1241 = vcmp.lt.s32.totalorder %v83, 119
    %v1242 = vsel %vm1241, %v1238, %v1240
    %v1243 = vsel %vm1241, %v1236, %v1238
    %v1244 = vsel %vm1241, %v1234, %v1236
    %v1245 = vsel %vm1241, %v1240, %v1234
    %s1246 = scalar_lea.vmem %s2, 65
    %v1247 = vld [vmem:[%s1246] ss:$8 sm:$0xf]
    %v1249 = vlaneseq
    %v1250 = vshrl.u32 %v1249, 7
    %v1251 = vsub.s32 0, %v1250
    %v1252 = vrot.slane %v1247, %v1251
    %v1253 = vlaneseq
    %v1254 = vshrl.u32 %v1253, 7
    %v1255 = vsub.s32 1, %v1254
    %v1256 = vrot.slane %v1247, %v1255
    %v1257 = vlaneseq
    %v1258 = vshrl.u32 %v1257, 7
    %v1259 = vsub.s32 2, %v1258
    %v1260 = vrot.slane %v1247, %v1259
    %v1261 = vlaneseq
    %v1262 = vshrl.u32 %v1261, 7
    %v1263 = vsub.s32 3, %v1262
    %v1264 = vrot.slane %v1247, %v1263
    %v1269 = vmul.f32 %v1244, %v1252
    %v1270 = vmul.f32 %v1243, %v1256
    %v1271 = vmul.f32 %v1242, %v1260
    %v1272 = vmul.f32 %v1245, %v1264
    %v1277 = vcombine.low %v1269, %v1270
    %v1278 = vcombine.low %v1271, %v1272
    %v1280 = vunpack.c.l.s4 1966171168
    %v1281 = vunpack.c.0.s8 %v1280
    %v1282 = vlaneseq
    %v1283 = vshrl.u32 %v1282, 7
    %v1284 = vsub.s32 %v1281, %v1283
    %v1285 = vrot.slane %v1277, %v1284
    %v1287 = vunpack.c.l.s4 1966171168
    %v1288 = vunpack.c.0.s8 %v1287
    %v1289 = vlaneseq
    %v1290 = vshrl.u32 %v1289, 7
    %v1291 = vsub.s32 %v1288, %v1290
    %v1292 = vrot.slane %v1278, %v1291
    %v1293 = vcombine.low %v1285, %v1292
    %v1295 = vunpack.c.l.s4 1966171168
    %v1296 = vunpack.c.0.s8 %v1295
    %v1297 = vlaneseq
    %v1298 = vshrl.u32 %v1297, 7
    %v1299 = vsub.s32 %v1296, %v1298
    %v1300 = vrot.slane %v1293, %v1299
    %s1302 = scalar_lea.vmem [#allocation2], 65
    %1303 = vst.msk [vmem:[%s1302] ss:$8 sm:$0xf] %vm147, %v1300
    %1304 = vst.msk [vmem:[%s1302] ss:$8 sm:$0x0] %vm147, %v1300
    %s1305 = scalar_lea.vmem %s2, 66
    %v1306 = vld [vmem:[%s1305] ss:$8 sm:$0xf]
    %v1308 = vlaneseq
    %v1309 = vshrl.u32 %v1308, 7
    %v1310 = vsub.s32 0, %v1309
    %v1311 = vrot.slane %v1306, %v1310
    %v1312 = vlaneseq
    %v1313 = vshrl.u32 %v1312, 7
    %v1314 = vsub.s32 1, %v1313
    %v1315 = vrot.slane %v1306, %v1314
    %v1316 = vlaneseq
    %v1317 = vshrl.u32 %v1316, 7
    %v1318 = vsub.s32 2, %v1317
    %v1319 = vrot.slane %v1306, %v1318
    %v1320 = vlaneseq
    %v1321 = vshrl.u32 %v1320, 7
    %v1322 = vsub.s32 3, %v1321
    %v1323 = vrot.slane %v1306, %v1322
    %v1328 = vmul.f32 %v87, %v1311
    %v1329 = vmul.f32 %v86, %v1315
    %v1330 = vmul.f32 %v85, %v1319
    %v1331 = vmul.f32 %v88, %v1323
    %v1336 = vcombine.low %v1328, %v1329
    %v1337 = vcombine.low %v1330, %v1331
    %v1339 = vunpack.c.l.s4 1966171168
    %v1340 = vunpack.c.0.s8 %v1339
    %v1341 = vlaneseq
    %v1342 = vshrl.u32 %v1341, 7
    %v1343 = vsub.s32 %v1340, %v1342
    %v1344 = vrot.slane %v1336, %v1343
    %v1346 = vunpack.c.l.s4 1966171168
    %v1347 = vunpack.c.0.s8 %v1346
    %v1348 = vlaneseq
    %v1349 = vshrl.u32 %v1348, 7
    %v1350 = vsub.s32 %v1347, %v1349
    %v1351 = vrot.slane %v1337, %v1350
    %v1352 = vcombine.low %v1344, %v1351
    %v1354 = vunpack.c.l.s4 1966171168
    %v1355 = vunpack.c.0.s8 %v1354
    %v1356 = vlaneseq
    %v1357 = vshrl.u32 %v1356, 7
    %v1358 = vsub.s32 %v1355, %v1357
    %v1359 = vrot.slane %v1352, %v1358
    %s1361 = scalar_lea.vmem [#allocation2], 66
    %1362 = vst.msk [vmem:[%s1361] ss:$8 sm:$0xf] %vm147, %v1359
    %1363 = vst.msk [vmem:[%s1361] ss:$8 sm:$0x0] %vm147, %v1359
    %s1364 = scalar_lea.vmem %s2, 67
    %v1365 = vld [vmem:[%s1364] ss:$8 sm:$0xf]
    %v1367 = vlaneseq
    %v1368 = vshrl.u32 %v1367, 7
    %v1369 = vsub.s32 0, %v1368
    %v1370 = vrot.slane %v1365, %v1369
    %v1371 = vlaneseq
    %v1372 = vshrl.u32 %v1371, 7
    %v1373 = vsub.s32 1, %v1372
    %v1374 = vrot.slane %v1365, %v1373
    %v1375 = vlaneseq
    %v1376 = vshrl.u32 %v1375, 7
    %v1377 = vsub.s32 2, %v1376
    %v1378 = vrot.slane %v1365, %v1377
    %v1379 = vlaneseq
    %v1380 = vshrl.u32 %v1379, 7
    %v1381 = vsub.s32 3, %v1380
    %v1382 = vrot.slane %v1365, %v1381
    %v1387 = vmul.f32 %v161, %v1370
    %v1388 = vmul.f32 %v160, %v1374
    %v1389 = vmul.f32 %v159, %v1378
    %v1390 = vmul.f32 %v162, %v1382
    %v1395 = vcombine.low %v1387, %v1388
    %v1396 = vcombine.low %v1389, %v1390
    %v1398 = vunpack.c.l.s4 1966171168
    %v1399 = vunpack.c.0.s8 %v1398
    %v1400 = vlaneseq
    %v1401 = vshrl.u32 %v1400, 7
    %v1402 = vsub.s32 %v1399, %v1401
    %v1403 = vrot.slane %v1395, %v1402
    %v1405 = vunpack.c.l.s4 1966171168
    %v1406 = vunpack.c.0.s8 %v1405
    %v1407 = vlaneseq
    %v1408 = vshrl.u32 %v1407, 7
    %v1409 = vsub.s32 %v1406, %v1408
    %v1410 = vrot.slane %v1396, %v1409
    %v1411 = vcombine.low %v1403, %v1410
    %v1413 = vunpack.c.l.s4 1966171168
    %v1414 = vunpack.c.0.s8 %v1413
    %v1415 = vlaneseq
    %v1416 = vshrl.u32 %v1415, 7
    %v1417 = vsub.s32 %v1414, %v1416
    %v1418 = vrot.slane %v1411, %v1417
    %s1420 = scalar_lea.vmem [#allocation2], 67
    %1421 = vst.msk [vmem:[%s1420] ss:$8 sm:$0xf] %vm147, %v1418
    %1422 = vst.msk [vmem:[%s1420] ss:$8 sm:$0x0] %vm147, %v1418
    %s1423 = scalar_lea.vmem %s2, 68
    %v1424 = vld [vmem:[%s1423] ss:$8 sm:$0xf]
    %v1426 = vlaneseq
    %v1427 = vshrl.u32 %v1426, 7
    %v1428 = vsub.s32 0, %v1427
    %v1429 = vrot.slane %v1424, %v1428
    %v1430 = vlaneseq
    %v1431 = vshrl.u32 %v1430, 7
    %v1432 = vsub.s32 1, %v1431
    %v1433 = vrot.slane %v1424, %v1432
    %v1434 = vlaneseq
    %v1435 = vshrl.u32 %v1434, 7
    %v1436 = vsub.s32 2, %v1435
    %v1437 = vrot.slane %v1424, %v1436
    %v1438 = vlaneseq
    %v1439 = vshrl.u32 %v1438, 7
    %v1440 = vsub.s32 3, %v1439
    %v1441 = vrot.slane %v1424, %v1440
    %v1446 = vmul.f32 %v233, %v1429
    %v1447 = vmul.f32 %v232, %v1433
    %v1448 = vmul.f32 %v231, %v1437
    %v1449 = vmul.f32 %v234, %v1441
    %v1454 = vcombine.low %v1446, %v1447
    %v1455 = vcombine.low %v1448, %v1449
    %v1457 = vunpack.c.l.s4 1966171168
    %v1458 = vunpack.c.0.s8 %v1457
    %v1459 = vlaneseq
    %v1460 = vshrl.u32 %v1459, 7
    %v1461 = vsub.s32 %v1458, %v1460
    %v1462 = vrot.slane %v1454, %v1461
    %v1464 = vunpack.c.l.s4 1966171168
    %v1465 = vunpack.c.0.s8 %v1464
    %v1466 = vlaneseq
    %v1467 = vshrl.u32 %v1466, 7
    %v1468 = vsub.s32 %v1465, %v1467
    %v1469 = vrot.slane %v1455, %v1468
    %v1470 = vcombine.low %v1462, %v1469
    %v1472 = vunpack.c.l.s4 1966171168
    %v1473 = vunpack.c.0.s8 %v1472
    %v1474 = vlaneseq
    %v1475 = vshrl.u32 %v1474, 7
    %v1476 = vsub.s32 %v1473, %v1475
    %v1477 = vrot.slane %v1470, %v1476
    %s1479 = scalar_lea.vmem [#allocation2], 68
    %1480 = vst.msk [vmem:[%s1479] ss:$8 sm:$0xf] %vm147, %v1477
    %1481 = vst.msk [vmem:[%s1479] ss:$8 sm:$0x0] %vm147, %v1477
    %s1482 = scalar_lea.vmem %s2, 69
    %v1483 = vld [vmem:[%s1482] ss:$8 sm:$0xf]
    %v1485 = vlaneseq
    %v1486 = vshrl.u32 %v1485, 7
    %v1487 = vsub.s32 0, %v1486
    %v1488 = vrot.slane %v1483, %v1487
    %v1489 = vlaneseq
    %v1490 = vshrl.u32 %v1489, 7
    %v1491 = vsub.s32 1, %v1490
    %v1492 = vrot.slane %v1483, %v1491
    %v1493 = vlaneseq
    %v1494 = vshrl.u32 %v1493, 7
    %v1495 = vsub.s32 2, %v1494
    %v1496 = vrot.slane %v1483, %v1495
    %v1497 = vlaneseq
    %v1498 = vshrl.u32 %v1497, 7
    %v1499 = vsub.s32 3, %v1498
    %v1500 = vrot.slane %v1483, %v1499
    %v1505 = vmul.f32 %v305, %v1488
    %v1506 = vmul.f32 %v304, %v1492
    %v1507 = vmul.f32 %v303, %v1496
    %v1508 = vmul.f32 %v306, %v1500
    %v1513 = vcombine.low %v1505, %v1506
    %v1514 = vcombine.low %v1507, %v1508
    %v1516 = vunpack.c.l.s4 1966171168
    %v1517 = vunpack.c.0.s8 %v1516
    %v1518 = vlaneseq
    %v1519 = vshrl.u32 %v1518, 7
    %v1520 = vsub.s32 %v1517, %v1519
    %v1521 = vrot.slane %v1513, %v1520
    %v1523 = vunpack.c.l.s4 1966171168
    %v1524 = vunpack.c.0.s8 %v1523
    %v1525 = vlaneseq
    %v1526 = vshrl.u32 %v1525, 7
    %v1527 = vsub.s32 %v1524, %v1526
    %v1528 = vrot.slane %v1514, %v1527
    %v1529 = vcombine.low %v1521, %v1528
    %v1531 = vunpack.c.l.s4 1966171168
    %v1532 = vunpack.c.0.s8 %v1531
    %v1533 = vlaneseq
    %v1534 = vshrl.u32 %v1533, 7
    %v1535 = vsub.s32 %v1532, %v1534
    %v1536 = vrot.slane %v1529, %v1535
    %s1538 = scalar_lea.vmem [#allocation2], 69
    %1539 = vst.msk [vmem:[%s1538] ss:$8 sm:$0xf] %vm147, %v1536
    %1540 = vst.msk [vmem:[%s1538] ss:$8 sm:$0x0] %vm147, %v1536
    %s1541 = scalar_lea.vmem %s2, 70
    %v1542 = vld [vmem:[%s1541] ss:$8 sm:$0xf]
    %v1544 = vlaneseq
    %v1545 = vshrl.u32 %v1544, 7
    %v1546 = vsub.s32 0, %v1545
    %v1547 = vrot.slane %v1542, %v1546
    %v1548 = vlaneseq
    %v1549 = vshrl.u32 %v1548, 7
    %v1550 = vsub.s32 1, %v1549
    %v1551 = vrot.slane %v1542, %v1550
    %v1552 = vlaneseq
    %v1553 = vshrl.u32 %v1552, 7
    %v1554 = vsub.s32 2, %v1553
    %v1555 = vrot.slane %v1542, %v1554
    %v1556 = vlaneseq
    %v1557 = vshrl.u32 %v1556, 7
    %v1558 = vsub.s32 3, %v1557
    %v1559 = vrot.slane %v1542, %v1558
    %v1564 = vmul.f32 %v377, %v1547
    %v1565 = vmul.f32 %v376, %v1551
    %v1566 = vmul.f32 %v375, %v1555
    %v1567 = vmul.f32 %v378, %v1559
    %v1572 = vcombine.low %v1564, %v1565
    %v1573 = vcombine.low %v1566, %v1567
    %v1575 = vunpack.c.l.s4 1966171168
    %v1576 = vunpack.c.0.s8 %v1575
    %v1577 = vlaneseq
    %v1578 = vshrl.u32 %v1577, 7
    %v1579 = vsub.s32 %v1576, %v1578
    %v1580 = vrot.slane %v1572, %v1579
    %v1582 = vunpack.c.l.s4 1966171168
    %v1583 = vunpack.c.0.s8 %v1582
    %v1584 = vlaneseq
    %v1585 = vshrl.u32 %v1584, 7
    %v1586 = vsub.s32 %v1583, %v1585
    %v1587 = vrot.slane %v1573, %v1586
    %v1588 = vcombine.low %v1580, %v1587
    %v1590 = vunpack.c.l.s4 1966171168
    %v1591 = vunpack.c.0.s8 %v1590
    %v1592 = vlaneseq
    %v1593 = vshrl.u32 %v1592, 7
    %v1594 = vsub.s32 %v1591, %v1593
    %v1595 = vrot.slane %v1588, %v1594
    %s1597 = scalar_lea.vmem [#allocation2], 70
    %1598 = vst.msk [vmem:[%s1597] ss:$8 sm:$0xf] %vm147, %v1595
    %1599 = vst.msk [vmem:[%s1597] ss:$8 sm:$0x0] %vm147, %v1595
    %s1600 = scalar_lea.vmem %s2, 71
    %v1601 = vld [vmem:[%s1600] ss:$8 sm:$0xf]
    %v1603 = vlaneseq
    %v1604 = vshrl.u32 %v1603, 7
    %v1605 = vsub.s32 0, %v1604
    %v1606 = vrot.slane %v1601, %v1605
    %v1607 = vlaneseq
    %v1608 = vshrl.u32 %v1607, 7
    %v1609 = vsub.s32 1, %v1608
    %v1610 = vrot.slane %v1601, %v1609
    %v1611 = vlaneseq
    %v1612 = vshrl.u32 %v1611, 7
    %v1613 = vsub.s32 2, %v1612
    %v1614 = vrot.slane %v1601, %v1613
    %v1615 = vlaneseq
    %v1616 = vshrl.u32 %v1615, 7
    %v1617 = vsub.s32 3, %v1616
    %v1618 = vrot.slane %v1601, %v1617
    %v1623 = vmul.f32 %v449, %v1606
    %v1624 = vmul.f32 %v448, %v1610
    %v1625 = vmul.f32 %v447, %v1614
    %v1626 = vmul.f32 %v450, %v1618
    %v1631 = vcombine.low %v1623, %v1624
    %v1632 = vcombine.low %v1625, %v1626
    %v1634 = vunpack.c.l.s4 1966171168
    %v1635 = vunpack.c.0.s8 %v1634
    %v1636 = vlaneseq
    %v1637 = vshrl.u32 %v1636, 7
    %v1638 = vsub.s32 %v1635, %v1637
    %v1639 = vrot.slane %v1631, %v1638
    %v1641 = vunpack.c.l.s4 1966171168
    %v1642 = vunpack.c.0.s8 %v1641
    %v1643 = vlaneseq
    %v1644 = vshrl.u32 %v1643, 7
    %v1645 = vsub.s32 %v1642, %v1644
    %v1646 = vrot.slane %v1632, %v1645
    %v1647 = vcombine.low %v1639, %v1646
    %v1649 = vunpack.c.l.s4 1966171168
    %v1650 = vunpack.c.0.s8 %v1649
    %v1651 = vlaneseq
    %v1652 = vshrl.u32 %v1651, 7
    %v1653 = vsub.s32 %v1650, %v1652
    %v1654 = vrot.slane %v1647, %v1653
    %s1656 = scalar_lea.vmem [#allocation2], 71
    %1657 = vst.msk [vmem:[%s1656] ss:$8 sm:$0xf] %vm147, %v1654
    %1658 = vst.msk [vmem:[%s1656] ss:$8 sm:$0x0] %vm147, %v1654
    %s1659 = scalar_lea.vmem %s2, 96
    %v1660 = vld [vmem:[%s1659] ss:$8 sm:$0xf]
    %v1662 = vlaneseq
    %v1663 = vshrl.u32 %v1662, 7
    %v1664 = vsub.s32 0, %v1663
    %v1665 = vrot.slane %v1660, %v1664
    %v1666 = vlaneseq
    %v1667 = vshrl.u32 %v1666, 7
    %v1668 = vsub.s32 1, %v1667
    %v1669 = vrot.slane %v1660, %v1668
    %v1670 = vlaneseq
    %v1671 = vshrl.u32 %v1670, 7
    %v1672 = vsub.s32 2, %v1671
    %v1673 = vrot.slane %v1660, %v1672
    %v1674 = vlaneseq
    %v1675 = vshrl.u32 %v1674, 7
    %v1676 = vsub.s32 3, %v1675
    %v1677 = vrot.slane %v1660, %v1676
    %v1682 = vmul.f32 %v521, %v1665
    %v1683 = vmul.f32 %v520, %v1669
    %v1684 = vmul.f32 %v519, %v1673
    %v1685 = vmul.f32 %v522, %v1677
    %v1690 = vcombine.low %v1682, %v1683
    %v1691 = vcombine.low %v1684, %v1685
    %v1693 = vunpack.c.l.s4 1966171168
    %v1694 = vunpack.c.0.s8 %v1693
    %v1695 = vlaneseq
    %v1696 = vshrl.u32 %v1695, 7
    %v1697 = vsub.s32 %v1694, %v1696
    %v1698 = vrot.slane %v1690, %v1697
    %v1700 = vunpack.c.l.s4 1966171168
    %v1701 = vunpack.c.0.s8 %v1700
    %v1702 = vlaneseq
    %v1703 = vshrl.u32 %v1702, 7
    %v1704 = vsub.s32 %v1701, %v1703
    %v1705 = vrot.slane %v1691, %v1704
    %v1706 = vcombine.low %v1698, %v1705
    %v1708 = vunpack.c.l.s4 1966171168
    %v1709 = vunpack.c.0.s8 %v1708
    %v1710 = vlaneseq
    %v1711 = vshrl.u32 %v1710, 7
    %v1712 = vsub.s32 %v1709, %v1711
    %v1713 = vrot.slane %v1706, %v1712
    %s1715 = scalar_lea.vmem [#allocation2], 96
    %1716 = vst.msk [vmem:[%s1715] ss:$8 sm:$0xf] %vm147, %v1713
    %1717 = vst.msk [vmem:[%s1715] ss:$8 sm:$0x0] %vm147, %v1713
    %s1718 = scalar_lea.vmem %s2, 97
    %v1719 = vld [vmem:[%s1718] ss:$8 sm:$0xf]
    %v1721 = vlaneseq
    %v1722 = vshrl.u32 %v1721, 7
    %v1723 = vsub.s32 0, %v1722
    %v1724 = vrot.slane %v1719, %v1723
    %v1725 = vlaneseq
    %v1726 = vshrl.u32 %v1725, 7
    %v1727 = vsub.s32 1, %v1726
    %v1728 = vrot.slane %v1719, %v1727
    %v1729 = vlaneseq
    %v1730 = vshrl.u32 %v1729, 7
    %v1731 = vsub.s32 2, %v1730
    %v1732 = vrot.slane %v1719, %v1731
    %v1733 = vlaneseq
    %v1734 = vshrl.u32 %v1733, 7
    %v1735 = vsub.s32 3, %v1734
    %v1736 = vrot.slane %v1719, %v1735
    %v1741 = vmul.f32 %v593, %v1724
    %v1742 = vmul.f32 %v592, %v1728
    %v1743 = vmul.f32 %v591, %v1732
    %v1744 = vmul.f32 %v594, %v1736
    %v1749 = vcombine.low %v1741, %v1742
    %v1750 = vcombine.low %v1743, %v1744
    %v1752 = vunpack.c.l.s4 1966171168
    %v1753 = vunpack.c.0.s8 %v1752
    %v1754 = vlaneseq
    %v1755 = vshrl.u32 %v1754, 7
    %v1756 = vsub.s32 %v1753, %v1755
    %v1757 = vrot.slane %v1749, %v1756
    %v1759 = vunpack.c.l.s4 1966171168
    %v1760 = vunpack.c.0.s8 %v1759
    %v1761 = vlaneseq
    %v1762 = vshrl.u32 %v1761, 7
    %v1763 = vsub.s32 %v1760, %v1762
    %v1764 = vrot.slane %v1750, %v1763
    %v1765 = vcombine.low %v1757, %v1764
    %v1767 = vunpack.c.l.s4 1966171168
    %v1768 = vunpack.c.0.s8 %v1767
    %v1769 = vlaneseq
    %v1770 = vshrl.u32 %v1769, 7
    %v1771 = vsub.s32 %v1768, %v1770
    %v1772 = vrot.slane %v1765, %v1771
    %s1774 = scalar_lea.vmem [#allocation2], 97
    %1775 = vst.msk [vmem:[%s1774] ss:$8 sm:$0xf] %vm147, %v1772
    %1776 = vst.msk [vmem:[%s1774] ss:$8 sm:$0x0] %vm147, %v1772
    %s1777 = scalar_lea.vmem %s2, 98
    %v1778 = vld [vmem:[%s1777] ss:$8 sm:$0xf]
    %v1780 = vlaneseq
    %v1781 = vshrl.u32 %v1780, 7
    %v1782 = vsub.s32 0, %v1781
    %v1783 = vrot.slane %v1778, %v1782
    %v1784 = vlaneseq
    %v1785 = vshrl.u32 %v1784, 7
    %v1786 = vsub.s32 1, %v1785
    %v1787 = vrot.slane %v1778, %v1786
    %v1788 = vlaneseq
    %v1789 = vshrl.u32 %v1788, 7
    %v1790 = vsub.s32 2, %v1789
    %v1791 = vrot.slane %v1778, %v1790
    %v1792 = vlaneseq
    %v1793 = vshrl.u32 %v1792, 7
    %v1794 = vsub.s32 3, %v1793
    %v1795 = vrot.slane %v1778, %v1794
    %v1800 = vmul.f32 %v665, %v1783
    %v1801 = vmul.f32 %v664, %v1787
    %v1802 = vmul.f32 %v663, %v1791
    %v1803 = vmul.f32 %v666, %v1795
    %v1808 = vcombine.low %v1800, %v1801
    %v1809 = vcombine.low %v1802, %v1803
    %v1811 = vunpack.c.l.s4 1966171168
    %v1812 = vunpack.c.0.s8 %v1811
    %v1813 = vlaneseq
    %v1814 = vshrl.u32 %v1813, 7
    %v1815 = vsub.s32 %v1812, %v1814
    %v1816 = vrot.slane %v1808, %v1815
    %v1818 = vunpack.c.l.s4 1966171168
    %v1819 = vunpack.c.0.s8 %v1818
    %v1820 = vlaneseq
    %v1821 = vshrl.u32 %v1820, 7
    %v1822 = vsub.s32 %v1819, %v1821
    %v1823 = vrot.slane %v1809, %v1822
    %v1824 = vcombine.low %v1816, %v1823
    %v1826 = vunpack.c.l.s4 1966171168
    %v1827 = vunpack.c.0.s8 %v1826
    %v1828 = vlaneseq
    %v1829 = vshrl.u32 %v1828, 7
    %v1830 = vsub.s32 %v1827, %v1829
    %v1831 = vrot.slane %v1824, %v1830
    %s1833 = scalar_lea.vmem [#allocation2], 98
    %1834 = vst.msk [vmem:[%s1833] ss:$8 sm:$0xf] %vm147, %v1831
    %1835 = vst.msk [vmem:[%s1833] ss:$8 sm:$0x0] %vm147, %v1831
    %v1836 = vld [vmem:[%s3] sm:$0xff]
    %v1837 = vld [vmem:[#allocation2] sm:$0xff]
    %v1838 = vld [vmem:[#allocation2 + $0x8] sm:$0xff]
    %v1839 = vld [vmem:[#allocation2 + $0x10] sm:$0xff]
    %v1840 = vld [vmem:[#allocation2 + $0x18] sm:$0xff]
    %v1841 = vld [vmem:[#allocation2 + $0x20] sm:$0xff]
    %v1842 = vld [vmem:[#allocation2 + $0x28] sm:$0xff]
    %v1843 = vld [vmem:[#allocation2 + $0x30] sm:$0xff]
    %v1844 = vld [vmem:[#allocation2 + $0x38] sm:$0xff]
    %v1845 = vld [vmem:[#allocation2 + $0x40] sm:$0xff]
    %v1846 = vld [vmem:[#allocation2 + $0x48] sm:$0xff]
    %v1847 = vld [vmem:[#allocation2 + $0x50] sm:$0xff]
    %v1848 = vld [vmem:[#allocation2 + $0x58] sm:$0xff]
    %v1849 = vld [vmem:[#allocation2 + $0x60] sm:$0x7]
    %v1850 = vld [vmem:[#allocation2 + $0x68] sm:$0x7]
    %v1851 = vld [vmem:[#allocation2 + $0x70] sm:$0x7]
    %v1852 = vld [vmem:[#allocation2 + $0x78] sm:$0x7]
    %vm1853 = vcmask 220160
    %v1855 = vsel %vm1853, %v1836, 0
    %vm1857 = vcmask 1042432
    %v1859 = vsel %vm1857, %v1849, 0
    %v1862 = vsel %vm1857, %v1850, 0
    %v1865 = vsel %vm1857, %v1851, 0
    %v1868 = vsel %vm1857, %v1852, 0
    %1870 = vmatprep.subr.mxu0 0.0
    %1871 = vmatpush1.msra.mxu0 0.0
    %1872 = vmatprep.subr.mxu0 0.0
    %1873 = vmatpush1.msra.mxu0 0.0
    %1874 = vmatprep.subr.mxu0 0.0
    %1875 = vmatpush1.msra.mxu0 0.0
    %1876 = vmatprep.subr.mxu0 0.0
    %1877 = vmatpush1.msra.mxu0 0.0
    %1878 = vmatprep.subr.mxu0 0.0
    %1879 = vmatpush1.msra.mxu0 0.0
    %1880 = vmatprep.subr.mxu0 0.0
    %1881 = vmatpush1.msra.mxu0 0.0
    %1882 = vmatprep.subr.mxu0 0.0
    %1883 = vmatpush1.msra.mxu0 0.0
    %1884 = vmatprep.subr.mxu0 0.0
    %1885 = vmatpush1.msra.mxu0 0.0
    %1886 = vmatprep.subr.mxu0 0.0
    %1887 = vmatpush1.msra.mxu0 0.0
    %1888 = vmatprep.subr.mxu0 0.0
    %1889 = vmatpush1.msra.mxu0 0.0
    %1890 = vmatprep.subr.mxu0 0.0
    %1891 = vmatpush1.msra.mxu0 0.0
    %1892 = vmatprep.subr.mxu0 0.0
    %1893 = vmatpush1.msra.mxu0 0.0
    %1894 = vmatprep.subr.mxu0 %v1862
    %1895 = vmatpush1.msra.mxu0 %v1859
    %1896 = vmatprep.subr.mxu0 %v1846
    %1897 = vmatpush1.msra.mxu0 %v1845
    %1898 = vmatprep.subr.mxu0 %v1842
    %1899 = vmatpush1.msra.mxu0 %v1841
    %1900 = vmatprep.subr.mxu0 %v1838
    %1901 = vmatpush1.msra.mxu0 %v1837
    %1902 = vmatprep.subr.mxu0 0.0
    %1903 = vmatpush2.msra.mxu0 0.0
    %1904 = vmatprep.subr.mxu0 0.0
    %1905 = vmatpush2.msra.mxu0 0.0
    %1906 = vmatprep.subr.mxu0 0.0
    %1907 = vmatpush2.msra.mxu0 0.0
    %1908 = vmatprep.subr.mxu0 0.0
    %1909 = vmatpush2.msra.mxu0 0.0
    %1910 = vmatprep.subr.mxu0 0.0
    %1911 = vmatpush2.msra.mxu0 0.0
    %1912 = vmatprep.subr.mxu0 0.0
    %1913 = vmatpush2.msra.mxu0 0.0
    %1914 = vmatprep.subr.mxu0 0.0
    %1915 = vmatpush2.msra.mxu0 0.0
    %1916 = vmatprep.subr.mxu0 0.0
    %1917 = vmatpush2.msra.mxu0 0.0
    %1918 = vmatprep.subr.mxu0 0.0
    %1919 = vmatpush2.msra.mxu0 0.0
    %1920 = vmatprep.subr.mxu0 0.0
    %1921 = vmatpush2.msra.mxu0 0.0
    %1922 = vmatprep.subr.mxu0 0.0
    %1923 = vmatpush2.msra.mxu0 0.0
    %1924 = vmatprep.subr.mxu0 0.0
    %1925 = vmatpush2.msra.mxu0 0.0
    %1926 = vmatprep.subr.mxu0 0.0
    %1927 = vmatpush2.msra.mxu0 0.0
    %1928 = vmatprep.subr.mxu0 0.0
    %1929 = vmatpush2.msra.mxu0 0.0
    %1930 = vmatprep.subr.mxu0 0.0
    %1931 = vmatpush2.msra.mxu0 0.0
    %1932 = vmatprep.subr.mxu0 0.0
    %1933 = vmatpush2.msra.mxu0 0.0
    %1934 = vmatprep.mubr.f32.mxu0 0.0
    %1935 = vmatmul.mubr.f32.gmra.mxu0 %v1855
    %v1936 = vpop.f32.mrf.mxu0
    %v1937 = vadd.f32 0.0, %v1936
    %v1938 = vpop.f32.mrf.mxu0
    %v1939 = vadd.f32 0.0, %v1938
    %1940 = vdwg.mxu0
    %1941 = vmatprep.subr.mxu0 0.0
    %1942 = vmatpush1.msra.mxu0 0.0
    %1943 = vmatprep.subr.mxu0 0.0
    %1944 = vmatpush1.msra.mxu0 0.0
    %1945 = vmatprep.subr.mxu0 0.0
    %1946 = vmatpush1.msra.mxu0 0.0
    %1947 = vmatprep.subr.mxu0 0.0
    %1948 = vmatpush1.msra.mxu0 0.0
    %1949 = vmatprep.subr.mxu0 0.0
    %1950 = vmatpush1.msra.mxu0 0.0
    %1951 = vmatprep.subr.mxu0 0.0
    %1952 = vmatpush1.msra.mxu0 0.0
    %1953 = vmatprep.subr.mxu0 0.0
    %1954 = vmatpush1.msra.mxu0 0.0
    %1955 = vmatprep.subr.mxu0 0.0
    %1956 = vmatpush1.msra.mxu0 0.0
    %1957 = vmatprep.subr.mxu0 0.0
    %1958 = vmatpush1.msra.mxu0 0.0
    %1959 = vmatprep.subr.mxu0 0.0
    %1960 = vmatpush1.msra.mxu0 0.0
    %1961 = vmatprep.subr.mxu0 0.0
    %1962 = vmatpush1.msra.mxu0 0.0
    %1963 = vmatprep.subr.mxu0 0.0
    %1964 = vmatpush1.msra.mxu0 0.0
    %1965 = vmatprep.subr.mxu0 %v1868
    %1966 = vmatpush1.msra.mxu0 %v1865
    %1967 = vmatprep.subr.mxu0 %v1848
    %1968 = vmatpush1.msra.mxu0 %v1847
    %1969 = vmatprep.subr.mxu0 %v1844
    %1970 = vmatpush1.msra.mxu0 %v1843
    %1971 = vmatprep.subr.mxu0 %v1840
    %1972 = vmatpush1.msra.mxu0 %v1839
    %1973 = vmatprep.subr.mxu0 0.0
    %1974 = vmatpush2.msra.mxu0 0.0
    %1975 = vmatprep.subr.mxu0 0.0
    %1976 = vmatpush2.msra.mxu0 0.0
    %1977 = vmatprep.subr.mxu0 0.0
    %1978 = vmatpush2.msra.mxu0 0.0
    %1979 = vmatprep.subr.mxu0 0.0
    %1980 = vmatpush2.msra.mxu0 0.0
    %1981 = vmatprep.subr.mxu0 0.0
    %1982 = vmatpush2.msra.mxu0 0.0
    %1983 = vmatprep.subr.mxu0 0.0
    %1984 = vmatpush2.msra.mxu0 0.0
    %1985 = vmatprep.subr.mxu0 0.0
    %1986 = vmatpush2.msra.mxu0 0.0
    %1987 = vmatprep.subr.mxu0 0.0
    %1988 = vmatpush2.msra.mxu0 0.0
    %1989 = vmatprep.subr.mxu0 0.0
    %1990 = vmatpush2.msra.mxu0 0.0
    %1991 = vmatprep.subr.mxu0 0.0
    %1992 = vmatpush2.msra.mxu0 0.0
    %1993 = vmatprep.subr.mxu0 0.0
    %1994 = vmatpush2.msra.mxu0 0.0
    %1995 = vmatprep.subr.mxu0 0.0
    %1996 = vmatpush2.msra.mxu0 0.0
    %1997 = vmatprep.subr.mxu0 0.0
    %1998 = vmatpush2.msra.mxu0 0.0
    %1999 = vmatprep.subr.mxu0 0.0
    %2000 = vmatpush2.msra.mxu0 0.0
    %2001 = vmatprep.subr.mxu0 0.0
    %2002 = vmatpush2.msra.mxu0 0.0
    %2003 = vmatprep.subr.mxu0 0.0
    %2004 = vmatpush2.msra.mxu0 0.0
    %2005 = vmatprep.mubr.f32.mxu0 0.0
    %2006 = vmatmul.mubr.f32.gmra.mxu0 %v1855
    %v2007 = vpop.f32.mrf.mxu0
    %v2008 = vadd.f32 0.0, %v2007
    %v2009 = vpop.f32.mrf.mxu0
    %v2010 = vadd.f32 0.0, %v2009
    %2011 = vdwg.mxu0
    %v2012 = vadd.f32 %v1937, %v1939
    %v2013 = vadd.f32 %v2012, %v2008
    %v2014 = vadd.f32 %v2013, %v2010
    %2015 = vadd.xlane.f32.xlu0 %v2014
    %v2016 = vpop.xlane.xlu0 %2015
    %v2017 = vmul.f32 %v2016, 0.001953125
    %v2018 = vmul.f32 %v1937, %v1937
    %v2019 = vmul.f32 %v1939, %v1939
    %v2020 = vmul.f32 %v2008, %v2008
    %v2021 = vmul.f32 %v2010, %v2010
    %v2022 = vadd.f32 %v2018, %v2019
    %v2023 = vadd.f32 %v2022, %v2020
    %v2024 = vadd.f32 %v2023, %v2021
    %2025 = vadd.xlane.f32.xlu0 %v2024
    %v2026 = vpop.xlane.xlu0 %2025
    %v2027 = vmul.f32 %v2026, 0.001953125
    %v2028 = vmul.f32 %v2017, %v2017
    %v2029 = vsub.f32 %v2027, %v2028
    %v2030 = vsub.f32 %v1937, %v2017
    %v2031 = vsub.f32 %v1939, %v2017
    %v2032 = vsub.f32 %v2008, %v2017
    %v2033 = vsub.f32 %v2010, %v2017
    %v2034 = vadd.f32 %v2029, 1e-05
    %v2035 = vrsqrt.pop %v2034
    %v2036 = vmul.f32 %v2030, %v2035
    %v2037 = vmul.f32 %v2031, %v2035
    %v2038 = vmul.f32 %v2032, %v2035
    %v2039 = vmul.f32 %v2033, %v2035
    %v2040 = vld [vmem:[%s4] sm:$0xff]
    %2042 = vset.pattern.permute.xlu0 0
    %2043 = vperm.xlu0 %2042, %v2040
    %v2044 = vpop.permute.xlu0 %2043
    %v2046 = vmul.f32 %v2036, %v2044
    %v2047 = vmul.f32 %v2037, %v2044
    %v2048 = vmul.f32 %v2038, %v2044
    %v2049 = vmul.f32 %v2039, %v2044
    %v2050 = vld [vmem:[%s5] sm:$0xff]
    %2052 = vset.pattern.permute.xlu0 0
    %2053 = vperm.xlu0 %2052, %v2050
    %v2054 = vpop.permute.xlu0 %2053
    %v2056 = vadd.f32 %v2046, %v2054
    %v2057 = vadd.f32 %v2047, %v2054
    %v2058 = vadd.f32 %v2048, %v2054
    %v2059 = vadd.f32 %v2049, %v2054
    %v2060 = vmul.f32 %v2056, 0.01
    %v2061 = vmul.f32 %v2057, 0.01
    %v2062 = vmul.f32 %v2058, 0.01
    %v2063 = vmul.f32 %v2059, 0.01
    %v2064 = vmax.f32 %v2056, %v2060
    %v2065 = vmax.f32 %v2057, %v2061
    %v2066 = vmax.f32 %v2058, %v2062
    %v2067 = vmax.f32 %v2059, %v2063
    %2068 = vrot.lane.b32.xlu0 %v2064, 73
    %v2069 = vpop.permute.xlu0 %2068
    %2070 = vrot.lane.b32.xlu0 %v2065, 73
    %v2071 = vpop.permute.xlu0 %2070
    %2072 = vrot.lane.b32.xlu0 %v2066, 73
    %v2073 = vpop.permute.xlu0 %2072
    %2074 = vrot.lane.b32.xlu0 %v2067, 73
    %v2075 = vpop.permute.xlu0 %2074
    %v2076 = vsel %vm84, %v2073, %v2075
    %v2077 = vsel %vm84, %v2071, %v2073
    %v2078 = vsel %vm84, %v2069, %v2071
    %v2079 = vsel %vm84, %v2075, %v2069
    %v2080 = vld [vmem:[%s2] ss:$8 sm:$0xf]
    %v2082 = vlaneseq
    %v2083 = vshrl.u32 %v2082, 7
    %v2084 = vsub.s32 0, %v2083
    %v2085 = vrot.slane %v2080, %v2084
    %v2086 = vlaneseq
    %v2087 = vshrl.u32 %v2086, 7
    %v2088 = vsub.s32 1, %v2087
    %v2089 = vrot.slane %v2080, %v2088
    %v2090 = vlaneseq
    %v2091 = vshrl.u32 %v2090, 7
    %v2092 = vsub.s32 2, %v2091
    %v2093 = vrot.slane %v2080, %v2092
    %v2094 = vlaneseq
    %v2095 = vshrl.u32 %v2094, 7
    %v2096 = vsub.s32 3, %v2095
    %v2097 = vrot.slane %v2080, %v2096
    %v2102 = vmul.f32 %v2079, %v2085
    %v2103 = vmul.f32 %v2078, %v2089
    %v2104 = vmul.f32 %v2077, %v2093
    %v2105 = vmul.f32 %v2076, %v2097
    %v2106 = vpack.c.bf16 %v2102, %v2102
    %v2107 = vpack.c.bf16 %v2103, %v2103
    %v2108 = vpack.c.bf16 %v2104, %v2104
    %v2109 = vpack.c.bf16 %v2105, %v2105
    %v2114 = vunpack.c.l.b16 %v2106
    %v2115 = vunpack.c.l.b16 %v2107
    %v2116 = vunpack.c.l.b16 %v2108
    %v2117 = vunpack.c.l.b16 %v2109
    %v2118 = vpack.c.b16 %v2115, %v2114
    %v2119 = vpack.c.b16 %v2117, %v2116
    %2122 = vst [vmem:[#allocation3] sm:$0xff] %v2118
    %2123 = vst [vmem:[#allocation3 + $0x8] sm:$0xff] %v2119
    %2124 = vrot.lane.b32.xlu0 %v2064, 72
    %v2125 = vpop.permute.xlu0 %2124
    %2126 = vrot.lane.b32.xlu0 %v2065, 72
    %v2127 = vpop.permute.xlu0 %2126
    %2128 = vrot.lane.b32.xlu0 %v2066, 72
    %v2129 = vpop.permute.xlu0 %2128
    %2130 = vrot.lane.b32.xlu0 %v2067, 72
    %v2131 = vpop.permute.xlu0 %2130
    %v2132 = vsel %vm158, %v2129, %v2131
    %v2133 = vsel %vm158, %v2127, %v2129
    %v2134 = vsel %vm158, %v2125, %v2127
    %v2135 = vsel %vm158, %v2131, %v2125
    %v2136 = vld [vmem:[%s163] ss:$8 sm:$0xf]
    %v2138 = vlaneseq
    %v2139 = vshrl.u32 %v2138, 7
    %v2140 = vsub.s32 0, %v2139
    %v2141 = vrot.slane %v2136, %v2140
    %v2142 = vlaneseq
    %v2143 = vshrl.u32 %v2142, 7
    %v2144 = vsub.s32 1, %v2143
    %v2145 = vrot.slane %v2136, %v2144
    %v2146 = vlaneseq
    %v2147 = vshrl.u32 %v2146, 7
    %v2148 = vsub.s32 2, %v2147
    %v2149 = vrot.slane %v2136, %v2148
    %v2150 = vlaneseq
    %v2151 = vshrl.u32 %v2150, 7
    %v2152 = vsub.s32 3, %v2151
    %v2153 = vrot.slane %v2136, %v2152
    %v2158 = vmul.f32 %v2135, %v2141
    %v2159 = vmul.f32 %v2134, %v2145
    %v2160 = vmul.f32 %v2133, %v2149
    %v2161 = vmul.f32 %v2132, %v2153
    %v2162 = vpack.c.bf16 %v2158, %v2158
    %v2163 = vpack.c.bf16 %v2159, %v2159
    %v2164 = vpack.c.bf16 %v2160, %v2160
    %v2165 = vpack.c.bf16 %v2161, %v2161
    %v2170 = vunpack.c.l.b16 %v2162
    %v2171 = vunpack.c.l.b16 %v2163
    %v2172 = vunpack.c.l.b16 %v2164
    %v2173 = vunpack.c.l.b16 %v2165
    %v2174 = vpack.c.b16 %v2171, %v2170
    %v2175 = vpack.c.b16 %v2173, %v2172
    %2178 = vst [vmem:[#allocation3 + $0x10] sm:$0xff] %v2174
    %2179 = vst [vmem:[#allocation3 + $0x18] sm:$0xff] %v2175
    %2180 = vrot.lane.b32.xlu0 %v2064, 71
    %v2181 = vpop.permute.xlu0 %2180
    %2182 = vrot.lane.b32.xlu0 %v2065, 71
    %v2183 = vpop.permute.xlu0 %2182
    %2184 = vrot.lane.b32.xlu0 %v2066, 71
    %v2185 = vpop.permute.xlu0 %2184
    %2186 = vrot.lane.b32.xlu0 %v2067, 71
    %v2187 = vpop.permute.xlu0 %2186
    %v2188 = vsel %vm230, %v2185, %v2187
    %v2189 = vsel %vm230, %v2183, %v2185
    %v2190 = vsel %vm230, %v2181, %v2183
    %v2191 = vsel %vm230, %v2187, %v2181
    %v2192 = vld [vmem:[%s235] ss:$8 sm:$0xf]
    %v2194 = vlaneseq
    %v2195 = vshrl.u32 %v2194, 7
    %v2196 = vsub.s32 0, %v2195
    %v2197 = vrot.slane %v2192, %v2196
    %v2198 = vlaneseq
    %v2199 = vshrl.u32 %v2198, 7
    %v2200 = vsub.s32 1, %v2199
    %v2201 = vrot.slane %v2192, %v2200
    %v2202 = vlaneseq
    %v2203 = vshrl.u32 %v2202, 7
    %v2204 = vsub.s32 2, %v2203
    %v2205 = vrot.slane %v2192, %v2204
    %v2206 = vlaneseq
    %v2207 = vshrl.u32 %v2206, 7
    %v2208 = vsub.s32 3, %v2207
    %v2209 = vrot.slane %v2192, %v2208
    %v2214 = vmul.f32 %v2191, %v2197
    %v2215 = vmul.f32 %v2190, %v2201
    %v2216 = vmul.f32 %v2189, %v2205
    %v2217 = vmul.f32 %v2188, %v2209
    %v2218 = vpack.c.bf16 %v2214, %v2214
    %v2219 = vpack.c.bf16 %v2215, %v2215
    %v2220 = vpack.c.bf16 %v2216, %v2216
    %v2221 = vpack.c.bf16 %v2217, %v2217
    %v2226 = vunpack.c.l.b16 %v2218
    %v2227 = vunpack.c.l.b16 %v2219
    %v2228 = vunpack.c.l.b16 %v2220
    %v2229 = vunpack.c.l.b16 %v2221
    %v2230 = vpack.c.b16 %v2227, %v2226
    %v2231 = vpack.c.b16 %v2229, %v2228
    %2234 = vst [vmem:[#allocation3 + $0x20] sm:$0xff] %v2230
    %2235 = vst [vmem:[#allocation3 + $0x28] sm:$0xff] %v2231
    %2236 = vrot.lane.b32.xlu0 %v2064, 65
    %v2237 = vpop.permute.xlu0 %2236
    %2238 = vrot.lane.b32.xlu0 %v2065, 65
    %v2239 = vpop.permute.xlu0 %2238
    %2240 = vrot.lane.b32.xlu0 %v2066, 65
    %v2241 = vpop.permute.xlu0 %2240
    %2242 = vrot.lane.b32.xlu0 %v2067, 65
    %v2243 = vpop.permute.xlu0 %2242
    %v2244 = vsel %vm302, %v2241, %v2243
    %v2245 = vsel %vm302, %v2239, %v2241
    %v2246 = vsel %vm302, %v2237, %v2239
    %v2247 = vsel %vm302, %v2243, %v2237
    %v2248 = vld [vmem:[%s307] ss:$8 sm:$0xf]
    %v2250 = vlaneseq
    %v2251 = vshrl.u32 %v2250, 7
    %v2252 = vsub.s32 0, %v2251
    %v2253 = vrot.slane %v2248, %v2252
    %v2254 = vlaneseq
    %v2255 = vshrl.u32 %v2254, 7
    %v2256 = vsub.s32 1, %v2255
    %v2257 = vrot.slane %v2248, %v2256
    %v2258 = vlaneseq
    %v2259 = vshrl.u32 %v2258, 7
    %v2260 = vsub.s32 2, %v2259
    %v2261 = vrot.slane %v2248, %v2260
    %v2262 = vlaneseq
    %v2263 = vshrl.u32 %v2262, 7
    %v2264 = vsub.s32 3, %v2263
    %v2265 = vrot.slane %v2248, %v2264
    %v2270 = vmul.f32 %v2247, %v2253
    %v2271 = vmul.f32 %v2246, %v2257
    %v2272 = vmul.f32 %v2245, %v2261
    %v2273 = vmul.f32 %v2244, %v2265
    %v2274 = vpack.c.bf16 %v2270, %v2270
    %v2275 = vpack.c.bf16 %v2271, %v2271
    %v2276 = vpack.c.bf16 %v2272, %v2272
    %v2277 = vpack.c.bf16 %v2273, %v2273
    %v2282 = vunpack.c.l.b16 %v2274
    %v2283 = vunpack.c.l.b16 %v2275
    %v2284 = vunpack.c.l.b16 %v2276
    %v2285 = vunpack.c.l.b16 %v2277
    %v2286 = vpack.c.b16 %v2283, %v2282
    %v2287 = vpack.c.b16 %v2285, %v2284
    %2290 = vst [vmem:[#allocation3 + $0x30] sm:$0xff] %v2286
    %2291 = vst [vmem:[#allocation3 + $0x38] sm:$0xff] %v2287
    %2292 = vrot.lane.b32.xlu0 %v2064, 64
    %v2293 = vpop.permute.xlu0 %2292
    %2294 = vrot.lane.b32.xlu0 %v2065, 64
    %v2295 = vpop.permute.xlu0 %2294
    %2296 = vrot.lane.b32.xlu0 %v2066, 64
    %v2297 = vpop.permute.xlu0 %2296
    %2298 = vrot.lane.b32.xlu0 %v2067, 64
    %v2299 = vpop.permute.xlu0 %2298
    %v2300 = vsel %vm374, %v2297, %v2299
    %v2301 = vsel %vm374, %v2295, %v2297
    %v2302 = vsel %vm374, %v2293, %v2295
    %v2303 = vsel %vm374, %v2299, %v2293
    %v2304 = vld [vmem:[%s379] ss:$8 sm:$0xf]
    %v2306 = vlaneseq
    %v2307 = vshrl.u32 %v2306, 7
    %v2308 = vsub.s32 0, %v2307
    %v2309 = vrot.slane %v2304, %v2308
    %v2310 = vlaneseq
    %v2311 = vshrl.u32 %v2310, 7
    %v2312 = vsub.s32 1, %v2311
    %v2313 = vrot.slane %v2304, %v2312
    %v2314 = vlaneseq
    %v2315 = vshrl.u32 %v2314, 7
    %v2316 = vsub.s32 2, %v2315
    %v2317 = vrot.slane %v2304, %v2316
    %v2318 = vlaneseq
    %v2319 = vshrl.u32 %v2318, 7
    %v2320 = vsub.s32 3, %v2319
    %v2321 = vrot.slane %v2304, %v2320
    %v2326 = vmul.f32 %v2303, %v2309
    %v2327 = vmul.f32 %v2302, %v2313
    %v2328 = vmul.f32 %v2301, %v2317
    %v2329 = vmul.f32 %v2300, %v2321
    %v2330 = vpack.c.bf16 %v2326, %v2326
    %v2331 = vpack.c.bf16 %v2327, %v2327
    %v2332 = vpack.c.bf16 %v2328, %v2328
    %v2333 = vpack.c.bf16 %v2329, %v2329
    %v2338 = vunpack.c.l.b16 %v2330
    %v2339 = vunpack.c.l.b16 %v2331
    %v2340 = vunpack.c.l.b16 %v2332
    %v2341 = vunpack.c.l.b16 %v2333
    %v2342 = vpack.c.b16 %v2339, %v2338
    %v2343 = vpack.c.b16 %v2341, %v2340
    %2346 = vst [vmem:[#allocation3 + $0x40] sm:$0xff] %v2342
    %2347 = vst [vmem:[#allocation3 + $0x48] sm:$0xff] %v2343
    %2348 = vrot.lane.b32.xlu0 %v2064, 63
    %v2349 = vpop.permute.xlu0 %2348
    %2350 = vrot.lane.b32.xlu0 %v2065, 63
    %v2351 = vpop.permute.xlu0 %2350
    %2352 = vrot.lane.b32.xlu0 %v2066, 63
    %v2353 = vpop.permute.xlu0 %2352
    %2354 = vrot.lane.b32.xlu0 %v2067, 63
    %v2355 = vpop.permute.xlu0 %2354
    %v2356 = vsel %vm446, %v2353, %v2355
    %v2357 = vsel %vm446, %v2351, %v2353
    %v2358 = vsel %vm446, %v2349, %v2351
    %v2359 = vsel %vm446, %v2355, %v2349
    %v2360 = vld [vmem:[%s451] ss:$8 sm:$0xf]
    %v2362 = vlaneseq
    %v2363 = vshrl.u32 %v2362, 7
    %v2364 = vsub.s32 0, %v2363
    %v2365 = vrot.slane %v2360, %v2364
    %v2366 = vlaneseq
    %v2367 = vshrl.u32 %v2366, 7
    %v2368 = vsub.s32 1, %v2367
    %v2369 = vrot.slane %v2360, %v2368
    %v2370 = vlaneseq
    %v2371 = vshrl.u32 %v2370, 7
    %v2372 = vsub.s32 2, %v2371
    %v2373 = vrot.slane %v2360, %v2372
    %v2374 = vlaneseq
    %v2375 = vshrl.u32 %v2374, 7
    %v2376 = vsub.s32 3, %v2375
    %v2377 = vrot.slane %v2360, %v2376
    %v2382 = vmul.f32 %v2359, %v2365
    %v2383 = vmul.f32 %v2358, %v2369
    %v2384 = vmul.f32 %v2357, %v2373
    %v2385 = vmul.f32 %v2356, %v2377
    %v2386 = vpack.c.bf16 %v2382, %v2382
    %v2387 = vpack.c.bf16 %v2383, %v2383
    %v2388 = vpack.c.bf16 %v2384, %v2384
    %v2389 = vpack.c.bf16 %v2385, %v2385
    %v2394 = vunpack.c.l.b16 %v2386
    %v2395 = vunpack.c.l.b16 %v2387
    %v2396 = vunpack.c.l.b16 %v2388
    %v2397 = vunpack.c.l.b16 %v2389
    %v2398 = vpack.c.b16 %v2395, %v2394
    %v2399 = vpack.c.b16 %v2397, %v2396
    %2402 = vst [vmem:[#allocation3 + $0x50] sm:$0xff] %v2398
    %2403 = vst [vmem:[#allocation3 + $0x58] sm:$0xff] %v2399
    %2404 = vrot.lane.b32.xlu0 %v2064, 57
    %v2405 = vpop.permute.xlu0 %2404
    %2406 = vrot.lane.b32.xlu0 %v2065, 57
    %v2407 = vpop.permute.xlu0 %2406
    %2408 = vrot.lane.b32.xlu0 %v2066, 57
    %v2409 = vpop.permute.xlu0 %2408
    %2410 = vrot.lane.b32.xlu0 %v2067, 57
    %v2411 = vpop.permute.xlu0 %2410
    %v2412 = vsel %vm518, %v2409, %v2411
    %v2413 = vsel %vm518, %v2407, %v2409
    %v2414 = vsel %vm518, %v2405, %v2407
    %v2415 = vsel %vm518, %v2411, %v2405
    %v2416 = vld [vmem:[%s523] ss:$8 sm:$0xf]
    %v2418 = vlaneseq
    %v2419 = vshrl.u32 %v2418, 7
    %v2420 = vsub.s32 0, %v2419
    %v2421 = vrot.slane %v2416, %v2420
    %v2422 = vlaneseq
    %v2423 = vshrl.u32 %v2422, 7
    %v2424 = vsub.s32 1, %v2423
    %v2425 = vrot.slane %v2416, %v2424
    %v2426 = vlaneseq
    %v2427 = vshrl.u32 %v2426, 7
    %v2428 = vsub.s32 2, %v2427
    %v2429 = vrot.slane %v2416, %v2428
    %v2430 = vlaneseq
    %v2431 = vshrl.u32 %v2430, 7
    %v2432 = vsub.s32 3, %v2431
    %v2433 = vrot.slane %v2416, %v2432
    %v2438 = vmul.f32 %v2415, %v2421
    %v2439 = vmul.f32 %v2414, %v2425
    %v2440 = vmul.f32 %v2413, %v2429
    %v2441 = vmul.f32 %v2412, %v2433
    %v2442 = vpack.c.bf16 %v2438, %v2438
    %v2443 = vpack.c.bf16 %v2439, %v2439
    %v2444 = vpack.c.bf16 %v2440, %v2440
    %v2445 = vpack.c.bf16 %v2441, %v2441
    %v2450 = vunpack.c.l.b16 %v2442
    %v2451 = vunpack.c.l.b16 %v2443
    %v2452 = vunpack.c.l.b16 %v2444
    %v2453 = vunpack.c.l.b16 %v2445
    %v2454 = vpack.c.b16 %v2451, %v2450
    %v2455 = vpack.c.b16 %v2453, %v2452
    %2458 = vst [vmem:[#allocation3 + $0x60] sm:$0xff] %v2454
    %2459 = vst [vmem:[#allocation3 + $0x68] sm:$0xff] %v2455
    %2460 = vrot.lane.b32.xlu0 %v2064, 56
    %v2461 = vpop.permute.xlu0 %2460
    %2462 = vrot.lane.b32.xlu0 %v2065, 56
    %v2463 = vpop.permute.xlu0 %2462
    %2464 = vrot.lane.b32.xlu0 %v2066, 56
    %v2465 = vpop.permute.xlu0 %2464
    %2466 = vrot.lane.b32.xlu0 %v2067, 56
    %v2467 = vpop.permute.xlu0 %2466
    %v2468 = vsel %vm590, %v2465, %v2467
    %v2469 = vsel %vm590, %v2463, %v2465
    %v2470 = vsel %vm590, %v2461, %v2463
    %v2471 = vsel %vm590, %v2467, %v2461
    %v2472 = vld [vmem:[%s595] ss:$8 sm:$0xf]
    %v2474 = vlaneseq
    %v2475 = vshrl.u32 %v2474, 7
    %v2476 = vsub.s32 0, %v2475
    %v2477 = vrot.slane %v2472, %v2476
    %v2478 = vlaneseq
    %v2479 = vshrl.u32 %v2478, 7
    %v2480 = vsub.s32 1, %v2479
    %v2481 = vrot.slane %v2472, %v2480
    %v2482 = vlaneseq
    %v2483 = vshrl.u32 %v2482, 7
    %v2484 = vsub.s32 2, %v2483
    %v2485 = vrot.slane %v2472, %v2484
    %v2486 = vlaneseq
    %v2487 = vshrl.u32 %v2486, 7
    %v2488 = vsub.s32 3, %v2487
    %v2489 = vrot.slane %v2472, %v2488
    %v2494 = vmul.f32 %v2471, %v2477
    %v2495 = vmul.f32 %v2470, %v2481
    %v2496 = vmul.f32 %v2469, %v2485
    %v2497 = vmul.f32 %v2468, %v2489
    %v2498 = vpack.c.bf16 %v2494, %v2494
    %v2499 = vpack.c.bf16 %v2495, %v2495
    %v2500 = vpack.c.bf16 %v2496, %v2496
    %v2501 = vpack.c.bf16 %v2497, %v2497
    %v2506 = vunpack.c.l.b16 %v2498
    %v2507 = vunpack.c.l.b16 %v2499
    %v2508 = vunpack.c.l.b16 %v2500
    %v2509 = vunpack.c.l.b16 %v2501
    %v2510 = vpack.c.b16 %v2507, %v2506
    %v2511 = vpack.c.b16 %v2509, %v2508
    %2514 = vst [vmem:[#allocation3 + $0x70] sm:$0xff] %v2510
    %2515 = vst [vmem:[#allocation3 + $0x78] sm:$0xff] %v2511
    %2516 = vrot.lane.b32.xlu0 %v2064, 55
    %v2517 = vpop.permute.xlu0 %2516
    %2518 = vrot.lane.b32.xlu0 %v2065, 55
    %v2519 = vpop.permute.xlu0 %2518
    %2520 = vrot.lane.b32.xlu0 %v2066, 55
    %v2521 = vpop.permute.xlu0 %2520
    %2522 = vrot.lane.b32.xlu0 %v2067, 55
    %v2523 = vpop.permute.xlu0 %2522
    %v2524 = vsel %vm662, %v2521, %v2523
    %v2525 = vsel %vm662, %v2519, %v2521
    %v2526 = vsel %vm662, %v2517, %v2519
    %v2527 = vsel %vm662, %v2523, %v2517
    %v2528 = vld [vmem:[%s667] ss:$8 sm:$0xf]
    %v2530 = vlaneseq
    %v2531 = vshrl.u32 %v2530, 7
    %v2532 = vsub.s32 0, %v2531
    %v2533 = vrot.slane %v2528, %v2532
    %v2534 = vlaneseq
    %v2535 = vshrl.u32 %v2534, 7
    %v2536 = vsub.s32 1, %v2535
    %v2537 = vrot.slane %v2528, %v2536
    %v2538 = vlaneseq
    %v2539 = vshrl.u32 %v2538, 7
    %v2540 = vsub.s32 2, %v2539
    %v2541 = vrot.slane %v2528, %v2540
    %v2542 = vlaneseq
    %v2543 = vshrl.u32 %v2542, 7
    %v2544 = vsub.s32 3, %v2543
    %v2545 = vrot.slane %v2528, %v2544
    %v2550 = vmul.f32 %v2527, %v2533
    %v2551 = vmul.f32 %v2526, %v2537
    %v2552 = vmul.f32 %v2525, %v2541
    %v2553 = vmul.f32 %v2524, %v2545
    %v2554 = vpack.c.bf16 %v2550, %v2550
    %v2555 = vpack.c.bf16 %v2551, %v2551
    %v2556 = vpack.c.bf16 %v2552, %v2552
    %v2557 = vpack.c.bf16 %v2553, %v2553
    %v2562 = vunpack.c.l.b16 %v2554
    %v2563 = vunpack.c.l.b16 %v2555
    %v2564 = vunpack.c.l.b16 %v2556
    %v2565 = vunpack.c.l.b16 %v2557
    %v2566 = vpack.c.b16 %v2563, %v2562
    %v2567 = vpack.c.b16 %v2565, %v2564
    %2570 = vst [vmem:[#allocation3 + $0x80] sm:$0xff] %v2566
    %2571 = vst [vmem:[#allocation3 + $0x88] sm:$0xff] %v2567
    %2572 = vrot.lane.b32.xlu0 %v2064, 9
    %v2573 = vpop.permute.xlu0 %2572
    %2574 = vrot.lane.b32.xlu0 %v2065, 9
    %v2575 = vpop.permute.xlu0 %2574
    %2576 = vrot.lane.b32.xlu0 %v2066, 9
    %v2577 = vpop.permute.xlu0 %2576
    %2578 = vrot.lane.b32.xlu0 %v2067, 9
    %v2579 = vpop.permute.xlu0 %2578
    %v2580 = vsel %vm734, %v2577, %v2579
    %v2581 = vsel %vm734, %v2575, %v2577
    %v2582 = vsel %vm734, %v2573, %v2575
    %v2583 = vsel %vm734, %v2579, %v2573
    %v2584 = vld [vmem:[%s739] ss:$8 sm:$0xf]
    %v2586 = vlaneseq
    %v2587 = vshrl.u32 %v2586, 7
    %v2588 = vsub.s32 0, %v2587
    %v2589 = vrot.slane %v2584, %v2588
    %v2590 = vlaneseq
    %v2591 = vshrl.u32 %v2590, 7
    %v2592 = vsub.s32 1, %v2591
    %v2593 = vrot.slane %v2584, %v2592
    %v2594 = vlaneseq
    %v2595 = vshrl.u32 %v2594, 7
    %v2596 = vsub.s32 2, %v2595
    %v2597 = vrot.slane %v2584, %v2596
    %v2598 = vlaneseq
    %v2599 = vshrl.u32 %v2598, 7
    %v2600 = vsub.s32 3, %v2599
    %v2601 = vrot.slane %v2584, %v2600
    %v2606 = vmul.f32 %v2583, %v2589
    %v2607 = vmul.f32 %v2582, %v2593
    %v2608 = vmul.f32 %v2581, %v2597
    %v2609 = vmul.f32 %v2580, %v2601
    %v2610 = vpack.c.bf16 %v2606, %v2606
    %v2611 = vpack.c.bf16 %v2607, %v2607
    %v2612 = vpack.c.bf16 %v2608, %v2608
    %v2613 = vpack.c.bf16 %v2609, %v2609
    %v2618 = vunpack.c.l.b16 %v2610
    %v2619 = vunpack.c.l.b16 %v2611
    %v2620 = vunpack.c.l.b16 %v2612
    %v2621 = vunpack.c.l.b16 %v2613
    %v2622 = vpack.c.b16 %v2619, %v2618
    %v2623 = vpack.c.b16 %v2621, %v2620
    %2626 = vst [vmem:[#allocation3 + $0x90] sm:$0xff] %v2622
    %2627 = vst [vmem:[#allocation3 + $0x98] sm:$0xff] %v2623
    %2628 = vrot.lane.b32.xlu0 %v2064, 8
    %v2629 = vpop.permute.xlu0 %2628
    %2630 = vrot.lane.b32.xlu0 %v2065, 8
    %v2631 = vpop.permute.xlu0 %2630
    %2632 = vrot.lane.b32.xlu0 %v2066, 8
    %v2633 = vpop.permute.xlu0 %2632
    %2634 = vrot.lane.b32.xlu0 %v2067, 8
    %v2635 = vpop.permute.xlu0 %2634
    %v2636 = vsel %vm806, %v2633, %v2635
    %v2637 = vsel %vm806, %v2631, %v2633
    %v2638 = vsel %vm806, %v2629, %v2631
    %v2639 = vsel %vm806, %v2635, %v2629
    %v2640 = vld [vmem:[%s811] ss:$8 sm:$0xf]
    %v2642 = vlaneseq
    %v2643 = vshrl.u32 %v2642, 7
    %v2644 = vsub.s32 0, %v2643
    %v2645 = vrot.slane %v2640, %v2644
    %v2646 = vlaneseq
    %v2647 = vshrl.u32 %v2646, 7
    %v2648 = vsub.s32 1, %v2647
    %v2649 = vrot.slane %v2640, %v2648
    %v2650 = vlaneseq
    %v2651 = vshrl.u32 %v2650, 7
    %v2652 = vsub.s32 2, %v2651
    %v2653 = vrot.slane %v2640, %v2652
    %v2654 = vlaneseq
    %v2655 = vshrl.u32 %v2654, 7
    %v2656 = vsub.s32 3, %v2655
    %v2657 = vrot.slane %v2640, %v2656
    %v2662 = vmul.f32 %v2639, %v2645
    %v2663 = vmul.f32 %v2638, %v2649
    %v2664 = vmul.f32 %v2637, %v2653
    %v2665 = vmul.f32 %v2636, %v2657
    %v2666 = vpack.c.bf16 %v2662, %v2662
    %v2667 = vpack.c.bf16 %v2663, %v2663
    %v2668 = vpack.c.bf16 %v2664, %v2664
    %v2669 = vpack.c.bf16 %v2665, %v2665
    %v2674 = vunpack.c.l.b16 %v2666
    %v2675 = vunpack.c.l.b16 %v2667
    %v2676 = vunpack.c.l.b16 %v2668
    %v2677 = vunpack.c.l.b16 %v2669
    %v2678 = vpack.c.b16 %v2675, %v2674
    %v2679 = vpack.c.b16 %v2677, %v2676
    %2682 = vst [vmem:[#allocation3 + $0xa0] sm:$0xff] %v2678
    %2683 = vst [vmem:[#allocation3 + $0xa8] sm:$0xff] %v2679
    %2684 = vrot.lane.b32.xlu0 %v2064, 7
    %v2685 = vpop.permute.xlu0 %2684
    %2686 = vrot.lane.b32.xlu0 %v2065, 7
    %v2687 = vpop.permute.xlu0 %2686
    %2688 = vrot.lane.b32.xlu0 %v2066, 7
    %v2689 = vpop.permute.xlu0 %2688
    %2690 = vrot.lane.b32.xlu0 %v2067, 7
    %v2691 = vpop.permute.xlu0 %2690
    %v2692 = vsel %vm878, %v2689, %v2691
    %v2693 = vsel %vm878, %v2687, %v2689
    %v2694 = vsel %vm878, %v2685, %v2687
    %v2695 = vsel %vm878, %v2691, %v2685
    %v2696 = vld [vmem:[%s883] ss:$8 sm:$0xf]
    %v2698 = vlaneseq
    %v2699 = vshrl.u32 %v2698, 7
    %v2700 = vsub.s32 0, %v2699
    %v2701 = vrot.slane %v2696, %v2700
    %v2702 = vlaneseq
    %v2703 = vshrl.u32 %v2702, 7
    %v2704 = vsub.s32 1, %v2703
    %v2705 = vrot.slane %v2696, %v2704
    %v2706 = vlaneseq
    %v2707 = vshrl.u32 %v2706, 7
    %v2708 = vsub.s32 2, %v2707
    %v2709 = vrot.slane %v2696, %v2708
    %v2710 = vlaneseq
    %v2711 = vshrl.u32 %v2710, 7
    %v2712 = vsub.s32 3, %v2711
    %v2713 = vrot.slane %v2696, %v2712
    %v2718 = vmul.f32 %v2695, %v2701
    %v2719 = vmul.f32 %v2694, %v2705
    %v2720 = vmul.f32 %v2693, %v2709
    %v2721 = vmul.f32 %v2692, %v2713
    %v2722 = vpack.c.bf16 %v2718, %v2718
    %v2723 = vpack.c.bf16 %v2719, %v2719
    %v2724 = vpack.c.bf16 %v2720, %v2720
    %v2725 = vpack.c.bf16 %v2721, %v2721
    %v2730 = vunpack.c.l.b16 %v2722
    %v2731 = vunpack.c.l.b16 %v2723
    %v2732 = vunpack.c.l.b16 %v2724
    %v2733 = vunpack.c.l.b16 %v2725
    %v2734 = vpack.c.b16 %v2731, %v2730
    %v2735 = vpack.c.b16 %v2733, %v2732
    %2738 = vst [vmem:[#allocation3 + $0xb0] sm:$0xff] %v2734
    %2739 = vst [vmem:[#allocation3 + $0xb8] sm:$0xff] %v2735
    %2740 = vrot.lane.b32.xlu0 %v2064, 1
    %v2741 = vpop.permute.xlu0 %2740
    %2742 = vrot.lane.b32.xlu0 %v2065, 1
    %v2743 = vpop.permute.xlu0 %2742
    %2744 = vrot.lane.b32.xlu0 %v2066, 1
    %v2745 = vpop.permute.xlu0 %2744
    %2746 = vrot.lane.b32.xlu0 %v2067, 1
    %v2747 = vpop.permute.xlu0 %2746
    %v2748 = vsel %vm950, %v2745, %v2747
    %v2749 = vsel %vm950, %v2743, %v2745
    %v2750 = vsel %vm950, %v2741, %v2743
    %v2751 = vsel %vm950, %v2747, %v2741
    %v2752 = vld [vmem:[%s955] ss:$8 sm:$0xf]
    %v2754 = vlaneseq
    %v2755 = vshrl.u32 %v2754, 7
    %v2756 = vsub.s32 0, %v2755
    %v2757 = vrot.slane %v2752, %v2756
    %v2758 = vlaneseq
    %v2759 = vshrl.u32 %v2758, 7
    %v2760 = vsub.s32 1, %v2759
    %v2761 = vrot.slane %v2752, %v2760
    %v2762 = vlaneseq
    %v2763 = vshrl.u32 %v2762, 7
    %v2764 = vsub.s32 2, %v2763
    %v2765 = vrot.slane %v2752, %v2764
    %v2766 = vlaneseq
    %v2767 = vshrl.u32 %v2766, 7
    %v2768 = vsub.s32 3, %v2767
    %v2769 = vrot.slane %v2752, %v2768
    %v2774 = vmul.f32 %v2751, %v2757
    %v2775 = vmul.f32 %v2750, %v2761
    %v2776 = vmul.f32 %v2749, %v2765
    %v2777 = vmul.f32 %v2748, %v2769
    %v2778 = vpack.c.bf16 %v2774, %v2774
    %v2779 = vpack.c.bf16 %v2775, %v2775
    %v2780 = vpack.c.bf16 %v2776, %v2776
    %v2781 = vpack.c.bf16 %v2777, %v2777
    %v2786 = vunpack.c.l.b16 %v2778
    %v2787 = vunpack.c.l.b16 %v2779
    %v2788 = vunpack.c.l.b16 %v2780
    %v2789 = vunpack.c.l.b16 %v2781
    %v2790 = vpack.c.b16 %v2787, %v2786
    %v2791 = vpack.c.b16 %v2789, %v2788
    %2794 = vst [vmem:[#allocation3 + $0xc0] sm:$0xff] %v2790
    %2795 = vst [vmem:[#allocation3 + $0xc8] sm:$0xff] %v2791
    %v2796 = vpack.c.bf16 %v2064, %v2064
    %v2797 = vpack.c.bf16 %v2065, %v2065
    %v2798 = vpack.c.bf16 %v2066, %v2066
    %v2799 = vpack.c.bf16 %v2067, %v2067
    %v2804 = vunpack.c.l.b16 %v2796
    %v2805 = vunpack.c.l.b16 %v2797
    %v2806 = vunpack.c.l.b16 %v2798
    %v2807 = vunpack.c.l.b16 %v2799
    %v2808 = vpack.c.b16 %v2805, %v2804
    %v2809 = vpack.c.b16 %v2807, %v2806
    %2812 = vst [vmem:[#allocation3 + $0xd0] sm:$0xff] %v2808
    %2813 = vst [vmem:[#allocation3 + $0xd8] sm:$0xff] %v2809
    %2814 = vrot.lane.b32.xlu0 %v2064, 127
    %v2815 = vpop.permute.xlu0 %2814
    %2816 = vrot.lane.b32.xlu0 %v2065, 127
    %v2817 = vpop.permute.xlu0 %2816
    %2818 = vrot.lane.b32.xlu0 %v2066, 127
    %v2819 = vpop.permute.xlu0 %2818
    %2820 = vrot.lane.b32.xlu0 %v2067, 127
    %v2821 = vpop.permute.xlu0 %2820
    %v2822 = vsel %vm1025, %v2819, %v2821
    %v2823 = vsel %vm1025, %v2817, %v2819
    %v2824 = vsel %vm1025, %v2815, %v2817
    %v2825 = vsel %vm1025, %v2821, %v2815
    %v2826 = vld [vmem:[%s1030] ss:$8 sm:$0xf]
    %v2828 = vlaneseq
    %v2829 = vshrl.u32 %v2828, 7
    %v2830 = vsub.s32 0, %v2829
    %v2831 = vrot.slane %v2826, %v2830
    %v2832 = vlaneseq
    %v2833 = vshrl.u32 %v2832, 7
    %v2834 = vsub.s32 1, %v2833
    %v2835 = vrot.slane %v2826, %v2834
    %v2836 = vlaneseq
    %v2837 = vshrl.u32 %v2836, 7
    %v2838 = vsub.s32 2, %v2837
    %v2839 = vrot.slane %v2826, %v2838
    %v2840 = vlaneseq
    %v2841 = vshrl.u32 %v2840, 7
    %v2842 = vsub.s32 3, %v2841
    %v2843 = vrot.slane %v2826, %v2842
    %v2848 = vmul.f32 %v2824, %v2831
    %v2849 = vmul.f32 %v2823, %v2835
    %v2850 = vmul.f32 %v2822, %v2839
    %v2851 = vmul.f32 %v2825, %v2843
    %v2852 = vpack.c.bf16 %v2848, %v2848
    %v2853 = vpack.c.bf16 %v2849, %v2849
    %v2854 = vpack.c.bf16 %v2850, %v2850
    %v2855 = vpack.c.bf16 %v2851, %v2851
    %v2860 = vunpack.c.l.b16 %v2852
    %v2861 = vunpack.c.l.b16 %v2853
    %v2862 = vunpack.c.l.b16 %v2854
    %v2863 = vunpack.c.l.b16 %v2855
    %v2864 = vpack.c.b16 %v2861, %v2860
    %v2865 = vpack.c.b16 %v2863, %v2862
    %2868 = vst [vmem:[#allocation3 + $0xe0] sm:$0xff] %v2864
    %2869 = vst [vmem:[#allocation3 + $0xe8] sm:$0xff] %v2865
    %2870 = vrot.lane.b32.xlu0 %v2064, 121
    %v2871 = vpop.permute.xlu0 %2870
    %2872 = vrot.lane.b32.xlu0 %v2065, 121
    %v2873 = vpop.permute.xlu0 %2872
    %2874 = vrot.lane.b32.xlu0 %v2066, 121
    %v2875 = vpop.permute.xlu0 %2874
    %2876 = vrot.lane.b32.xlu0 %v2067, 121
    %v2877 = vpop.permute.xlu0 %2876
    %v2878 = vsel %vm1097, %v2875, %v2877
    %v2879 = vsel %vm1097, %v2873, %v2875
    %v2880 = vsel %vm1097, %v2871, %v2873
    %v2881 = vsel %vm1097, %v2877, %v2871
    %v2882 = vld [vmem:[%s1102] ss:$8 sm:$0xf]
    %v2884 = vlaneseq
    %v2885 = vshrl.u32 %v2884, 7
    %v2886 = vsub.s32 0, %v2885
    %v2887 = vrot.slane %v2882, %v2886
    %v2888 = vlaneseq
    %v2889 = vshrl.u32 %v2888, 7
    %v2890 = vsub.s32 1, %v2889
    %v2891 = vrot.slane %v2882, %v2890
    %v2892 = vlaneseq
    %v2893 = vshrl.u32 %v2892, 7
    %v2894 = vsub.s32 2, %v2893
    %v2895 = vrot.slane %v2882, %v2894
    %v2896 = vlaneseq
    %v2897 = vshrl.u32 %v2896, 7
    %v2898 = vsub.s32 3, %v2897
    %v2899 = vrot.slane %v2882, %v2898
    %v2904 = vmul.f32 %v2880, %v2887
    %v2905 = vmul.f32 %v2879, %v2891
    %v2906 = vmul.f32 %v2878, %v2895
    %v2907 = vmul.f32 %v2881, %v2899
    %v2908 = vpack.c.bf16 %v2904, %v2904
    %v2909 = vpack.c.bf16 %v2905, %v2905
    %v2910 = vpack.c.bf16 %v2906, %v2906
    %v2911 = vpack.c.bf16 %v2907, %v2907
    %v2916 = vunpack.c.l.b16 %v2908
    %v2917 = vunpack.c.l.b16 %v2909
    %v2918 = vunpack.c.l.b16 %v2910
    %v2919 = vunpack.c.l.b16 %v2911
    %v2920 = vpack.c.b16 %v2917, %v2916
    %v2921 = vpack.c.b16 %v2919, %v2918
    %2924 = vst [vmem:[#allocation3 + $0xf0] sm:$0xff] %v2920
    %2925 = vst [vmem:[#allocation3 + $0xf8] sm:$0xff] %v2921
    %2926 = vrot.lane.b32.xlu0 %v2064, 120
    %v2927 = vpop.permute.xlu0 %2926
    %2928 = vrot.lane.b32.xlu0 %v2065, 120
    %v2929 = vpop.permute.xlu0 %2928
    %2930 = vrot.lane.b32.xlu0 %v2066, 120
    %v2931 = vpop.permute.xlu0 %2930
    %2932 = vrot.lane.b32.xlu0 %v2067, 120
    %v2933 = vpop.permute.xlu0 %2932
    %v2934 = vsel %vm1169, %v2931, %v2933
    %v2935 = vsel %vm1169, %v2929, %v2931
    %v2936 = vsel %vm1169, %v2927, %v2929
    %v2937 = vsel %vm1169, %v2933, %v2927
    %v2938 = vld [vmem:[%s1174] ss:$8 sm:$0xf]
    %v2940 = vlaneseq
    %v2941 = vshrl.u32 %v2940, 7
    %v2942 = vsub.s32 0, %v2941
    %v2943 = vrot.slane %v2938, %v2942
    %v2944 = vlaneseq
    %v2945 = vshrl.u32 %v2944, 7
    %v2946 = vsub.s32 1, %v2945
    %v2947 = vrot.slane %v2938, %v2946
    %v2948 = vlaneseq
    %v2949 = vshrl.u32 %v2948, 7
    %v2950 = vsub.s32 2, %v2949
    %v2951 = vrot.slane %v2938, %v2950
    %v2952 = vlaneseq
    %v2953 = vshrl.u32 %v2952, 7
    %v2954 = vsub.s32 3, %v2953
    %v2955 = vrot.slane %v2938, %v2954
    %v2960 = vmul.f32 %v2936, %v2943
    %v2961 = vmul.f32 %v2935, %v2947
    %v2962 = vmul.f32 %v2934, %v2951
    %v2963 = vmul.f32 %v2937, %v2955
    %v2964 = vpack.c.bf16 %v2960, %v2960
    %v2965 = vpack.c.bf16 %v2961, %v2961
    %v2966 = vpack.c.bf16 %v2962, %v2962
    %v2967 = vpack.c.bf16 %v2963, %v2963
    %v2972 = vunpack.c.l.b16 %v2964
    %v2973 = vunpack.c.l.b16 %v2965
    %v2974 = vunpack.c.l.b16 %v2966
    %v2975 = vunpack.c.l.b16 %v2967
    %v2976 = vpack.c.b16 %v2973, %v2972
    %v2977 = vpack.c.b16 %v2975, %v2974
    %2980 = vst [vmem:[#allocation3 + $0x100] sm:$0xff] %v2976
    %2981 = vst [vmem:[#allocation3 + $0x108] sm:$0xff] %v2977
    %2982 = vrot.lane.b32.xlu0 %v2064, 119
    %v2983 = vpop.permute.xlu0 %2982
    %2984 = vrot.lane.b32.xlu0 %v2065, 119
    %v2985 = vpop.permute.xlu0 %2984
    %2986 = vrot.lane.b32.xlu0 %v2066, 119
    %v2987 = vpop.permute.xlu0 %2986
    %2988 = vrot.lane.b32.xlu0 %v2067, 119
    %v2989 = vpop.permute.xlu0 %2988
    %v2990 = vsel %vm1241, %v2987, %v2989
    %v2991 = vsel %vm1241, %v2985, %v2987
    %v2992 = vsel %vm1241, %v2983, %v2985
    %v2993 = vsel %vm1241, %v2989, %v2983
    %v2994 = vld [vmem:[%s1246] ss:$8 sm:$0xf]
    %v2996 = vlaneseq
    %v2997 = vshrl.u32 %v2996, 7
    %v2998 = vsub.s32 0, %v2997
    %v2999 = vrot.slane %v2994, %v2998
    %v3000 = vlaneseq
    %v3001 = vshrl.u32 %v3000, 7
    %v3002 = vsub.s32 1, %v3001
    %v3003 = vrot.slane %v2994, %v3002
    %v3004 = vlaneseq
    %v3005 = vshrl.u32 %v3004, 7
    %v3006 = vsub.s32 2, %v3005
    %v3007 = vrot.slane %v2994, %v3006
    %v3008 = vlaneseq
    %v3009 = vshrl.u32 %v3008, 7
    %v3010 = vsub.s32 3, %v3009
    %v3011 = vrot.slane %v2994, %v3010
    %v3016 = vmul.f32 %v2992, %v2999
    %v3017 = vmul.f32 %v2991, %v3003
    %v3018 = vmul.f32 %v2990, %v3007
    %v3019 = vmul.f32 %v2993, %v3011
    %v3020 = vpack.c.bf16 %v3016, %v3016
    %v3021 = vpack.c.bf16 %v3017, %v3017
    %v3022 = vpack.c.bf16 %v3018, %v3018
    %v3023 = vpack.c.bf16 %v3019, %v3019
    %v3028 = vunpack.c.l.b16 %v3020
    %v3029 = vunpack.c.l.b16 %v3021
    %v3030 = vunpack.c.l.b16 %v3022
    %v3031 = vunpack.c.l.b16 %v3023
    %v3032 = vpack.c.b16 %v3029, %v3028
    %v3033 = vpack.c.b16 %v3031, %v3030
    %3036 = vst [vmem:[#allocation3 + $0x110] sm:$0xff] %v3032
    %3037 = vst [vmem:[#allocation3 + $0x118] sm:$0xff] %v3033
    %v3038 = vld [vmem:[%s1305] ss:$8 sm:$0xf]
    %v3040 = vlaneseq
    %v3041 = vshrl.u32 %v3040, 7
    %v3042 = vsub.s32 0, %v3041
    %v3043 = vrot.slane %v3038, %v3042
    %v3044 = vlaneseq
    %v3045 = vshrl.u32 %v3044, 7
    %v3046 = vsub.s32 1, %v3045
    %v3047 = vrot.slane %v3038, %v3046
    %v3048 = vlaneseq
    %v3049 = vshrl.u32 %v3048, 7
    %v3050 = vsub.s32 2, %v3049
    %v3051 = vrot.slane %v3038, %v3050
    %v3052 = vlaneseq
    %v3053 = vshrl.u32 %v3052, 7
    %v3054 = vsub.s32 3, %v3053
    %v3055 = vrot.slane %v3038, %v3054
    %v3060 = vmul.f32 %v2078, %v3043
    %v3061 = vmul.f32 %v2077, %v3047
    %v3062 = vmul.f32 %v2076, %v3051
    %v3063 = vmul.f32 %v2079, %v3055
    %v3064 = vpack.c.bf16 %v3060, %v3060
    %v3065 = vpack.c.bf16 %v3061, %v3061
    %v3066 = vpack.c.bf16 %v3062, %v3062
    %v3067 = vpack.c.bf16 %v3063, %v3063
    %v3072 = vunpack.c.l.b16 %v3064
    %v3073 = vunpack.c.l.b16 %v3065
    %v3074 = vunpack.c.l.b16 %v3066
    %v3075 = vunpack.c.l.b16 %v3067
    %v3076 = vpack.c.b16 %v3073, %v3072
    %v3077 = vpack.c.b16 %v3075, %v3074
    %3080 = vst [vmem:[#allocation3 + $0x120] sm:$0xff] %v3076
    %3081 = vst [vmem:[#allocation3 + $0x128] sm:$0xff] %v3077
    %v3082 = vld [vmem:[%s1364] ss:$8 sm:$0xf]
    %v3084 = vlaneseq
    %v3085 = vshrl.u32 %v3084, 7
    %v3086 = vsub.s32 0, %v3085
    %v3087 = vrot.slane %v3082, %v3086
    %v3088 = vlaneseq
    %v3089 = vshrl.u32 %v3088, 7
    %v3090 = vsub.s32 1, %v3089
    %v3091 = vrot.slane %v3082, %v3090
    %v3092 = vlaneseq
    %v3093 = vshrl.u32 %v3092, 7
    %v3094 = vsub.s32 2, %v3093
    %v3095 = vrot.slane %v3082, %v3094
    %v3096 = vlaneseq
    %v3097 = vshrl.u32 %v3096, 7
    %v3098 = vsub.s32 3, %v3097
    %v3099 = vrot.slane %v3082, %v3098
    %v3104 = vmul.f32 %v2134, %v3087
    %v3105 = vmul.f32 %v2133, %v3091
    %v3106 = vmul.f32 %v2132, %v3095
    %v3107 = vmul.f32 %v2135, %v3099
    %v3108 = vpack.c.bf16 %v3104, %v3104
    %v3109 = vpack.c.bf16 %v3105, %v3105
    %v3110 = vpack.c.bf16 %v3106, %v3106
    %v3111 = vpack.c.bf16 %v3107, %v3107
    %v3116 = vunpack.c.l.b16 %v3108
    %v3117 = vunpack.c.l.b16 %v3109
    %v3118 = vunpack.c.l.b16 %v3110
    %v3119 = vunpack.c.l.b16 %v3111
    %v3120 = vpack.c.b16 %v3117, %v3116
    %v3121 = vpack.c.b16 %v3119, %v3118
    %3124 = vst [vmem:[#allocation3 + $0x130] sm:$0xff] %v3120
    %3125 = vst [vmem:[#allocation3 + $0x138] sm:$0xff] %v3121
    %v3126 = vld [vmem:[%s1423] ss:$8 sm:$0xf]
    %v3128 = vlaneseq
    %v3129 = vshrl.u32 %v3128, 7
    %v3130 = vsub.s32 0, %v3129
    %v3131 = vrot.slane %v3126, %v3130
    %v3132 = vlaneseq
    %v3133 = vshrl.u32 %v3132, 7
    %v3134 = vsub.s32 1, %v3133
    %v3135 = vrot.slane %v3126, %v3134
    %v3136 = vlaneseq
    %v3137 = vshrl.u32 %v3136, 7
    %v3138 = vsub.s32 2, %v3137
    %v3139 = vrot.slane %v3126, %v3138
    %v3140 = vlaneseq
    %v3141 = vshrl.u32 %v3140, 7
    %v3142 = vsub.s32 3, %v3141
    %v3143 = vrot.slane %v3126, %v3142
    %v3148 = vmul.f32 %v2190, %v3131
    %v3149 = vmul.f32 %v2189, %v3135
    %v3150 = vmul.f32 %v2188, %v3139
    %v3151 = vmul.f32 %v2191, %v3143
    %v3152 = vpack.c.bf16 %v3148, %v3148
    %v3153 = vpack.c.bf16 %v3149, %v3149
    %v3154 = vpack.c.bf16 %v3150, %v3150
    %v3155 = vpack.c.bf16 %v3151, %v3151
    %v3160 = vunpack.c.l.b16 %v3152
    %v3161 = vunpack.c.l.b16 %v3153
    %v3162 = vunpack.c.l.b16 %v3154
    %v3163 = vunpack.c.l.b16 %v3155
    %v3164 = vpack.c.b16 %v3161, %v3160
    %v3165 = vpack.c.b16 %v3163, %v3162
    %3168 = vst [vmem:[#allocation3 + $0x140] sm:$0xff] %v3164
    %3169 = vst [vmem:[#allocation3 + $0x148] sm:$0xff] %v3165
    %v3170 = vld [vmem:[%s1482] ss:$8 sm:$0xf]
    %v3172 = vlaneseq
    %v3173 = vshrl.u32 %v3172, 7
    %v3174 = vsub.s32 0, %v3173
    %v3175 = vrot.slane %v3170, %v3174
    %v3176 = vlaneseq
    %v3177 = vshrl.u32 %v3176, 7
    %v3178 = vsub.s32 1, %v3177
    %v3179 = vrot.slane %v3170, %v3178
    %v3180 = vlaneseq
    %v3181 = vshrl.u32 %v3180, 7
    %v3182 = vsub.s32 2, %v3181
    %v3183 = vrot.slane %v3170, %v3182
    %v3184 = vlaneseq
    %v3185 = vshrl.u32 %v3184, 7
    %v3186 = vsub.s32 3, %v3185
    %v3187 = vrot.slane %v3170, %v3186
    %v3192 = vmul.f32 %v2246, %v3175
    %v3193 = vmul.f32 %v2245, %v3179
    %v3194 = vmul.f32 %v2244, %v3183
    %v3195 = vmul.f32 %v2247, %v3187
    %v3196 = vpack.c.bf16 %v3192, %v3192
    %v3197 = vpack.c.bf16 %v3193, %v3193
    %v3198 = vpack.c.bf16 %v3194, %v3194
    %v3199 = vpack.c.bf16 %v3195, %v3195
    %v3204 = vunpack.c.l.b16 %v3196
    %v3205 = vunpack.c.l.b16 %v3197
    %v3206 = vunpack.c.l.b16 %v3198
    %v3207 = vunpack.c.l.b16 %v3199
    %v3208 = vpack.c.b16 %v3205, %v3204
    %v3209 = vpack.c.b16 %v3207, %v3206
    %3212 = vst [vmem:[#allocation3 + $0x150] sm:$0xff] %v3208
    %3213 = vst [vmem:[#allocation3 + $0x158] sm:$0xff] %v3209
    %v3214 = vld [vmem:[%s1541] ss:$8 sm:$0xf]
    %v3216 = vlaneseq
    %v3217 = vshrl.u32 %v3216, 7
    %v3218 = vsub.s32 0, %v3217
    %v3219 = vrot.slane %v3214, %v3218
    %v3220 = vlaneseq
    %v3221 = vshrl.u32 %v3220, 7
    %v3222 = vsub.s32 1, %v3221
    %v3223 = vrot.slane %v3214, %v3222
    %v3224 = vlaneseq
    %v3225 = vshrl.u32 %v3224, 7
    %v3226 = vsub.s32 2, %v3225
    %v3227 = vrot.slane %v3214, %v3226
    %v3228 = vlaneseq
    %v3229 = vshrl.u32 %v3228, 7
    %v3230 = vsub.s32 3, %v3229
    %v3231 = vrot.slane %v3214, %v3230
    %v3236 = vmul.f32 %v2302, %v3219
    %v3237 = vmul.f32 %v2301, %v3223
    %v3238 = vmul.f32 %v2300, %v3227
    %v3239 = vmul.f32 %v2303, %v3231
    %v3240 = vpack.c.bf16 %v3236, %v3236
    %v3241 = vpack.c.bf16 %v3237, %v3237
    %v3242 = vpack.c.bf16 %v3238, %v3238
    %v3243 = vpack.c.bf16 %v3239, %v3239
    %v3248 = vunpack.c.l.b16 %v3240
    %v3249 = vunpack.c.l.b16 %v3241
    %v3250 = vunpack.c.l.b16 %v3242
    %v3251 = vunpack.c.l.b16 %v3243
    %v3252 = vpack.c.b16 %v3249, %v3248
    %v3253 = vpack.c.b16 %v3251, %v3250
    %3256 = vst [vmem:[#allocation3 + $0x160] sm:$0xff] %v3252
    %3257 = vst [vmem:[#allocation3 + $0x168] sm:$0xff] %v3253
    %v3258 = vld [vmem:[%s1600] ss:$8 sm:$0xf]
    %v3260 = vlaneseq
    %v3261 = vshrl.u32 %v3260, 7
    %v3262 = vsub.s32 0, %v3261
    %v3263 = vrot.slane %v3258, %v3262
    %v3264 = vlaneseq
    %v3265 = vshrl.u32 %v3264, 7
    %v3266 = vsub.s32 1, %v3265
    %v3267 = vrot.slane %v3258, %v3266
    %v3268 = vlaneseq
    %v3269 = vshrl.u32 %v3268, 7
    %v3270 = vsub.s32 2, %v3269
    %v3271 = vrot.slane %v3258, %v3270
    %v3272 = vlaneseq
    %v3273 = vshrl.u32 %v3272, 7
    %v3274 = vsub.s32 3, %v3273
    %v3275 = vrot.slane %v3258, %v3274
    %v3280 = vmul.f32 %v2358, %v3263
    %v3281 = vmul.f32 %v2357, %v3267
    %v3282 = vmul.f32 %v2356, %v3271
    %v3283 = vmul.f32 %v2359, %v3275
    %v3284 = vpack.c.bf16 %v3280, %v3280
    %v3285 = vpack.c.bf16 %v3281, %v3281
    %v3286 = vpack.c.bf16 %v3282, %v3282
    %v3287 = vpack.c.bf16 %v3283, %v3283
    %v3292 = vunpack.c.l.b16 %v3284
    %v3293 = vunpack.c.l.b16 %v3285
    %v3294 = vunpack.c.l.b16 %v3286
    %v3295 = vunpack.c.l.b16 %v3287
    %v3296 = vpack.c.b16 %v3293, %v3292
    %v3297 = vpack.c.b16 %v3295, %v3294
    %3300 = vst [vmem:[#allocation3 + $0x170] sm:$0xff] %v3296
    %3301 = vst [vmem:[#allocation3 + $0x178] sm:$0xff] %v3297
    %v3302 = vld [vmem:[%s1659] ss:$8 sm:$0xf]
    %v3304 = vlaneseq
    %v3305 = vshrl.u32 %v3304, 7
    %v3306 = vsub.s32 0, %v3305
    %v3307 = vrot.slane %v3302, %v3306
    %v3308 = vlaneseq
    %v3309 = vshrl.u32 %v3308, 7
    %v3310 = vsub.s32 1, %v3309
    %v3311 = vrot.slane %v3302, %v3310
    %v3312 = vlaneseq
    %v3313 = vshrl.u32 %v3312, 7
    %v3314 = vsub.s32 2, %v3313
    %v3315 = vrot.slane %v3302, %v3314
    %v3316 = vlaneseq
    %v3317 = vshrl.u32 %v3316, 7
    %v3318 = vsub.s32 3, %v3317
    %v3319 = vrot.slane %v3302, %v3318
    %v3324 = vmul.f32 %v2414, %v3307
    %v3325 = vmul.f32 %v2413, %v3311
    %v3326 = vmul.f32 %v2412, %v3315
    %v3327 = vmul.f32 %v2415, %v3319
    %v3328 = vpack.c.bf16 %v3324, %v3324
    %v3329 = vpack.c.bf16 %v3325, %v3325
    %v3330 = vpack.c.bf16 %v3326, %v3326
    %v3331 = vpack.c.bf16 %v3327, %v3327
    %v3336 = vunpack.c.l.b16 %v3328
    %v3337 = vunpack.c.l.b16 %v3329
    %v3338 = vunpack.c.l.b16 %v3330
    %v3339 = vunpack.c.l.b16 %v3331
    %v3340 = vpack.c.b16 %v3337, %v3336
    %v3341 = vpack.c.b16 %v3339, %v3338
    %3344 = vst [vmem:[#allocation3 + $0x180] sm:$0xff] %v3340
    %3345 = vst [vmem:[#allocation3 + $0x188] sm:$0xff] %v3341
    %v3346 = vld [vmem:[%s1718] ss:$8 sm:$0xf]
    %v3348 = vlaneseq
    %v3349 = vshrl.u32 %v3348, 7
    %v3350 = vsub.s32 0, %v3349
    %v3351 = vrot.slane %v3346, %v3350
    %v3352 = vlaneseq
    %v3353 = vshrl.u32 %v3352, 7
    %v3354 = vsub.s32 1, %v3353
    %v3355 = vrot.slane %v3346, %v3354
    %v3356 = vlaneseq
    %v3357 = vshrl.u32 %v3356, 7
    %v3358 = vsub.s32 2, %v3357
    %v3359 = vrot.slane %v3346, %v3358
    %v3360 = vlaneseq
    %v3361 = vshrl.u32 %v3360, 7
    %v3362 = vsub.s32 3, %v3361
    %v3363 = vrot.slane %v3346, %v3362
    %v3368 = vmul.f32 %v2470, %v3351
    %v3369 = vmul.f32 %v2469, %v3355
    %v3370 = vmul.f32 %v2468, %v3359
    %v3371 = vmul.f32 %v2471, %v3363
    %v3372 = vpack.c.bf16 %v3368, %v3368
    %v3373 = vpack.c.bf16 %v3369, %v3369
    %v3374 = vpack.c.bf16 %v3370, %v3370
    %v3375 = vpack.c.bf16 %v3371, %v3371
    %v3380 = vunpack.c.l.b16 %v3372
    %v3381 = vunpack.c.l.b16 %v3373
    %v3382 = vunpack.c.l.b16 %v3374
    %v3383 = vunpack.c.l.b16 %v3375
    %v3384 = vpack.c.b16 %v3381, %v3380
    %v3385 = vpack.c.b16 %v3383, %v3382
    %3388 = vst [vmem:[#allocation3 + $0x190] sm:$0xff] %v3384
    %3389 = vst [vmem:[#allocation3 + $0x198] sm:$0xff] %v3385
    %v3390 = vld [vmem:[%s1777] ss:$8 sm:$0xf]
    %v3392 = vlaneseq
    %v3393 = vshrl.u32 %v3392, 7
    %v3394 = vsub.s32 0, %v3393
    %v3395 = vrot.slane %v3390, %v3394
    %v3396 = vlaneseq
    %v3397 = vshrl.u32 %v3396, 7
    %v3398 = vsub.s32 1, %v3397
    %v3399 = vrot.slane %v3390, %v3398
    %v3400 = vlaneseq
    %v3401 = vshrl.u32 %v3400, 7
    %v3402 = vsub.s32 2, %v3401
    %v3403 = vrot.slane %v3390, %v3402
    %v3404 = vlaneseq
    %v3405 = vshrl.u32 %v3404, 7
    %v3406 = vsub.s32 3, %v3405
    %v3407 = vrot.slane %v3390, %v3406
    %v3412 = vmul.f32 %v2526, %v3395
    %v3413 = vmul.f32 %v2525, %v3399
    %v3414 = vmul.f32 %v2524, %v3403
    %v3415 = vmul.f32 %v2527, %v3407
    %v3416 = vpack.c.bf16 %v3412, %v3412
    %v3417 = vpack.c.bf16 %v3413, %v3413
    %v3418 = vpack.c.bf16 %v3414, %v3414
    %v3419 = vpack.c.bf16 %v3415, %v3415
    %v3424 = vunpack.c.l.b16 %v3416
    %v3425 = vunpack.c.l.b16 %v3417
    %v3426 = vunpack.c.l.b16 %v3418
    %v3427 = vunpack.c.l.b16 %v3419
    %v3428 = vpack.c.b16 %v3425, %v3424
    %v3429 = vpack.c.b16 %v3427, %v3426
    %3432 = vst [vmem:[#allocation3 + $0x1a0] sm:$0xff] %v3428
    %3433 = vst [vmem:[#allocation3 + $0x1a8] sm:$0xff] %v3429
    %v3434 = vld [vmem:[%s6] sm:$0xff]
    %v3435 = vld [vmem:[#allocation3] sm:$0xff]
    %v3436 = vld [vmem:[#allocation3 + $0x8] sm:$0xff]
    %v3437 = vld [vmem:[#allocation3 + $0x10] sm:$0xff]
    %v3438 = vld [vmem:[#allocation3 + $0x18] sm:$0xff]
    %v3439 = vld [vmem:[#allocation3 + $0x20] sm:$0xff]
    %v3440 = vld [vmem:[#allocation3 + $0x28] sm:$0xff]
    %v3441 = vld [vmem:[#allocation3 + $0x30] sm:$0xff]
    %v3442 = vld [vmem:[#allocation3 + $0x38] sm:$0xff]
    %v3443 = vld [vmem:[#allocation3 + $0x40] sm:$0xff]
    %v3444 = vld [vmem:[#allocation3 + $0x48] sm:$0xff]
    %v3445 = vld [vmem:[#allocation3 + $0x50] sm:$0xff]
    %v3446 = vld [vmem:[#allocation3 + $0x58] sm:$0xff]
    %v3447 = vld [vmem:[#allocation3 + $0x60] sm:$0xff]
    %v3448 = vld [vmem:[#allocation3 + $0x68] sm:$0xff]
    %v3449 = vld [vmem:[#allocation3 + $0x70] sm:$0xff]
    %v3450 = vld [vmem:[#allocation3 + $0x78] sm:$0xff]
    %v3451 = vld [vmem:[#allocation3 + $0x80] sm:$0xff]
    %v3452 = vld [vmem:[#allocation3 + $0x88] sm:$0xff]
    %v3453 = vld [vmem:[#allocation3 + $0x90] sm:$0xff]
    %v3454 = vld [vmem:[#allocation3 + $0x98] sm:$0xff]
    %v3455 = vld [vmem:[#allocation3 + $0xa0] sm:$0xff]
    %v3456 = vld [vmem:[#allocation3 + $0xa8] sm:$0xff]
    %v3457 = vld [vmem:[#allocation3 + $0xb0] sm:$0xff]
    %v3458 = vld [vmem:[#allocation3 + $0xb8] sm:$0xff]
    %v3459 = vld [vmem:[#allocation3 + $0xc0] sm:$0xff]
    %v3460 = vld [vmem:[#allocation3 + $0xc8] sm:$0xff]
    %v3461 = vld [vmem:[#allocation3 + $0xd0] sm:$0xff]
    %v3462 = vld [vmem:[#allocation3 + $0xd8] sm:$0xff]
    %v3463 = vld [vmem:[#allocation3 + $0xe0] sm:$0xff]
    %v3464 = vld [vmem:[#allocation3 + $0xe8] sm:$0xff]
    %v3465 = vld [vmem:[#allocation3 + $0xf0] sm:$0xff]
    %v3466 = vld [vmem:[#allocation3 + $0xf8] sm:$0xff]
    %v3467 = vld [vmem:[#allocation3 + $0x100] sm:$0xff]
    %v3468 = vld [vmem:[#allocation3 + $0x108] sm:$0xff]
    %v3469 = vld [vmem:[#allocation3 + $0x110] sm:$0xff]
    %v3470 = vld [vmem:[#allocation3 + $0x118] sm:$0xff]
    %v3471 = vld [vmem:[#allocation3 + $0x120] sm:$0xff]
    %v3472 = vld [vmem:[#allocation3 + $0x128] sm:$0xff]
    %v3473 = vld [vmem:[#allocation3 + $0x130] sm:$0xff]
    %v3474 = vld [vmem:[#allocation3 + $0x138] sm:$0xff]
    %v3475 = vld [vmem:[#allocation3 + $0x140] sm:$0xff]
    %v3476 = vld [vmem:[#allocation3 + $0x148] sm:$0xff]
    %v3477 = vld [vmem:[#allocation3 + $0x150] sm:$0xff]
    %v3478 = vld [vmem:[#allocation3 + $0x158] sm:$0xff]
    %v3479 = vld [vmem:[#allocation3 + $0x160] sm:$0xff]
    %v3480 = vld [vmem:[#allocation3 + $0x168] sm:$0xff]
    %v3481 = vld [vmem:[#allocation3 + $0x170] sm:$0xff]
    %v3482 = vld [vmem:[#allocation3 + $0x178] sm:$0xff]
    %v3483 = vld [vmem:[#allocation3 + $0x180] sm:$0xff]
    %v3484 = vld [vmem:[#allocation3 + $0x188] sm:$0xff]
    %v3485 = vld [vmem:[#allocation3 + $0x190] sm:$0xff]
    %v3486 = vld [vmem:[#allocation3 + $0x198] sm:$0xff]
    %v3487 = vld [vmem:[#allocation3 + $0x1a0] sm:$0xff]
    %v3488 = vld [vmem:[#allocation3 + $0x1a8] sm:$0xff]
    %v3490 = vunpack.c.l.b16 %v3434
    %v3491 = vunpack.c.h.b16 %v3434
    %v3492 = vpack.c.b16 %v3490, %v3490
    %v3493 = vpack.c.b16 %v3491, %v3491
    %v3549 = vunpack.c.l.b16 %v3435
    %v3550 = vunpack.c.h.b16 %v3435
    %v3551 = vunpack.c.l.b16 %v3436
    %v3552 = vunpack.c.h.b16 %v3436
    %v3553 = vunpack.c.l.b16 %v3437
    %v3554 = vunpack.c.h.b16 %v3437
    %v3555 = vunpack.c.l.b16 %v3438
    %v3556 = vunpack.c.h.b16 %v3438
    %v3557 = vunpack.c.l.b16 %v3439
    %v3558 = vunpack.c.h.b16 %v3439
    %v3559 = vunpack.c.l.b16 %v3440
    %v3560 = vunpack.c.h.b16 %v3440
    %v3561 = vunpack.c.l.b16 %v3441
    %v3562 = vunpack.c.h.b16 %v3441
    %v3563 = vunpack.c.l.b16 %v3442
    %v3564 = vunpack.c.h.b16 %v3442
    %v3565 = vunpack.c.l.b16 %v3443
    %v3566 = vunpack.c.h.b16 %v3443
    %v3567 = vunpack.c.l.b16 %v3444
    %v3568 = vunpack.c.h.b16 %v3444
    %v3569 = vunpack.c.l.b16 %v3445
    %v3570 = vunpack.c.h.b16 %v3445
    %v3571 = vunpack.c.l.b16 %v3446
    %v3572 = vunpack.c.h.b16 %v3446
    %v3573 = vunpack.c.l.b16 %v3447
    %v3574 = vunpack.c.h.b16 %v3447
    %v3575 = vunpack.c.l.b16 %v3448
    %v3576 = vunpack.c.h.b16 %v3448
    %v3577 = vunpack.c.l.b16 %v3449
    %v3578 = vunpack.c.h.b16 %v3449
    %v3579 = vunpack.c.l.b16 %v3450
    %v3580 = vunpack.c.h.b16 %v3450
    %v3581 = vunpack.c.l.b16 %v3451
    %v3582 = vunpack.c.h.b16 %v3451
    %v3583 = vunpack.c.l.b16 %v3452
    %v3584 = vunpack.c.h.b16 %v3452
    %v3585 = vunpack.c.l.b16 %v3453
    %v3586 = vunpack.c.h.b16 %v3453
    %v3587 = vunpack.c.l.b16 %v3454
    %v3588 = vunpack.c.h.b16 %v3454
    %v3589 = vunpack.c.l.b16 %v3455
    %v3590 = vunpack.c.h.b16 %v3455
    %v3591 = vunpack.c.l.b16 %v3456
    %v3592 = vunpack.c.h.b16 %v3456
    %v3593 = vunpack.c.l.b16 %v3457
    %v3594 = vunpack.c.h.b16 %v3457
    %v3595 = vunpack.c.l.b16 %v3458
    %v3596 = vunpack.c.h.b16 %v3458
    %v3597 = vunpack.c.l.b16 %v3459
    %v3598 = vunpack.c.h.b16 %v3459
    %v3599 = vunpack.c.l.b16 %v3460
    %v3600 = vunpack.c.h.b16 %v3460
    %v3601 = vunpack.c.l.b16 %v3461
    %v3602 = vunpack.c.h.b16 %v3461
    %v3603 = vunpack.c.l.b16 %v3462
    %v3604 = vunpack.c.h.b16 %v3462
    %v3605 = vunpack.c.l.b16 %v3463
    %v3606 = vunpack.c.h.b16 %v3463
    %v3607 = vunpack.c.l.b16 %v3464
    %v3608 = vunpack.c.h.b16 %v3464
    %v3609 = vunpack.c.l.b16 %v3465
    %v3610 = vunpack.c.h.b16 %v3465
    %v3611 = vunpack.c.l.b16 %v3466
    %v3612 = vunpack.c.h.b16 %v3466
    %v3613 = vunpack.c.l.b16 %v3467
    %v3614 = vunpack.c.h.b16 %v3467
    %v3615 = vunpack.c.l.b16 %v3468
    %v3616 = vunpack.c.h.b16 %v3468
    %v3617 = vunpack.c.l.b16 %v3469
    %v3618 = vunpack.c.h.b16 %v3469
    %v3619 = vunpack.c.l.b16 %v3470
    %v3620 = vunpack.c.h.b16 %v3470
    %v3621 = vunpack.c.l.b16 %v3471
    %v3622 = vunpack.c.h.b16 %v3471
    %v3623 = vunpack.c.l.b16 %v3472
    %v3624 = vunpack.c.h.b16 %v3472
    %v3625 = vunpack.c.l.b16 %v3473
    %v3626 = vunpack.c.h.b16 %v3473
    %v3627 = vunpack.c.l.b16 %v3474
    %v3628 = vunpack.c.h.b16 %v3474
    %v3629 = vunpack.c.l.b16 %v3475
    %v3630 = vunpack.c.h.b16 %v3475
    %v3631 = vunpack.c.l.b16 %v3476
    %v3632 = vunpack.c.h.b16 %v3476
    %v3633 = vunpack.c.l.b16 %v3477
    %v3634 = vunpack.c.h.b16 %v3477
    %v3635 = vunpack.c.l.b16 %v3478
    %v3636 = vunpack.c.h.b16 %v3478
    %v3637 = vunpack.c.l.b16 %v3479
    %v3638 = vunpack.c.h.b16 %v3479
    %v3639 = vunpack.c.l.b16 %v3480
    %v3640 = vunpack.c.h.b16 %v3480
    %v3641 = vunpack.c.l.b16 %v3481
    %v3642 = vunpack.c.h.b16 %v3481
    %v3643 = vunpack.c.l.b16 %v3482
    %v3644 = vunpack.c.h.b16 %v3482
    %v3645 = vunpack.c.l.b16 %v3483
    %v3646 = vunpack.c.h.b16 %v3483
    %v3647 = vunpack.c.l.b16 %v3484
    %v3648 = vunpack.c.h.b16 %v3484
    %v3649 = vunpack.c.l.b16 %v3485
    %v3650 = vunpack.c.h.b16 %v3485
    %v3651 = vunpack.c.l.b16 %v3486
    %v3652 = vunpack.c.h.b16 %v3486
    %v3653 = vunpack.c.l.b16 %v3487
    %v3654 = vunpack.c.h.b16 %v3487
    %v3655 = vunpack.c.l.b16 %v3488
    %v3656 = vunpack.c.h.b16 %v3488
    %v3657 = vpack.c.b16 %v3553, %v3549
    %v3658 = vpack.c.b16 %v3554, %v3550
    %v3659 = vpack.c.b16 %v3555, %v3551
    %v3660 = vpack.c.b16 %v3556, %v3552
    %v3661 = vpack.c.b16 %v3561, %v3557
    %v3662 = vpack.c.b16 %v3562, %v3558
    %v3663 = vpack.c.b16 %v3563, %v3559
    %v3664 = vpack.c.b16 %v3564, %v3560
    %v3665 = vpack.c.b16 %v3569, %v3565
    %v3666 = vpack.c.b16 %v3570, %v3566
    %v3667 = vpack.c.b16 %v3571, %v3567
    %v3668 = vpack.c.b16 %v3572, %v3568
    %v3669 = vpack.c.b16 %v3577, %v3573
    %v3670 = vpack.c.b16 %v3578, %v3574
    %v3671 = vpack.c.b16 %v3579, %v3575
    %v3672 = vpack.c.b16 %v3580, %v3576
    %v3673 = vpack.c.b16 %v3585, %v3581
    %v3674 = vpack.c.b16 %v3586, %v3582
    %v3675 = vpack.c.b16 %v3587, %v3583
    %v3676 = vpack.c.b16 %v3588, %v3584
    %v3677 = vpack.c.b16 %v3593, %v3589
    %v3678 = vpack.c.b16 %v3594, %v3590
    %v3679 = vpack.c.b16 %v3595, %v3591
    %v3680 = vpack.c.b16 %v3596, %v3592
    %v3681 = vpack.c.b16 %v3601, %v3597
    %v3682 = vpack.c.b16 %v3602, %v3598
    %v3683 = vpack.c.b16 %v3603, %v3599
    %v3684 = vpack.c.b16 %v3604, %v3600
    %v3685 = vpack.c.b16 %v3609, %v3605
    %v3686 = vpack.c.b16 %v3610, %v3606
    %v3687 = vpack.c.b16 %v3611, %v3607
    %v3688 = vpack.c.b16 %v3612, %v3608
    %v3689 = vpack.c.b16 %v3617, %v3613
    %v3690 = vpack.c.b16 %v3618, %v3614
    %v3691 = vpack.c.b16 %v3619, %v3615
    %v3692 = vpack.c.b16 %v3620, %v3616
    %v3693 = vpack.c.b16 %v3625, %v3621
    %v3694 = vpack.c.b16 %v3626, %v3622
    %v3695 = vpack.c.b16 %v3627, %v3623
    %v3696 = vpack.c.b16 %v3628, %v3624
    %v3697 = vpack.c.b16 %v3633, %v3629
    %v3698 = vpack.c.b16 %v3634, %v3630
    %v3699 = vpack.c.b16 %v3635, %v3631
    %v3700 = vpack.c.b16 %v3636, %v3632
    %v3701 = vpack.c.b16 %v3641, %v3637
    %v3702 = vpack.c.b16 %v3642, %v3638
    %v3703 = vpack.c.b16 %v3643, %v3639
    %v3704 = vpack.c.b16 %v3644, %v3640
    %v3705 = vpack.c.b16 %v3649, %v3645
    %v3706 = vpack.c.b16 %v3650, %v3646
    %v3707 = vpack.c.b16 %v3651, %v3647
    %v3708 = vpack.c.b16 %v3652, %v3648
    %v3709 = vpack.c.b16 %v3653, %v3653
    %v3710 = vpack.c.b16 %v3654, %v3654
    %v3711 = vpack.c.b16 %v3655, %v3655
    %v3712 = vpack.c.b16 %v3656, %v3656
    %vm3765 = vcmask 719872
    %v3767 = vsel %vm3765, %v3493, 0
    %vm3769 = vcmask 1043456
    %v3771 = vsel %vm3769, %v3709, 0
    %v3774 = vsel %vm3769, %v3710, 0
    %v3777 = vsel %vm3769, %v3711, 0
    %v3780 = vsel %vm3769, %v3712, 0
    %3782 = vmatprep.subr.bf16.mxu0 %v3686
    %3783 = vmatpush1.bf16.msra.mxu0 %v3685
    %3784 = vmatprep.subr.bf16.mxu0 %v3682
    %3785 = vmatpush1.bf16.msra.mxu0 %v3681
    %3786 = vmatprep.subr.bf16.mxu0 %v3678
    %3787 = vmatpush1.bf16.msra.mxu0 %v3677
    %3788 = vmatprep.subr.bf16.mxu0 %v3674
    %3789 = vmatpush1.bf16.msra.mxu0 %v3673
    %3790 = vmatprep.subr.bf16.mxu0 %v3670
    %3791 = vmatpush1.bf16.msra.mxu0 %v3669
    %3792 = vmatprep.subr.bf16.mxu0 %v3666
    %3793 = vmatpush1.bf16.msra.mxu0 %v3665
    %3794 = vmatprep.subr.bf16.mxu0 %v3662
    %3795 = vmatpush1.bf16.msra.mxu0 %v3661
    %3796 = vmatprep.subr.bf16.mxu0 %v3658
    %3797 = vmatpush1.bf16.msra.mxu0 %v3657
    %3798 = vmatprep.subr.bf16.mxu0 0
    %3799 = vmatpush2.bf16.msra.mxu0 0
    %3800 = vmatprep.subr.bf16.mxu0 0
    %3801 = vmatpush2.bf16.msra.mxu0 0
    %3802 = vmatprep.subr.bf16.mxu0 %v3774
    %3803 = vmatpush2.bf16.msra.mxu0 %v3771
    %3804 = vmatprep.subr.bf16.mxu0 %v3706
    %3805 = vmatpush2.bf16.msra.mxu0 %v3705
    %3806 = vmatprep.subr.bf16.mxu0 %v3702
    %3807 = vmatpush2.bf16.msra.mxu0 %v3701
    %3808 = vmatprep.subr.bf16.mxu0 %v3698
    %3809 = vmatpush2.bf16.msra.mxu0 %v3697
    %3810 = vmatprep.subr.bf16.mxu0 %v3694
    %3811 = vmatpush2.bf16.msra.mxu0 %v3693
    %3812 = vmatprep.subr.bf16.mxu0 %v3690
    %3813 = vmatpush2.bf16.msra.mxu0 %v3689
    %3814 = vmatprep.mubr.bf16.mxu0 %v3767
    %3815 = vmatmul.mubr.bf16.gmra.mxu0 %v3492
    %v3816 = vpop.f32.mrf.mxu0
    %v3817 = vadd.f32 0.0, %v3816
    %v3818 = vpop.f32.mrf.mxu0
    %v3819 = vadd.f32 0.0, %v3818
    %v3820 = vpop.f32.mrf.mxu0
    %v3821 = vpop.f32.mrf.mxu0
    %3822 = vdwg.mxu0
    %3823 = vmatprep.subr.bf16.mxu0 %v3688
    %3824 = vmatpush1.bf16.msra.mxu0 %v3687
    %3825 = vmatprep.subr.bf16.mxu0 %v3684
    %3826 = vmatpush1.bf16.msra.mxu0 %v3683
    %3827 = vmatprep.subr.bf16.mxu0 %v3680
    %3828 = vmatpush1.bf16.msra.mxu0 %v3679
    %3829 = vmatprep.subr.bf16.mxu0 %v3676
    %3830 = vmatpush1.bf16.msra.mxu0 %v3675
    %3831 = vmatprep.subr.bf16.mxu0 %v3672
    %3832 = vmatpush1.bf16.msra.mxu0 %v3671
    %3833 = vmatprep.subr.bf16.mxu0 %v3668
    %3834 = vmatpush1.bf16.msra.mxu0 %v3667
    %3835 = vmatprep.subr.bf16.mxu0 %v3664
    %3836 = vmatpush1.bf16.msra.mxu0 %v3663
    %3837 = vmatprep.subr.bf16.mxu0 %v3660
    %3838 = vmatpush1.bf16.msra.mxu0 %v3659
    %3839 = vmatprep.subr.bf16.mxu0 0
    %3840 = vmatpush2.bf16.msra.mxu0 0
    %3841 = vmatprep.subr.bf16.mxu0 0
    %3842 = vmatpush2.bf16.msra.mxu0 0
    %3843 = vmatprep.subr.bf16.mxu0 %v3780
    %3844 = vmatpush2.bf16.msra.mxu0 %v3777
    %3845 = vmatprep.subr.bf16.mxu0 %v3708
    %3846 = vmatpush2.bf16.msra.mxu0 %v3707
    %3847 = vmatprep.subr.bf16.mxu0 %v3704
    %3848 = vmatpush2.bf16.msra.mxu0 %v3703
    %3849 = vmatprep.subr.bf16.mxu0 %v3700
    %3850 = vmatpush2.bf16.msra.mxu0 %v3699
    %3851 = vmatprep.subr.bf16.mxu0 %v3696
    %3852 = vmatpush2.bf16.msra.mxu0 %v3695
    %3853 = vmatprep.subr.bf16.mxu0 %v3692
    %3854 = vmatpush2.bf16.msra.mxu0 %v3691
    %3855 = vmatprep.mubr.bf16.mxu0 %v3767
    %3856 = vmatmul.mubr.bf16.gmra.mxu0 %v3492
    %v3857 = vpop.f32.mrf.mxu0
    %v3858 = vadd.f32 0.0, %v3857
    %v3859 = vpop.f32.mrf.mxu0
    %v3860 = vadd.f32 0.0, %v3859
    %v3861 = vpop.f32.mrf.mxu0
    %v3862 = vpop.f32.mrf.mxu0
    %3863 = vdwg.mxu0
    %v3864 = vadd.f32 %v3817, %v3819
    %v3865 = vadd.f32 %v3864, %v3858
    %v3866 = vadd.f32 %v3865, %v3860
    %3867 = vadd.xlane.f32.xlu0 %v3866
    %v3868 = vpop.xlane.xlu0 %3867
    %v3869 = vmul.f32 %v3868, 0.001953125
    %v3870 = vmul.f32 %v3817, %v3817
    %v3871 = vmul.f32 %v3819, %v3819
    %v3872 = vmul.f32 %v3858, %v3858
    %v3873 = vmul.f32 %v3860, %v3860
    %v3874 = vadd.f32 %v3870, %v3871
    %v3875 = vadd.f32 %v3874, %v3872
    %v3876 = vadd.f32 %v3875, %v3873
    %3877 = vadd.xlane.f32.xlu0 %v3876
    %v3878 = vpop.xlane.xlu0 %3877
    %v3879 = vmul.f32 %v3878, 0.001953125
    %v3880 = vmul.f32 %v3869, %v3869
    %v3881 = vsub.f32 %v3879, %v3880
    %v3882 = vsub.f32 %v3817, %v3869
    %v3883 = vsub.f32 %v3819, %v3869
    %v3884 = vsub.f32 %v3858, %v3869
    %v3885 = vsub.f32 %v3860, %v3869
    %v3886 = vadd.f32 %v3881, 1e-05
    %v3887 = vrsqrt.pop %v3886
    %v3888 = vmul.f32 %v3882, %v3887
    %v3889 = vmul.f32 %v3883, %v3887
    %v3890 = vmul.f32 %v3884, %v3887
    %v3891 = vmul.f32 %v3885, %v3887
    %v3892 = vld [vmem:[%s7] sm:$0xff]
    %3894 = vset.pattern.permute.xlu0 0
    %3895 = vperm.xlu0 %3894, %v3892
    %v3896 = vpop.permute.xlu0 %3895
    %v3898 = vmul.f32 %v3888, %v3896
    %v3899 = vmul.f32 %v3889, %v3896
    %v3900 = vmul.f32 %v3890, %v3896
    %v3901 = vmul.f32 %v3891, %v3896
    %v3902 = vld [vmem:[%s8] sm:$0xff]
    %3904 = vset.pattern.permute.xlu0 0
    %3905 = vperm.xlu0 %3904, %v3902
    %v3906 = vpop.permute.xlu0 %3905
    %v3908 = vadd.f32 %v3898, %v3906
    %v3909 = vadd.f32 %v3899, %v3906
    %v3910 = vadd.f32 %v3900, %v3906
    %v3911 = vadd.f32 %v3901, %v3906
    %v3912 = vmul.f32 %v3908, 0.01
    %v3913 = vmul.f32 %v3909, 0.01
    %v3914 = vmul.f32 %v3910, 0.01
    %v3915 = vmul.f32 %v3911, 0.01
    %v3916 = vmax.f32 %v3908, %v3912
    %v3917 = vmax.f32 %v3909, %v3913
    %v3918 = vmax.f32 %v3910, %v3914
    %v3919 = vmax.f32 %v3911, %v3915
    %v3920 = vld [vmem:[%s1] sm:$0xf]
    %v3922 = vlaneseq
    %v3923 = vshrl.u32 %v3922, 7
    %v3924 = vsub.s32 0, %v3923
    %v3925 = vrot.slane %v3920, %v3924
    %v3926 = vlaneseq
    %v3927 = vshrl.u32 %v3926, 7
    %v3928 = vsub.s32 1, %v3927
    %v3929 = vrot.slane %v3920, %v3928
    %v3930 = vlaneseq
    %v3931 = vshrl.u32 %v3930, 7
    %v3932 = vsub.s32 2, %v3931
    %v3933 = vrot.slane %v3920, %v3932
    %v3934 = vlaneseq
    %v3935 = vshrl.u32 %v3934, 7
    %v3936 = vsub.s32 3, %v3935
    %v3937 = vrot.slane %v3920, %v3936
    %vm3942 = vcmask 1040384
    %v3943 = vsel %vm3942, %v3925, 0.0
    %v3944 = vsel %vm3942, %v3929, 0.0
    %v3945 = vadd.f32 %v3943, %v3944
    %v3946 = vsel %vm3942, %v3933, 0.0
    %v3947 = vadd.f32 %v3945, %v3946
    %v3948 = vsel %vm3942, %v3937, 0.0
    %v3949 = vadd.f32 %v3947, %v3948
    %3950 = vadd.xlane.f32.xlu0 %v3949
    %v3951 = vpop.xlane.xlu0 %3950
    %v3952 = vadd.f32 %v3951, 1e-12
    %v3953 = vmul.f32 %v3916, %v3925
    %v3954 = vmul.f32 %v3917, %v3929
    %v3955 = vmul.f32 %v3918, %v3933
    %v3956 = vmul.f32 %v3919, %v3937
    %v3957 = vadd.f32 %v3953, %v3954
    %v3958 = vadd.f32 %v3957, %v3955
    %v3959 = vadd.f32 %v3958, %v3956
    %3960 = vadd.xlane.f32.xlu0 %v3959
    %v3961 = vpop.xlane.xlu0 %3960
    %v3962 = vlaneseq
    %v3963 = vshrl.u32 %v3962, 7
    %v3964 = vsub.s32 0, %v3963
    %v3965 = vrot.slane %v3952, %v3964
    %v3966 = vrcp.pop %v3965
    %v3967 = vmul.f32 %v3961, %v3966
    %v3968 = vld [vmem:[%s9] sm:$0xff]
    %v3969 = vmul.f32 %v3967, %v3968
    %vm3970 = vcmask 261120
    %v3971 = vsel %vm3970, %v3969, 0.0
    %v3972 = vrot.slane %v3971, 4
    %v3973 = vadd.f32 %v3971, %v3972
    %v3974 = vrot.slane %v3973, 2
    %v3975 = vadd.f32 %v3973, %v3974
    %v3976 = vrot.slane %v3975, 1
    %v3977 = vadd.f32 %v3975, %v3976
    %v3978 = vld [vmem:[%s10] sm:$0x1]
    %v3979 = vadd.f32 %v3977, %v3978
    %v3980 = vmax.f32 %v3979, 0.0
    %v3981 = vld [vmem:[%s11] sm:$0xff]
    %v3982 = vld [vmem:[%s11 + $0x8] sm:$0xff]
    %v3983 = vld [vmem:[%s11 + $0x10] sm:$0xff]
    %v3984 = vld [vmem:[%s11 + $0x18] sm:$0xff]
    %v3985 = vlaneseq
    %v3986 = vshrl.u32 %v3985, 7
    %v3987 = vsub.s32 0, %v3986
    %v3988 = vrot.slane %v3980, %v3987
    %v3989 = vmul.f32 %v3988, %v3981
    %v3990 = vmul.f32 %v3988, %v3982
    %v3991 = vmul.f32 %v3988, %v3983
    %v3992 = vmul.f32 %v3988, %v3984
    %v3993 = vsel %vm3970, %v3989, 0.0
    %3994 = vadd.xlane.f32.xlu0 %v3993
    %v3995 = vpop.xlane.xlu0 %3994
    %v3996 = vsel %vm3970, %v3990, 0.0
    %3997 = vadd.xlane.f32.xlu0 %v3996
    %v3998 = vpop.xlane.xlu0 %3997
    %v3999 = vsel %vm3970, %v3991, 0.0
    %4000 = vadd.xlane.f32.xlu0 %v3999
    %v4001 = vpop.xlane.xlu0 %4000
    %v4002 = vsel %vm3970, %v3992, 0.0
    %4003 = vadd.xlane.f32.xlu0 %v4002
    %v4004 = vpop.xlane.xlu0 %4003
    %v4005 = vld [vmem:[%s12] sm:$0xff]
    %v4006 = vld [vmem:[%s12 + $0x8] sm:$0xff]
    %v4007 = vld [vmem:[%s12 + $0x10] sm:$0xff]
    %v4008 = vld [vmem:[%s12 + $0x18] sm:$0xff]
    %v4009 = vadd.f32 %v3995, %v4005
    %v4010 = vadd.f32 %v3998, %v4006
    %v4011 = vadd.f32 %v4001, %v4007
    %v4012 = vadd.f32 %v4004, %v4008
    %v4013 = vmax.f32 %v4009, 0.0
    %v4014 = vmax.f32 %v4010, 0.0
    %v4015 = vmax.f32 %v4011, 0.0
    %v4016 = vmax.f32 %v4012, 0.0
    %v4017 = vld [vmem:[%s13] sm:$0xff]
    %v4018 = vld [vmem:[%s13 + $0x8] sm:$0xff]
    %v4019 = vld [vmem:[%s13 + $0x10] sm:$0xff]
    %v4020 = vld [vmem:[%s13 + $0x18] sm:$0xff]
    %4022 = vset.pattern.permute.xlu0 0
    %4023 = vperm.xlu0 %4022, %v4013
    %v4024 = vpop.permute.xlu0 %4023
    %4027 = vset.pattern.permute.xlu0 0
    %4028 = vperm.xlu0 %4027, %v4014
    %v4029 = vpop.permute.xlu0 %4028
    %4032 = vset.pattern.permute.xlu0 0
    %4033 = vperm.xlu0 %4032, %v4015
    %v4034 = vpop.permute.xlu0 %4033
    %4037 = vset.pattern.permute.xlu0 0
    %4038 = vperm.xlu0 %4037, %v4016
    %v4039 = vpop.permute.xlu0 %4038
    %v4041 = vmul.f32 %v4024, %v4017
    %v4042 = vmul.f32 %v4029, %v4018
    %v4043 = vmul.f32 %v4034, %v4019
    %v4044 = vmul.f32 %v4039, %v4020
    %vm4045 = vcmask 39936
    %v4046 = vsel %vm4045, %v4041, 0.0
    %v4047 = vsel %vm4045, %v4042, 0.0
    %v4048 = vadd.f32 %v4046, %v4047
    %v4049 = vsel %vm4045, %v4043, 0.0
    %v4050 = vadd.f32 %v4048, %v4049
    %v4051 = vsel %vm4045, %v4044, 0.0
    %v4052 = vadd.f32 %v4050, %v4051
    %v4053 = vrot.slane %v4052, 4
    %v4054 = vadd.f32 %v4052, %v4053
    %v4055 = vrot.slane %v4054, 2
    %v4056 = vadd.f32 %v4054, %v4055
    %v4057 = vrot.slane %v4056, 1
    %v4058 = vadd.f32 %v4056, %v4057
    %v4059 = vld [vmem:[%s14] sm:$0x1]
    %v4060 = vadd.f32 %v4058, %v4059
    %vm4061 = vcmask 32768
    %4062 = vst.msk [vmem:[#allocation4] sm:$0x1] %vm4061, %v4060
    // Predicated region
    $region62: #{basenet_forward.1} parent=1 // pred_check
      _
    $region63: #{basenet_forward.1} parent=1 // pred_check_branch
      %4064 = sbr.rel (0) target = $region65
    $region64: #{basenet_forward.1} parent=1 // pred_region
      %s4066 = ssub.s32 16, 16
      %4067 = vsyncadd [#allocation5], %s4066
      %s4069 = sshll.u32 [#allocation4], 4
      %s4070 = int_to_ptr.vmem [resolvable:$true] %s4069
      %4072 = dma.vmem_to_hbm [thread:$0]  %s4070, 16, %s15, [#allocation5]
    $region65: #{basenet_forward.1} parent=1 // pred_fallthru
      _
    // Predicated region
    $region66: #{basenet_forward.1} parent=1 // pred_check
      _
    $region67: #{basenet_forward.1} parent=1 // pred_check_branch
      %4074 = sbr.rel (0) target = $region69
    $region68: #{basenet_forward.1} parent=1 // pred_region
      %4075 = dma.done [#allocation5], 16
    $region69: #{basenet_forward.1} parent=1 // pred_fallthru
      _
    %4076 = vsyncpa [#allocation5], 1

</llo_original>
